<compile_context>
chip_gen: v7x
topology: tpu7x:2x2x1
jax: 0.10.0
libtpu: 0.0.40
codegen_flags: <defaults>
</compile_context>

<pallas_src>
import jax
import jax.numpy as jnp
import numpy as np
from jax.experimental import pallas as pl
from jax.experimental.pallas import tpu as pltpu

POOL = 4  # MaxPool2d(4)


def _round_up(x, m):
    return ((x + m - 1) // m) * m


def _choose_row_tile(r):
    """Pooled-row tile (16*tile lhs rows per grid step), multiple of 8 when tiled."""
    if r <= 64:
        return r
    for tr in (64, 32, 16, 8):
        if r % tr == 0:
            return tr
    return r


# --------------------------------------------------------------------------- #
# Fused Conv3x3(same) + MaxPool(4) + ReLU kernel (single wide matmul per step)
# --------------------------------------------------------------------------- #
def conv_pool_relu_kernel(lhs_ref, w_ref, o_ref):
    # lhs_ref: (1, 16*TR, Kp)  im2col patches, rows ordered (pooled_pos, pool_offset);
    #          column K holds 1.0 (bias column), columns > K are zero padding.
    # w_ref:   (Kp, Cout)      flattened conv weight (rows ky,kx,cin), row K = bias.
    # o_ref:   (1, TR, Cout)
    tr = o_ref.shape[1]
    cout = o_ref.shape[2]
    # One MXU pass over all 16 pool offsets at once (M = 16*TR).
    y = jnp.dot(lhs_ref[0], w_ref[...], preferred_element_type=jnp.float32)
    y = y.reshape(tr, POOL * POOL, cout)     # group the 16 window elems per pooled cell
    y = jnp.max(y, axis=1)                   # 4x4 max-pool (bias add commutes with max)
    o_ref[0] = jnp.maximum(y, 0.0)           # ReLU (Sequential order: conv, pool, relu)


def _im2col_pool_rows(x):
    """x: (N,H,W,Cin) -> (N, R*16, 9*Cin); row index = pooled_pos*16 + pool_offset.

    Plain-JAX glue (pad / concat / transpose).  Kept outside the kernel; see notes.
    """
    N, H, W, Cin = x.shape
    xp = jnp.pad(x, ((0, 0), (1, 1), (1, 1), (0, 0)))
    cols = [xp[:, ky:ky + H, kx:kx + W, :] for ky in range(3) for kx in range(3)]
    patches = jnp.concatenate(cols, axis=-1)                     # (N, H, W, 9*Cin)
    HB, WB = H // POOL, W // POOL
    p = patches.reshape(N, HB, POOL, WB, POOL, 9 * Cin)
    p = p.transpose(0, 1, 3, 2, 4, 5)                            # (N, HB, WB, py, px, 9Cin)
    return p.reshape(N, HB * WB * POOL * POOL, 9 * Cin)


def conv_pool_relu(x_nhwc, w_flat, b):
    """x_nhwc: (N, H, W, Cin) -> (N, H//4, W//4, Cout).  H, W must be multiples of 4."""
    N, H, W, Cin = x_nhwc.shape
    K, Cout = w_flat.shape
    HB, WB = H // POOL, W // POOL
    R = HB * WB

    # Pad the reduction dim to a full 128-lane multiple; use one padded column
    # as a ones-column so the bias rides inside the matmul (no separate bias block).
    Kp = _round_up(K + 1, 128)
    lhs = _im2col_pool_rows(x_nhwc)                              # (N, 16*R, K)
    lhs = jnp.concatenate(
        [lhs, jnp.ones((N, R * POOL * POOL, 1), lhs.dtype)], axis=-1)
    if Kp > K + 1:
        lhs = jnp.pad(lhs, ((0, 0), (0, 0), (0, Kp - K - 1)))
    w_aug = jnp.concatenate([w_flat, b.reshape(1, Cout)], axis=0)
    if Kp > K + 1:
        w_aug = jnp.pad(w_aug, ((0, Kp - K - 1), (0, 0)))

    TR = _choose_row_tile(R)          # pooled rows per grid step (16*TR lhs rows)
    grid = (N, R // TR)

    # Block shapes: last dim Kp/Cout is a multiple of 128 or equals the full dim;
    # second-to-last (16*TR / TR) is a multiple of 8 or equals the full dim.
    out = pl.pallas_call(
        conv_pool_relu_kernel,
        out_shape=jax.ShapeDtypeStruct((N, R, Cout), jnp.float32),
        grid=grid,
        in_specs=[
            pl.BlockSpec((1, POOL * POOL * TR, Kp), lambda n, r: (n, r, 0)),
            pl.BlockSpec((Kp, Cout), lambda n, r: (0, 0)),   # weight stays resident
        ],
        out_specs=pl.BlockSpec((1, TR, Cout), lambda n, r: (n, r, 0)),
        compiler_params=pltpu.CompilerParams(
            dimension_semantics=("parallel", "parallel")),
    )(lhs, w_aug)
    return out.reshape(N, HB, WB, Cout)


# --------------------------------------------------------------------------- #
# FC stack + fused mu/logvar head + reparameterization, single Pallas kernel
# --------------------------------------------------------------------------- #
def mlp_head_kernel(x_ref, w1_ref, b1_ref, w2_ref, b2_ref, w3_ref, b3_ref,
                    wh_ref, bh_ref, eps_ref, out_ref):
    h = jnp.dot(x_ref[...], w1_ref[...], preferred_element_type=jnp.float32) + b1_ref[...]
    h = jnp.maximum(h, 0.0)
    h = jnp.dot(h, w2_ref[...], preferred_element_type=jnp.float32) + b2_ref[...]
    h = jnp.maximum(h, 0.0)
    h = jnp.dot(h, w3_ref[...], preferred_element_type=jnp.float32) + b3_ref[...]
    # Fused mu/logvar head: one (F, 2L) matmul instead of two GEMVs.
    head = jnp.dot(h, wh_ref[...], preferred_element_type=jnp.float32) + bh_ref[...]
    L = eps_ref.shape[1]
    mu = head[:, :L]
    lv = head[:, L:]
    z = mu + jnp.exp(lv * 0.5) * eps_ref[...]          # reparameterize
    # Single lane-denser output: [mu | logvar | z]
    out_ref[...] = jnp.concatenate([head, z], axis=-1)


def mlp_head(x, fc_params, eps):
    N, _ = x.shape
    (w1, b1), (w2, b2), (w3, b3), (wmu, bmu), (wlv, blv) = fc_params
    L = wmu.shape[1]
    wh = jnp.concatenate([wmu, wlv], axis=1)                    # (4L, 2L)
    bh = jnp.concatenate([bmu, blv]).reshape(1, 2 * L)
    args = [x,
            w1, b1.reshape(1, -1),
            w2, b2.reshape(1, -1),
            w3, b3.reshape(1, -1),
            wh, bh,
            eps]
    # All blocks equal the full (small) arrays -> legal regardless of (8,128).
    in_specs = [pl.BlockSpec(a.shape, lambda i: (0, 0)) for a in args]
    out = pl.pallas_call(
        mlp_head_kernel,
        out_shape=jax.ShapeDtypeStruct((N, 3 * L), jnp.float32),
        grid=(1,),
        in_specs=in_specs,
        out_specs=pl.BlockSpec((N, 3 * L), lambda i: (0, 0)),
        compiler_params=pltpu.CompilerParams(dimension_semantics=("arbitrary",)),
    )(*args)
    return out[:, :L], out[:, L:2 * L], out[:, 2 * L:]


# --------------------------------------------------------------------------- #
# Parameter init (deterministic, PyTorch-default-like uniform fan-in init)
# --------------------------------------------------------------------------- #
def init_params(key, latent_dim, in_ch, spatial):
    ks = jax.random.split(key, 8)

    def conv_p(k, cin, cout):
        kw, kb = jax.random.split(k)
        lim = 1.0 / np.sqrt(cin * 9)
        w = jax.random.uniform(kw, (3, 3, cin, cout), jnp.float32, -lim, lim)
        b = jax.random.uniform(kb, (cout,), jnp.float32, -lim, lim)
        return w.reshape(9 * cin, cout), b     # (9*Cin, Cout), row order (ky, kx, ci)

    def lin_p(k, fin, fout):
        kw, kb = jax.random.split(k)
        lim = 1.0 / np.sqrt(fin)
        w = jax.random.uniform(kw, (fin, fout), jnp.float32, -lim, lim)
        b = jax.random.uniform(kb, (fout,), jnp.float32, -lim, lim)
        return w, b

    conv_params = [conv_p(ks[0], in_ch, 64),
                   conv_p(ks[1], 64, 128),
                   conv_p(ks[2], 128, 128)]
    hs, ws = spatial
    linear_size = 128 * (hs // 64) * (ws // 64)   # three MaxPool(4) stages
    fc_params = [lin_p(ks[3], linear_size, latent_dim * 16),
                 lin_p(ks[4], latent_dim * 16, latent_dim * 8),
                 lin_p(ks[5], latent_dim * 8, latent_dim * 4),
                 lin_p(ks[6], latent_dim * 4, latent_dim),
                 lin_p(ks[7], latent_dim * 4, latent_dim)]
    return conv_params, fc_params


# --------------------------------------------------------------------------- #
# Full forward (mirrors SpecEncoder.forward)
# --------------------------------------------------------------------------- #
def spec_encoder_forward(params, x_nchw, eps):
    conv_params, fc_params = params
    x = jnp.transpose(x_nchw, (0, 2, 3, 1))       # NCHW -> NHWC for the kernels
    for w_flat, b in conv_params:
        x = conv_pool_relu(x, w_flat, b)
    N = x.shape[0]
    # nn.Flatten on NCHW; transpose back so flatten order matches PyTorch.
    feat = jnp.transpose(x, (0, 3, 1, 2)).reshape(N, -1)
    mu, logvar, z = mlp_head(feat, fc_params, eps)
    return {'mu': mu, 'logvar': logvar, 'z': z}


# --------------------------------------------------------------------------- #
# Pure-JAX reference (for correctness check)
# --------------------------------------------------------------------------- #
def reference_forward(params, x_nchw, eps):
    conv_params, fc_params = params
    x = x_nchw
    for w_flat, b in conv_params:
        cout = w_flat.shape[1]
        cin = w_flat.shape[0] // 9
        w4 = w_flat.reshape(3, 3, cin, cout).transpose(3, 2, 0, 1)  # OIHW
        x = jax.lax.conv_general_dilated(
            x, w4, window_strides=(1, 1), padding='SAME',
            dimension_numbers=('NCHW', 'OIHW', 'NCHW'))
        x = x + b.reshape(1, cout, 1, 1)
        x = jax.lax.reduce_window(x, -jnp.inf, jax.lax.max,
                                  (1, 1, POOL, POOL), (1, 1, POOL, POOL), 'VALID')
        x = jnp.maximum(x, 0.0)
    h = x.reshape(x.shape[0], -1)
    (w1, b1), (w2, b2), (w3, b3), (wmu, bmu), (wlv, blv) = fc_params
    h = jnp.maximum(h @ w1 + b1, 0.0)
    h = jnp.maximum(h @ w2 + b2, 0.0)
    h = h @ w3 + b3
    mu = h @ wmu + bmu
    lv = h @ wlv + blv
    z = mu + jnp.exp(lv / 2.0) * eps
    return {'mu': mu, 'logvar': lv, 'z': z}


if __name__ == "__main__":
    # Small shapes consistent with the module: batch=2, 4 input channels,
    # 64x64 spectrogram (3 MaxPool(4) stages -> 1x1x128 features), latent_dim=32.
    N, C, H, W = 2, 4, 64, 64
    latent_dim = 32

    key = jax.random.PRNGKey(0)
    k_param, k_x, k_eps = jax.random.split(key, 3)
    params = init_params(k_param, latent_dim, C, (H, W))
    x = jax.random.normal(k_x, (N, C, H, W), jnp.float32)
    # TODO(synk): torch.randn inside reparameterize() is host-side RNG; it is
    # replaced by a deterministic epsilon drawn here and fed into the kernel.
    eps = jax.random.normal(k_eps, (N, latent_dim), jnp.float32)

    fwd = jax.jit(spec_encoder_forward)
    out = fwd(params, x, eps)
    jax.block_until_ready(out)

    ref = reference_forward(params, x, eps)
    for k in ('mu', 'logvar', 'z'):
        np.testing.assert_allclose(np.asarray(out[k]), np.asarray(ref[k]),
                                   rtol=1e-3, atol=1e-3)

    print("KERNEL_OK")
</pallas_src>

<mosaic_0001>
module attributes {stable_mosaic.version = 11 : i64} {
  func.func @conv_pool_relu_kernel(%arg0: i32, %arg1: i32, %arg2: memref<1x1024x128xf32, #tpu.memory_space<vmem>>, %arg3: memref<128x64xf32, #tpu.memory_space<vmem>>, %arg4: memref<1x64x64xf32, #tpu.memory_space<vmem>>) attributes {dimension_semantics = [#tpu.dimension_semantics<parallel>, #tpu.dimension_semantics<parallel>], iteration_bounds = array<i64: 2, 4>, scalar_prefetch = 0 : i64, scratch_operands = 0 : i64, tpu.core_type = #tpu.core_type<tc>, window_params = [{transform_indices = @transform_0, window_bounds = array<i64: 1, 1024, 128>}, {pipeline_mode = #tpu.pipeline_mode<synchronous>, transform_indices = @transform_1, window_bounds = array<i64: 128, 64>}, {transform_indices = @transform_2, window_bounds = array<i64: 1, 64, 64>}]} {
    %c0 = arith.constant 0 : index
    %c0_0 = arith.constant 0 : index
    %c0_1 = arith.constant 0 : index
    %0 = vector.load %arg2[%c0, %c0_0, %c0_1] : memref<1x1024x128xf32, #tpu.memory_space<vmem>>, vector<1x1024x128xf32>
    %1 = vector.shape_cast %0 : vector<1x1024x128xf32> to vector<1024x128xf32>
    %c0_2 = arith.constant 0 : index
    %c0_3 = arith.constant 0 : index
    %2 = vector.load %arg3[%c0_2, %c0_3] : memref<128x64xf32, #tpu.memory_space<vmem>>, vector<128x64xf32>
    %cst = arith.constant dense<0.000000e+00> : vector<1024x64xf32>
    %3 = tpu.matmul %1, %2, %cst {dimension_numbers = #tpu.dot_dimension_numbers<[1], [0], [0], [1], [0, 0, 1, 1], [], []>} : vector<1024x128xf32>, vector<128x64xf32>, vector<1024x64xf32> -> vector<1024x64xf32>
    %4 = vector.shape_cast %3 : vector<1024x64xf32> to vector<64x16x64xf32>
    %cst_4 = arith.constant dense<0xFF800000> : vector<64x64xf32>
    %5 = vector.multi_reduction <maximumf>, %4, %cst_4 [1] : vector<64x16x64xf32> to vector<64x64xf32>
    %cst_5 = arith.constant 0.000000e+00 : f32
    %6 = vector.broadcast %cst_5 : f32 to vector<64x64xf32>
    %7 = arith.maximumf %5, %6 : vector<64x64xf32>
    %c0_6 = arith.constant 0 : index
    %c0_7 = arith.constant 0 : index
    %c0_8 = arith.constant 0 : index
    %8 = vector.load %arg4[%c0_6, %c0_7, %c0_8] : memref<1x64x64xf32, #tpu.memory_space<vmem>>, vector<1x64x64xf32>
    %9 = vector.shape_cast %8 : vector<1x64x64xf32> to vector<64x64xf32>
    %10 = vector.shape_cast %7 : vector<64x64xf32> to vector<1x64x64xf32>
    tpu.vector_store %arg4[%c0_6, %c0_7, %c0_8], %10 {strides = array<i32>} : memref<1x64x64xf32, #tpu.memory_space<vmem>>, vector<1x64x64xf32>,
    return
  }
  func.func @transform_0(%arg0: i32, %arg1: i32) -> (i32, i32, i32) {
    %c0_i32 = arith.constant 0 : i32
    %c0_i32_0 = arith.constant 0 : i32
    return %arg0, %arg1, %c0_i32 : i32, i32, i32
  }
  func.func @transform_1(%arg0: i32, %arg1: i32) -> (i32, i32) {
    %c0_i32 = arith.constant 0 : i32
    %c0_i32_0 = arith.constant 0 : i32
    %c0_i32_1 = arith.constant 0 : i32
    return %c0_i32, %c0_i32_0 : i32, i32
  }
  func.func @transform_2(%arg0: i32, %arg1: i32) -> (i32, i32, i32) {
    %c0_i32 = arith.constant 0 : i32
    %c0_i32_0 = arith.constant 0 : i32
    return %arg0, %arg1, %c0_i32 : i32, i32, i32
  }
}

module attributes {stable_mosaic.version = 11 : i64} {
  func.func @conv_pool_relu_kernel(%arg0: i32, %arg1: i32, %arg2: memref<1x256x640xf32, #tpu.memory_space<vmem>>, %arg3: memref<640x128xf32, #tpu.memory_space<vmem>>, %arg4: memref<1x16x128xf32, #tpu.memory_space<vmem>>) attributes {dimension_semantics = [#tpu.dimension_semantics<parallel>, #tpu.dimension_semantics<parallel>], iteration_bounds = array<i64: 2, 1>, scalar_prefetch = 0 : i64, scratch_operands = 0 : i64, tpu.core_type = #tpu.core_type<tc>, window_params = [{transform_indices = @transform_0, window_bounds = array<i64: 1, 256, 640>}, {pipeline_mode = #tpu.pipeline_mode<synchronous>, transform_indices = @transform_1, window_bounds = array<i64: 640, 128>}, {transform_indices = @transform_2, window_bounds = array<i64: 1, 16, 128>}]} {
    %c0 = arith.constant 0 : index
    %c0_0 = arith.constant 0 : index
    %c0_1 = arith.constant 0 : index
    %0 = vector.load %arg2[%c0, %c0_0, %c0_1] : memref<1x256x640xf32, #tpu.memory_space<vmem>>, vector<1x256x640xf32>
    %1 = vector.shape_cast %0 : vector<1x256x640xf32> to vector<256x640xf32>
    %c0_2 = arith.constant 0 : index
    %c0_3 = arith.constant 0 : index
    %2 = vector.load %arg3[%c0_2, %c0_3] : memref<640x128xf32, #tpu.memory_space<vmem>>, vector<640x128xf32>
    %cst = arith.constant dense<0.000000e+00> : vector<256x128xf32>
    %3 = tpu.matmul %1, %2, %cst {dimension_numbers = #tpu.dot_dimension_numbers<[1], [0], [0], [1], [0, 0, 1, 1], [], []>} : vector<256x640xf32>, vector<640x128xf32>, vector<256x128xf32> -> vector<256x128xf32>
    %4 = vector.shape_cast %3 : vector<256x128xf32> to vector<16x16x128xf32>
    %cst_4 = arith.constant dense<0xFF800000> : vector<16x128xf32>
    %5 = vector.multi_reduction <maximumf>, %4, %cst_4 [1] : vector<16x16x128xf32> to vector<16x128xf32>
    %cst_5 = arith.constant 0.000000e+00 : f32
    %6 = vector.broadcast %cst_5 : f32 to vector<16x128xf32>
    %7 = arith.maximumf %5, %6 : vector<16x128xf32>
    %c0_6 = arith.constant 0 : index
    %c0_7 = arith.constant 0 : index
    %c0_8 = arith.constant 0 : index
    %8 = vector.load %arg4[%c0_6, %c0_7, %c0_8] : memref<1x16x128xf32, #tpu.memory_space<vmem>>, vector<1x16x128xf32>
    %9 = vector.shape_cast %8 : vector<1x16x128xf32> to vector<16x128xf32>
    %10 = vector.shape_cast %7 : vector<16x128xf32> to vector<1x16x128xf32>
    tpu.vector_store %arg4[%c0_6, %c0_7, %c0_8], %10 {strides = array<i32>} : memref<1x16x128xf32, #tpu.memory_space<vmem>>, vector<1x16x128xf32>,
    return
  }
  func.func @transform_0(%arg0: i32, %arg1: i32) -> (i32, i32, i32) {
    %c0_i32 = arith.constant 0 : i32
    %c0_i32_0 = arith.constant 0 : i32
    return %arg0, %arg1, %c0_i32 : i32, i32, i32
  }
  func.func @transform_1(%arg0: i32, %arg1: i32) -> (i32, i32) {
    %c0_i32 = arith.constant 0 : i32
    %c0_i32_0 = arith.constant 0 : i32
    %c0_i32_1 = arith.constant 0 : i32
    return %c0_i32, %c0_i32_0 : i32, i32
  }
  func.func @transform_2(%arg0: i32, %arg1: i32) -> (i32, i32, i32) {
    %c0_i32 = arith.constant 0 : i32
    %c0_i32_0 = arith.constant 0 : i32
    return %arg0, %arg1, %c0_i32 : i32, i32, i32
  }
}

module attributes {stable_mosaic.version = 11 : i64} {
  func.func @conv_pool_relu_kernel(%arg0: i32, %arg1: i32, %arg2: memref<1x16x1280xf32, #tpu.memory_space<vmem>>, %arg3: memref<1280x128xf32, #tpu.memory_space<vmem>>, %arg4: memref<1x1x128xf32, #tpu.memory_space<vmem>>) attributes {dimension_semantics = [#tpu.dimension_semantics<parallel>, #tpu.dimension_semantics<parallel>], iteration_bounds = array<i64: 2, 1>, scalar_prefetch = 0 : i64, scratch_operands = 0 : i64, tpu.core_type = #tpu.core_type<tc>, window_params = [{transform_indices = @transform_0, window_bounds = array<i64: 1, 16, 1280>}, {pipeline_mode = #tpu.pipeline_mode<synchronous>, transform_indices = @transform_1, window_bounds = array<i64: 1280, 128>}, {transform_indices = @transform_2, window_bounds = array<i64: 1, 1, 128>}]} {
    %c0 = arith.constant 0 : index
    %c0_0 = arith.constant 0 : index
    %c0_1 = arith.constant 0 : index
    %0 = vector.load %arg2[%c0, %c0_0, %c0_1] : memref<1x16x1280xf32, #tpu.memory_space<vmem>>, vector<1x16x1280xf32>
    %1 = vector.shape_cast %0 : vector<1x16x1280xf32> to vector<16x1280xf32>
    %c0_2 = arith.constant 0 : index
    %c0_3 = arith.constant 0 : index
    %2 = vector.load %arg3[%c0_2, %c0_3] : memref<1280x128xf32, #tpu.memory_space<vmem>>, vector<1280x128xf32>
    %cst = arith.constant dense<0.000000e+00> : vector<16x128xf32>
    %3 = tpu.matmul %1, %2, %cst {dimension_numbers = #tpu.dot_dimension_numbers<[1], [0], [0], [1], [0, 0, 1, 1], [], []>} : vector<16x1280xf32>, vector<1280x128xf32>, vector<16x128xf32> -> vector<16x128xf32>
    %4 = vector.shape_cast %3 : vector<16x128xf32> to vector<1x16x128xf32>
    %cst_4 = arith.constant dense<0xFF800000> : vector<1x128xf32>
    %5 = vector.multi_reduction <maximumf>, %4, %cst_4 [1] : vector<1x16x128xf32> to vector<1x128xf32>
    %cst_5 = arith.constant 0.000000e+00 : f32
    %6 = vector.broadcast %cst_5 : f32 to vector<1x128xf32>
    %7 = arith.maximumf %5, %6 : vector<1x128xf32>
    %c0_6 = arith.constant 0 : index
    %c0_7 = arith.constant 0 : index
    %c0_8 = arith.constant 0 : index
    %8 = vector.load %arg4[%c0_6, %c0_7, %c0_8] : memref<1x1x128xf32, #tpu.memory_space<vmem>>, vector<1x1x128xf32>
    %9 = vector.shape_cast %8 : vector<1x1x128xf32> to vector<1x128xf32>
    %10 = vector.shape_cast %7 : vector<1x128xf32> to vector<1x1x128xf32>
    tpu.vector_store %arg4[%c0_6, %c0_7, %c0_8], %10 {strides = array<i32>} : memref<1x1x128xf32, #tpu.memory_space<vmem>>, vector<1x1x128xf32>,
    return
  }
  func.func @transform_0(%arg0: i32, %arg1: i32) -> (i32, i32, i32) {
    %c0_i32 = arith.constant 0 : i32
    %c0_i32_0 = arith.constant 0 : i32
    return %arg0, %arg1, %c0_i32 : i32, i32, i32
  }
  func.func @transform_1(%arg0: i32, %arg1: i32) -> (i32, i32) {
    %c0_i32 = arith.constant 0 : i32
    %c0_i32_0 = arith.constant 0 : i32
    %c0_i32_1 = arith.constant 0 : i32
    return %c0_i32, %c0_i32_0 : i32, i32
  }
  func.func @transform_2(%arg0: i32, %arg1: i32) -> (i32, i32, i32) {
    %c0_i32 = arith.constant 0 : i32
    %c0_i32_0 = arith.constant 0 : i32
    return %arg0, %arg1, %c0_i32 : i32, i32, i32
  }
}

module attributes {stable_mosaic.version = 11 : i64} {
  func.func @mlp_head_kernel(%arg0: i32, %arg1: memref<2x128xf32, #tpu.memory_space<vmem>>, %arg2: memref<128x512xf32, #tpu.memory_space<vmem>>, %arg3: memref<1x512xf32, #tpu.memory_space<vmem>>, %arg4: memref<512x256xf32, #tpu.memory_space<vmem>>, %arg5: memref<1x256xf32, #tpu.memory_space<vmem>>, %arg6: memref<256x128xf32, #tpu.memory_space<vmem>>, %arg7: memref<1x128xf32, #tpu.memory_space<vmem>>, %arg8: memref<128x64xf32, #tpu.memory_space<vmem>>, %arg9: memref<1x64xf32, #tpu.memory_space<vmem>>, %arg10: memref<2x32xf32, #tpu.memory_space<vmem>>, %arg11: memref<2x96xf32, #tpu.memory_space<vmem>>) attributes {dimension_semantics = [#tpu.dimension_semantics<arbitrary>], iteration_bounds = array<i64: 1>, scalar_prefetch = 0 : i64, scratch_operands = 0 : i64, tpu.core_type = #tpu.core_type<tc>, window_params = [{pipeline_mode = #tpu.pipeline_mode<synchronous>, transform_indices = @transform_0, window_bounds = array<i64: 2, 128>}, {pipeline_mode = #tpu.pipeline_mode<synchronous>, transform_indices = @transform_1, window_bounds = array<i64: 128, 512>}, {pipeline_mode = #tpu.pipeline_mode<synchronous>, transform_indices = @transform_2, window_bounds = array<i64: 1, 512>}, {pipeline_mode = #tpu.pipeline_mode<synchronous>, transform_indices = @transform_3, window_bounds = array<i64: 512, 256>}, {pipeline_mode = #tpu.pipeline_mode<synchronous>, transform_indices = @transform_4, window_bounds = array<i64: 1, 256>}, {pipeline_mode = #tpu.pipeline_mode<synchronous>, transform_indices = @transform_5, window_bounds = array<i64: 256, 128>}, {pipeline_mode = #tpu.pipeline_mode<synchronous>, transform_indices = @transform_6, window_bounds = array<i64: 1, 128>}, {pipeline_mode = #tpu.pipeline_mode<synchronous>, transform_indices = @transform_7, window_bounds = array<i64: 128, 64>}, {pipeline_mode = #tpu.pipeline_mode<synchronous>, transform_indices = @transform_8, window_bounds = array<i64: 1, 64>}, {pipeline_mode = #tpu.pipeline_mode<synchronous>, transform_indices = @transform_9, window_bounds = array<i64: 2, 32>}, {pipeline_mode = #tpu.pipeline_mode<synchronous>, transform_indices = @transform_10, window_bounds = array<i64: 2, 96>}]} {
    %c0 = arith.constant 0 : index
    %c0_0 = arith.constant 0 : index
    %0 = vector.load %arg1[%c0, %c0_0] : memref<2x128xf32, #tpu.memory_space<vmem>>, vector<2x128xf32>
    %c0_1 = arith.constant 0 : index
    %c0_2 = arith.constant 0 : index
    %1 = vector.load %arg2[%c0_1, %c0_2] : memref<128x512xf32, #tpu.memory_space<vmem>>, vector<128x512xf32>
    %cst = arith.constant dense<0.000000e+00> : vector<2x512xf32>
    %2 = tpu.matmul %0, %1, %cst {dimension_numbers = #tpu.dot_dimension_numbers<[1], [0], [0], [1], [0, 0, 1, 1], [], []>} : vector<2x128xf32>, vector<128x512xf32>, vector<2x512xf32> -> vector<2x512xf32>
    %c0_3 = arith.constant 0 : index
    %c0_4 = arith.constant 0 : index
    %3 = vector.load %arg3[%c0_3, %c0_4] : memref<1x512xf32, #tpu.memory_space<vmem>>, vector<1x512xf32>
    %4 = vector.broadcast %3 : vector<1x512xf32> to vector<2x512xf32>
    %5 = arith.addf %2, %4 : vector<2x512xf32>
    %cst_5 = arith.constant 0.000000e+00 : f32
    %6 = vector.broadcast %cst_5 : f32 to vector<2x512xf32>
    %7 = arith.maximumf %5, %6 : vector<2x512xf32>
    %c0_6 = arith.constant 0 : index
    %c0_7 = arith.constant 0 : index
    %8 = vector.load %arg4[%c0_6, %c0_7] : memref<512x256xf32, #tpu.memory_space<vmem>>, vector<512x256xf32>
    %cst_8 = arith.constant dense<0.000000e+00> : vector<2x256xf32>
    %9 = tpu.matmul %7, %8, %cst_8 {dimension_numbers = #tpu.dot_dimension_numbers<[1], [0], [0], [1], [0, 0, 1, 1], [], []>} : vector<2x512xf32>, vector<512x256xf32>, vector<2x256xf32> -> vector<2x256xf32>
    %c0_9 = arith.constant 0 : index
    %c0_10 = arith.constant 0 : index
    %10 = vector.load %arg5[%c0_9, %c0_10] : memref<1x256xf32, #tpu.memory_space<vmem>>, vector<1x256xf32>
    %11 = vector.broadcast %10 : vector<1x256xf32> to vector<2x256xf32>
    %12 = arith.addf %9, %11 : vector<2x256xf32>
    %cst_11 = arith.constant 0.000000e+00 : f32
    %13 = vector.broadcast %cst_11 : f32 to vector<2x256xf32>
    %14 = arith.maximumf %12, %13 : vector<2x256xf32>
    %c0_12 = arith.constant 0 : index
    %c0_13 = arith.constant 0 : index
    %15 = vector.load %arg6[%c0_12, %c0_13] : memref<256x128xf32, #tpu.memory_space<vmem>>, vector<256x128xf32>
    %cst_14 = arith.constant dense<0.000000e+00> : vector<2x128xf32>
    %16 = tpu.matmul %14, %15, %cst_14 {dimension_numbers = #tpu.dot_dimension_numbers<[1], [0], [0], [1], [0, 0, 1, 1], [], []>} : vector<2x256xf32>, vector<256x128xf32>, vector<2x128xf32> -> vector<2x128xf32>
    %c0_15 = arith.constant 0 : index
    %c0_16 = arith.constant 0 : index
    %17 = vector.load %arg7[%c0_15, %c0_16] : memref<1x128xf32, #tpu.memory_space<vmem>>, vector<1x128xf32>
    %18 = vector.broadcast %17 : vector<1x128xf32> to vector<2x128xf32>
    %19 = arith.addf %16, %18 : vector<2x128xf32>
    %c0_17 = arith.constant 0 : index
    %c0_18 = arith.constant 0 : index
    %20 = vector.load %arg8[%c0_17, %c0_18] : memref<128x64xf32, #tpu.memory_space<vmem>>, vector<128x64xf32>
    %cst_19 = arith.constant dense<0.000000e+00> : vector<2x64xf32>
    %21 = tpu.matmul %19, %20, %cst_19 {dimension_numbers = #tpu.dot_dimension_numbers<[1], [0], [0], [1], [0, 0, 1, 1], [], []>} : vector<2x128xf32>, vector<128x64xf32>, vector<2x64xf32> -> vector<2x64xf32>
    %c0_20 = arith.constant 0 : index
    %c0_21 = arith.constant 0 : index
    %22 = vector.load %arg9[%c0_20, %c0_21] : memref<1x64xf32, #tpu.memory_space<vmem>>, vector<1x64xf32>
    %23 = vector.broadcast %22 : vector<1x64xf32> to vector<2x64xf32>
    %24 = arith.addf %21, %23 : vector<2x64xf32>
    %25 = vector.extract_strided_slice %24 {offsets = [0, 0], sizes = [2, 32], strides = [1, 1]} : vector<2x64xf32> to vector<2x32xf32>
    %26 = vector.extract_strided_slice %24 {offsets = [0, 32], sizes = [2, 32], strides = [1, 1]} : vector<2x64xf32> to vector<2x32xf32>
    %cst_22 = arith.constant 5.000000e-01 : f32
    %27 = vector.broadcast %cst_22 : f32 to vector<2x32xf32>
    %28 = arith.mulf %26, %27 : vector<2x32xf32>
    %29 = math.exp %28 : vector<2x32xf32>
    %c0_23 = arith.constant 0 : index
    %c0_24 = arith.constant 0 : index
    %30 = vector.load %arg10[%c0_23, %c0_24] : memref<2x32xf32, #tpu.memory_space<vmem>>, vector<2x32xf32>
    %31 = arith.mulf %29, %30 : vector<2x32xf32>
    %32 = arith.addf %25, %31 : vector<2x32xf32>
    %33 = tpu.concatenate %24, %32 in 1 : vector<2x64xf32>, vector<2x32xf32> -> vector<2x96xf32>
    %c0_25 = arith.constant 0 : index
    %c0_26 = arith.constant 0 : index
    %34 = vector.load %arg11[%c0_25, %c0_26] : memref<2x96xf32, #tpu.memory_space<vmem>>, vector<2x96xf32>
    tpu.vector_store %arg11[%c0_25, %c0_26], %33 {strides = array<i32>} : memref<2x96xf32, #tpu.memory_space<vmem>>, vector<2x96xf32>,
    return
  }
  func.func @transform_0(%arg0: i32) -> (i32, i32) {
    %c0_i32 = arith.constant 0 : i32
    %c0_i32_0 = arith.constant 0 : i32
    %c0_i32_1 = arith.constant 0 : i32
    return %c0_i32, %c0_i32_0 : i32, i32
  }
  func.func @transform_1(%arg0: i32) -> (i32, i32) {
    %c0_i32 = arith.constant 0 : i32
    %c0_i32_0 = arith.constant 0 : i32
    %c0_i32_1 = arith.constant 0 : i32
    return %c0_i32, %c0_i32_0 : i32, i32
  }
  func.func @transform_2(%arg0: i32) -> (i32, i32) {
    %c0_i32 = arith.constant 0 : i32
    %c0_i32_0 = arith.constant 0 : i32
    %c0_i32_1 = arith.constant 0 : i32
    return %c0_i32, %c0_i32_0 : i32, i32
  }
  func.func @transform_3(%arg0: i32) -> (i32, i32) {
    %c0_i32 = arith.constant 0 : i32
    %c0_i32_0 = arith.constant 0 : i32
    %c0_i32_1 = arith.constant 0 : i32
    return %c0_i32, %c0_i32_0 : i32, i32
  }
  func.func @transform_4(%arg0: i32) -> (i32, i32) {
    %c0_i32 = arith.constant 0 : i32
    %c0_i32_0 = arith.constant 0 : i32
    %c0_i32_1 = arith.constant 0 : i32
    return %c0_i32, %c0_i32_0 : i32, i32
  }
  func.func @transform_5(%arg0: i32) -> (i32, i32) {
    %c0_i32 = arith.constant 0 : i32
    %c0_i32_0 = arith.constant 0 : i32
    %c0_i32_1 = arith.constant 0 : i32
    return %c0_i32, %c0_i32_0 : i32, i32
  }
  func.func @transform_6(%arg0: i32) -> (i32, i32) {
    %c0_i32 = arith.constant 0 : i32
    %c0_i32_0 = arith.constant 0 : i32
    %c0_i32_1 = arith.constant 0 : i32
    return %c0_i32, %c0_i32_0 : i32, i32
  }
  func.func @transform_7(%arg0: i32) -> (i32, i32) {
    %c0_i32 = arith.constant 0 : i32
    %c0_i32_0 = arith.constant 0 : i32
    %c0_i32_1 = arith.constant 0 : i32
    return %c0_i32, %c0_i32_0 : i32, i32
  }
  func.func @transform_8(%arg0: i32) -> (i32, i32) {
    %c0_i32 = arith.constant 0 : i32
    %c0_i32_0 = arith.constant 0 : i32
    %c0_i32_1 = arith.constant 0 : i32
    return %c0_i32, %c0_i32_0 : i32, i32
  }
  func.func @transform_9(%arg0: i32) -> (i32, i32) {
    %c0_i32 = arith.constant 0 : i32
    %c0_i32_0 = arith.constant 0 : i32
    %c0_i32_1 = arith.constant 0 : i32
    return %c0_i32, %c0_i32_0 : i32, i32
  }
  func.func @transform_10(%arg0: i32) -> (i32, i32) {
    %c0_i32 = arith.constant 0 : i32
    %c0_i32_0 = arith.constant 0 : i32
    %c0_i32_1 = arith.constant 0 : i32
    return %c0_i32, %c0_i32_0 : i32, i32
  }
}

</mosaic_0001>

<llo_original>
// kernel: spec_encoder_forward.4
$region0: #{spec_encoder_forward.4}
  #allocation0 [shape = 'u32[]', space=smem, size = 0x4, offset = 0x4, fixed_abs, tag = 'smem constant byte address 0x4 - core index']
  #allocation1 [shape = 'u32[144,128]{1,0:T(1,128)}', space=vmem, size = 0x12000, scoped, tag = 'internal scratch']
  %s0 = inlined_call_operand.vmem [shape: f32[2,4096,128], index: 0, kind: input, shape index: {}]
  %s1 = inlined_call_operand.vmem [shape: f32[128,64], index: 1, kind: input, shape index: {}]
  %s2 = inlined_call_operand.vmem [shape: f32[2,256,64], index: 2, kind: output, shape index: {}]
  %s3 = sld [smem:[#allocation0]]
  $region41: #{spec_encoder_forward.4} parent=0
    _
  %s5 = ssub.s32 1, %s3
  %s6 = scalar_select 0, %s5, %s3
  loop: start=0, step=1, limit=10
  $region2: #{spec_encoder_forward.4} parent=0 // loop_pre_header
    _
  $region3: #{spec_encoder_forward.4} parent=0 // loop_header
    %s8 = sphi 0, %s12
    %p9 = scmp.ge.s32.totalorder %s8, 10
    %s15 = sphi 0, %s27
    %s16 = sphi 0, %s23
    %s17 = sphi 0, %s15
    %s18 = sphi 0, %s16
    %s19 = sphi 0, %s17
    %s20 = sphi 0, %s18
    %s32 = sphi 0, %s34
    %s35 = sphi 0, %s32
    %s36 = sphi 0, %s35
    %s52 = sphi 0, %s36
    %s56 = sphi 0, %s56
    %s58 = sphi 0, %s56
    %s59 = sphi 0, %s58
    %s73 = sphi 0, %s59
    %s81 = sphi 0, %s83
    %s84 = sphi 0, %s81
    %s85 = sphi 0, %s84
    %s101 = sphi 0, %s85
  $region4: #{spec_encoder_forward.4} parent=0 // loop_header_branch
    %11 = sbr.rel (%p9) target = $region8
  $region5: #{spec_encoder_forward.4} parent=0 // loop_body
    %s13 = ssub.s32 %s8, 1
    %s14 = ssub.s32 %s8, 2
    %s21 = sadd.s32 1, %s16
    %p22 = scmp.ge.s32.totalorder %s21, 4
    %s23 = scalar_select %p22, 0, %s21
    %s24 = sadd.s32 1, %s15
    %s25 = scalar_select %p22, %s24, %s15
    %p26 = scmp.ge.s32.totalorder %s25, 2
    %s27 = scalar_select %p26, 0, %s25
    %s28 = ssub.s32 %s15, %s27
    %s29 = ssub.s32 %s16, %s23
    %s30 = sor.u32 %s28, %s29
    %p31 = scmp.eq.s32.totalorder %s30, 0
    %s33 = sadd.s32 %s32, 1
    %s34 = scalar_select %p31, %s32, %s33
    %p37 = pneg %p31
    %p38 = scmp.eq.s32.totalorder %s8, 7
    %p39 = por %p37, %p38
    %p40 = scmp.ne.s32.totalorder %s32, %s35
    %p41 = scmp.eq.s32.totalorder %s8, 0
    %p42 = por %p40, %p41
    %p43 = scmp.ne.s32.totalorder %s32, %s35
    %p44 = scmp.eq.s32.totalorder %s13, 7
    %p45 = por %p43, %p44
    %p46 = scmp.ne.s32.totalorder %s35, %s36
    %p47 = scmp.eq.s32.totalorder %s13, 0
    %p48 = por %p46, %p47
    %p49 = scmp.ne.s32.totalorder %s35, %s36
    %p50 = scmp.eq.s32.totalorder %s14, 7
    %p51 = por %p49, %p50
    %p53 = scmp.ne.s32.totalorder %s36, %s52
    %p54 = scmp.eq.s32.totalorder %s14, 0
    %p55 = por %p53, %p54
    %s57 = sadd.s32 %s56, 1
    %p60 = scmp.eq.s32.totalorder %s8, 7
    %p61 = scmp.ne.s32.totalorder %s56, %s58
    %p62 = scmp.eq.s32.totalorder %s8, 0
    %p63 = por %p61, %p62
    %p64 = scmp.ne.s32.totalorder %s56, %s58
    %p65 = scmp.eq.s32.totalorder %s13, 7
    %p66 = por %p64, %p65
    %p67 = scmp.ne.s32.totalorder %s58, %s59
    %p68 = scmp.eq.s32.totalorder %s13, 0
    %p69 = por %p67, %p68
    %p70 = scmp.ne.s32.totalorder %s58, %s59
    %p71 = scmp.eq.s32.totalorder %s14, 7
    %p72 = por %p70, %p71
    %p74 = scmp.ne.s32.totalorder %s59, %s73
    %p75 = scmp.eq.s32.totalorder %s14, 0
    %p76 = por %p74, %p75
    %s77 = ssub.s32 %s15, %s27
    %s78 = ssub.s32 %s16, %s23
    %s79 = sor.u32 %s77, %s78
    %p80 = scmp.eq.s32.totalorder %s79, 0
    %s82 = sadd.s32 %s81, 1
    %s83 = scalar_select %p80, %s81, %s82
    %p86 = pneg %p80
    %p87 = scmp.eq.s32.totalorder %s8, 7
    %p88 = por %p86, %p87
    %p89 = scmp.ne.s32.totalorder %s81, %s84
    %p90 = scmp.eq.s32.totalorder %s8, 0
    %p91 = por %p89, %p90
    %p92 = scmp.ne.s32.totalorder %s81, %s84
    %p93 = scmp.eq.s32.totalorder %s13, 7
    %p94 = por %p92, %p93
    %p95 = scmp.ne.s32.totalorder %s84, %s85
    %p96 = scmp.eq.s32.totalorder %s13, 0
    %p97 = por %p95, %p96
    %p98 = scmp.ne.s32.totalorder %s84, %s85
    %p99 = scmp.eq.s32.totalorder %s14, 7
    %p100 = por %p98, %p99
    %p102 = scmp.ne.s32.totalorder %s85, %s101
    %p103 = scmp.eq.s32.totalorder %s14, 0
    %p104 = por %p102, %p103
    %p105 = scmp.le.s32.totalorder 1, %s8
    %p106 = scmp.lt.s32.totalorder %s8, 9
    %p107 = pnand %p105, %p106
    %p108 = pneg %p107
    // Predicated region
    $region9: #{spec_encoder_forward.4} parent=5 // pred_check
      _
    $region10: #{spec_encoder_forward.4} parent=5 // pred_check_branch
      %110 = sbr.rel (%p107) target = $region12
    $region11: #{spec_encoder_forward.4} parent=5 // pred_region
      %s111 = ssub.s32 %s8, 1
      // Predicated region
      $region13: #{spec_encoder_forward.4} parent=11 // pred_check
        %p112 = pneg %p69
      $region14: #{spec_encoder_forward.4} parent=11 // pred_check_branch
        %114 = sbr.rel (%p112) target = $region16
      $region15: #{spec_encoder_forward.4} parent=11 // pred_region
        _
      $region16: #{spec_encoder_forward.4} parent=11 // pred_fallthru
        _
    $region12: #{spec_encoder_forward.4} parent=5 // pred_fallthru
      _
    %p115 = scmp.lt.s32.totalorder %s8, 8
    // Predicated region
    $region17: #{spec_encoder_forward.4} parent=5 // pred_check
      %p116 = pneg %p115
    $region18: #{spec_encoder_forward.4} parent=5 // pred_check_branch
      %118 = sbr.rel (%p116) target = $region20
    $region19: #{spec_encoder_forward.4} parent=5 // pred_region
      // Predicated region
      $region21: #{spec_encoder_forward.4} parent=19 // pred_check
        %p119 = pneg %p42
      $region22: #{spec_encoder_forward.4} parent=19 // pred_check_branch
        %121 = sbr.rel (%p119) target = $region24
      $region23: #{spec_encoder_forward.4} parent=19 // pred_region
        %s122 = smul.u32 128, %s16
        %p123 = scmp.lt.s32.totalorder %s15, 1
        %s124 = scalar_select %p123, %s15, 1
        %p125 = scmp.lt.s32.totalorder %s122, 511
        %s126 = scalar_select %p125, %s122, 511
        %s127 = smul.addr %s124, 512
        %s128 = sadd.s32 %s126, %s127
        %s129 = smul.addr %s128, 8
        %s130 = scalar_lea.vmem %s0, %s129
        %s131 = smul.u32 128, %s16
      $region24: #{spec_encoder_forward.4} parent=19 // pred_fallthru
        _
    $region20: #{spec_encoder_forward.4} parent=5 // pred_fallthru
      _
    %p132 = scmp.le.s32.totalorder 1, %s8
    %p133 = scmp.lt.s32.totalorder %s8, 9
    %p134 = pnand %p132, %p133
    %p135 = pneg %p134
    // Predicated region
    $region25: #{spec_encoder_forward.4} parent=5 // pred_check
      _
    $region26: #{spec_encoder_forward.4} parent=5 // pred_check_branch
      %137 = sbr.rel (%p134) target = $region28
    $region27: #{spec_encoder_forward.4} parent=5 // pred_region
      %s138 = ssub.s32 %s8, 1
      %s139 = smul.u32 128, %s18
      %p140 = scmp.lt.s32.totalorder %s17, 1
      %s141 = scalar_select %p140, %s17, 1
      %p142 = scmp.lt.s32.totalorder %s139, 511
      %s143 = scalar_select %p142, %s139, 511
      %s144 = smul.addr %s141, 512
      %s145 = sadd.s32 %s143, %s144
      %s146 = smul.addr %s145, 8
      %s147 = scalar_lea.vmem %s0, %s146
      %p148 = pneg %p48
      %p149 = pneg %p45
      %p150 = pneg %p69
      %p151 = pneg %p66
      %p152 = pneg %p97
      %p153 = pneg %p94
      %s154 = smul.u32 8, %s18
      %p155 = scmp.lt.s32.totalorder %s17, 1
      %s156 = scalar_select %p155, %s17, 1
      %p157 = scmp.lt.s32.totalorder %s154, 31
      %s158 = scalar_select %p157, %s154, 31
      %s159 = smul.addr %s156, 32
      %s160 = sadd.s32 %s158, %s159
      %s161 = smul.addr %s160, 8
      %s162 = scalar_lea.vmem %s2, %s161
      %s163 = smul.u32 128, %s18
      %p164 = scmp.lt.s32.totalorder %s17, 1
      %s165 = scalar_select %p164, %s17, 1
      %p166 = scmp.lt.s32.totalorder %s163, 511
      %s167 = scalar_select %p166, %s163, 511
      %s168 = smul.addr %s165, 512
      %s169 = sadd.s32 %s167, %s168
      %s170 = smul.addr %s169, 8
      %s171 = scalar_lea.vmem %s0, %s170
      %s172 = smul.u32 128, %s18
      %s173 = smul.u32 8, %s18
      %p174 = scmp.lt.s32.totalorder %s17, 1
      %s175 = scalar_select %p174, %s17, 1
      %p176 = scmp.lt.s32.totalorder %s173, 31
      %s177 = scalar_select %p176, %s173, 31
      %s178 = smul.addr %s175, 32
      %s179 = sadd.s32 %s177, %s178
      %s180 = smul.addr %s179, 8
      %s181 = scalar_lea.vmem %s2, %s180
      %s182 = smul.u32 8, %s18
      %v183 = vld [vmem:[%s171] sm:$0xff]
      %v184 = vld [vmem:[%s171 + $0x8] sm:$0xff]
      %v185 = vld [vmem:[%s171 + $0x10] sm:$0xff]
      %v186 = vld [vmem:[%s171 + $0x18] sm:$0xff]
      %v187 = vld [vmem:[%s171 + $0x20] sm:$0xff]
      %v188 = vld [vmem:[%s171 + $0x28] sm:$0xff]
      %v189 = vld [vmem:[%s171 + $0x30] sm:$0xff]
      %v190 = vld [vmem:[%s171 + $0x38] sm:$0xff]
      %v191 = vld [vmem:[%s171 + $0x40] sm:$0xff]
      %v192 = vld [vmem:[%s171 + $0x48] sm:$0xff]
      %v193 = vld [vmem:[%s171 + $0x50] sm:$0xff]
      %v194 = vld [vmem:[%s171 + $0x58] sm:$0xff]
      %v195 = vld [vmem:[%s171 + $0x60] sm:$0xff]
      %v196 = vld [vmem:[%s171 + $0x68] sm:$0xff]
      %v197 = vld [vmem:[%s171 + $0x70] sm:$0xff]
      %v198 = vld [vmem:[%s171 + $0x78] sm:$0xff]
      %v199 = vld [vmem:[%s171 + $0x80] sm:$0xff]
      %v200 = vld [vmem:[%s171 + $0x88] sm:$0xff]
      %v201 = vld [vmem:[%s171 + $0x90] sm:$0xff]
      %v202 = vld [vmem:[%s171 + $0x98] sm:$0xff]
      %v203 = vld [vmem:[%s171 + $0xa0] sm:$0xff]
      %v204 = vld [vmem:[%s171 + $0xa8] sm:$0xff]
      %v205 = vld [vmem:[%s171 + $0xb0] sm:$0xff]
      %v206 = vld [vmem:[%s171 + $0xb8] sm:$0xff]
      %v207 = vld [vmem:[%s171 + $0xc0] sm:$0xff]
      %v208 = vld [vmem:[%s171 + $0xc8] sm:$0xff]
      %v209 = vld [vmem:[%s171 + $0xd0] sm:$0xff]
      %v210 = vld [vmem:[%s171 + $0xd8] sm:$0xff]
      %v211 = vld [vmem:[%s171 + $0xe0] sm:$0xff]
      %v212 = vld [vmem:[%s171 + $0xe8] sm:$0xff]
      %v213 = vld [vmem:[%s171 + $0xf0] sm:$0xff]
      %v214 = vld [vmem:[%s171 + $0xf8] sm:$0xff]
      %v215 = vld [vmem:[%s171 + $0x100] sm:$0xff]
      %v216 = vld [vmem:[%s171 + $0x108] sm:$0xff]
      %v217 = vld [vmem:[%s171 + $0x110] sm:$0xff]
      %v218 = vld [vmem:[%s171 + $0x118] sm:$0xff]
      %v219 = vld [vmem:[%s171 + $0x120] sm:$0xff]
      %v220 = vld [vmem:[%s171 + $0x128] sm:$0xff]
      %v221 = vld [vmem:[%s171 + $0x130] sm:$0xff]
      %v222 = vld [vmem:[%s171 + $0x138] sm:$0xff]
      %v223 = vld [vmem:[%s171 + $0x140] sm:$0xff]
      %v224 = vld [vmem:[%s171 + $0x148] sm:$0xff]
      %v225 = vld [vmem:[%s171 + $0x150] sm:$0xff]
      %v226 = vld [vmem:[%s171 + $0x158] sm:$0xff]
      %v227 = vld [vmem:[%s171 + $0x160] sm:$0xff]
      %v228 = vld [vmem:[%s171 + $0x168] sm:$0xff]
      %v229 = vld [vmem:[%s171 + $0x170] sm:$0xff]
      %v230 = vld [vmem:[%s171 + $0x178] sm:$0xff]
      %v231 = vld [vmem:[%s171 + $0x180] sm:$0xff]
      %v232 = vld [vmem:[%s171 + $0x188] sm:$0xff]
      %v233 = vld [vmem:[%s171 + $0x190] sm:$0xff]
      %v234 = vld [vmem:[%s171 + $0x198] sm:$0xff]
      %v235 = vld [vmem:[%s171 + $0x1a0] sm:$0xff]
      %v236 = vld [vmem:[%s171 + $0x1a8] sm:$0xff]
      %v237 = vld [vmem:[%s171 + $0x1b0] sm:$0xff]
      %v238 = vld [vmem:[%s171 + $0x1b8] sm:$0xff]
      %v239 = vld [vmem:[%s171 + $0x1c0] sm:$0xff]
      %v240 = vld [vmem:[%s171 + $0x1c8] sm:$0xff]
      %v241 = vld [vmem:[%s171 + $0x1d0] sm:$0xff]
      %v242 = vld [vmem:[%s171 + $0x1d8] sm:$0xff]
      %v243 = vld [vmem:[%s171 + $0x1e0] sm:$0xff]
      %v244 = vld [vmem:[%s171 + $0x1e8] sm:$0xff]
      %v245 = vld [vmem:[%s171 + $0x1f0] sm:$0xff]
      %v246 = vld [vmem:[%s171 + $0x1f8] sm:$0xff]
      %v247 = vld [vmem:[%s171 + $0x200] sm:$0xff]
      %v248 = vld [vmem:[%s171 + $0x208] sm:$0xff]
      %v249 = vld [vmem:[%s171 + $0x210] sm:$0xff]
      %v250 = vld [vmem:[%s171 + $0x218] sm:$0xff]
      %v251 = vld [vmem:[%s171 + $0x220] sm:$0xff]
      %v252 = vld [vmem:[%s171 + $0x228] sm:$0xff]
      %v253 = vld [vmem:[%s171 + $0x230] sm:$0xff]
      %v254 = vld [vmem:[%s171 + $0x238] sm:$0xff]
      %v255 = vld [vmem:[%s171 + $0x240] sm:$0xff]
      %v256 = vld [vmem:[%s171 + $0x248] sm:$0xff]
      %v257 = vld [vmem:[%s171 + $0x250] sm:$0xff]
      %v258 = vld [vmem:[%s171 + $0x258] sm:$0xff]
      %v259 = vld [vmem:[%s171 + $0x260] sm:$0xff]
      %v260 = vld [vmem:[%s171 + $0x268] sm:$0xff]
      %v261 = vld [vmem:[%s171 + $0x270] sm:$0xff]
      %v262 = vld [vmem:[%s171 + $0x278] sm:$0xff]
      %v263 = vld [vmem:[%s171 + $0x280] sm:$0xff]
      %v264 = vld [vmem:[%s171 + $0x288] sm:$0xff]
      %v265 = vld [vmem:[%s171 + $0x290] sm:$0xff]
      %v266 = vld [vmem:[%s171 + $0x298] sm:$0xff]
      %v267 = vld [vmem:[%s171 + $0x2a0] sm:$0xff]
      %v268 = vld [vmem:[%s171 + $0x2a8] sm:$0xff]
      %v269 = vld [vmem:[%s171 + $0x2b0] sm:$0xff]
      %v270 = vld [vmem:[%s171 + $0x2b8] sm:$0xff]
      %v271 = vld [vmem:[%s171 + $0x2c0] sm:$0xff]
      %v272 = vld [vmem:[%s171 + $0x2c8] sm:$0xff]
      %v273 = vld [vmem:[%s171 + $0x2d0] sm:$0xff]
      %v274 = vld [vmem:[%s171 + $0x2d8] sm:$0xff]
      %v275 = vld [vmem:[%s171 + $0x2e0] sm:$0xff]
      %v276 = vld [vmem:[%s171 + $0x2e8] sm:$0xff]
      %v277 = vld [vmem:[%s171 + $0x2f0] sm:$0xff]
      %v278 = vld [vmem:[%s171 + $0x2f8] sm:$0xff]
      %v279 = vld [vmem:[%s171 + $0x300] sm:$0xff]
      %v280 = vld [vmem:[%s171 + $0x308] sm:$0xff]
      %v281 = vld [vmem:[%s171 + $0x310] sm:$0xff]
      %v282 = vld [vmem:[%s171 + $0x318] sm:$0xff]
      %v283 = vld [vmem:[%s171 + $0x320] sm:$0xff]
      %v284 = vld [vmem:[%s171 + $0x328] sm:$0xff]
      %v285 = vld [vmem:[%s171 + $0x330] sm:$0xff]
      %v286 = vld [vmem:[%s171 + $0x338] sm:$0xff]
      %v287 = vld [vmem:[%s171 + $0x340] sm:$0xff]
      %v288 = vld [vmem:[%s171 + $0x348] sm:$0xff]
      %v289 = vld [vmem:[%s171 + $0x350] sm:$0xff]
      %v290 = vld [vmem:[%s171 + $0x358] sm:$0xff]
      %v291 = vld [vmem:[%s171 + $0x360] sm:$0xff]
      %v292 = vld [vmem:[%s171 + $0x368] sm:$0xff]
      %v293 = vld [vmem:[%s171 + $0x370] sm:$0xff]
      %v294 = vld [vmem:[%s171 + $0x378] sm:$0xff]
      %v295 = vld [vmem:[%s171 + $0x380] sm:$0xff]
      %v296 = vld [vmem:[%s171 + $0x388] sm:$0xff]
      %v297 = vld [vmem:[%s171 + $0x390] sm:$0xff]
      %v298 = vld [vmem:[%s171 + $0x398] sm:$0xff]
      %v299 = vld [vmem:[%s171 + $0x3a0] sm:$0xff]
      %v300 = vld [vmem:[%s171 + $0x3a8] sm:$0xff]
      %v301 = vld [vmem:[%s171 + $0x3b0] sm:$0xff]
      %v302 = vld [vmem:[%s171 + $0x3b8] sm:$0xff]
      %v303 = vld [vmem:[%s171 + $0x3c0] sm:$0xff]
      %v304 = vld [vmem:[%s171 + $0x3c8] sm:$0xff]
      %v305 = vld [vmem:[%s171 + $0x3d0] sm:$0xff]
      %v306 = vld [vmem:[%s171 + $0x3d8] sm:$0xff]
      %v307 = vld [vmem:[%s171 + $0x3e0] sm:$0xff]
      %v308 = vld [vmem:[%s171 + $0x3e8] sm:$0xff]
      %v309 = vld [vmem:[%s171 + $0x3f0] sm:$0xff]
      %v310 = vld [vmem:[%s171 + $0x3f8] sm:$0xff]
      %v311 = vld [vmem:[%s1] sm:$0xff]
      %v312 = vld [vmem:[%s1 + $0x8] sm:$0xff]
      %v313 = vld [vmem:[%s1 + $0x10] sm:$0xff]
      %v314 = vld [vmem:[%s1 + $0x18] sm:$0xff]
      %v315 = vld [vmem:[%s1 + $0x20] sm:$0xff]
      %v316 = vld [vmem:[%s1 + $0x28] sm:$0xff]
      %v317 = vld [vmem:[%s1 + $0x30] sm:$0xff]
      %v318 = vld [vmem:[%s1 + $0x38] sm:$0xff]
      %v319 = vld [vmem:[%s1 + $0x40] sm:$0xff]
      %v320 = vld [vmem:[%s1 + $0x48] sm:$0xff]
      %v321 = vld [vmem:[%s1 + $0x50] sm:$0xff]
      %v322 = vld [vmem:[%s1 + $0x58] sm:$0xff]
      %v323 = vld [vmem:[%s1 + $0x60] sm:$0xff]
      %v324 = vld [vmem:[%s1 + $0x68] sm:$0xff]
      %v325 = vld [vmem:[%s1 + $0x70] sm:$0xff]
      %v326 = vld [vmem:[%s1 + $0x78] sm:$0xff]
      %327 = vmatprep.subr.mxu0 0.0
      %328 = vmatpush1.msra.mxu0 %v311
      %329 = vmatprep.subr.mxu0 0.0
      %330 = vmatpush1.msra.mxu0 %v312
      %331 = vmatprep.subr.mxu0 0.0
      %332 = vmatpush1.msra.mxu0 %v313
      %333 = vmatprep.subr.mxu0 0.0
      %334 = vmatpush1.msra.mxu0 %v314
      %335 = vmatprep.subr.mxu0 0.0
      %336 = vmatpush1.msra.mxu0 %v315
      %337 = vmatprep.subr.mxu0 0.0
      %338 = vmatpush1.msra.mxu0 %v316
      %339 = vmatprep.subr.mxu0 0.0
      %340 = vmatpush1.msra.mxu0 %v317
      %341 = vmatprep.subr.mxu0 0.0
      %342 = vmatpush1.msra.mxu0 %v318
      %343 = vmatprep.subr.mxu0 0.0
      %344 = vmatpush1.msra.mxu0 %v319
      %345 = vmatprep.subr.mxu0 0.0
      %346 = vmatpush1.msra.mxu0 %v320
      %347 = vmatprep.subr.mxu0 0.0
      %348 = vmatpush1.msra.mxu0 %v321
      %349 = vmatprep.subr.mxu0 0.0
      %350 = vmatpush1.msra.mxu0 %v322
      %351 = vmatprep.subr.mxu0 0.0
      %352 = vmatpush1.msra.mxu0 %v323
      %353 = vmatprep.subr.mxu0 0.0
      %354 = vmatpush1.msra.mxu0 %v324
      %355 = vmatprep.subr.mxu0 0.0
      %356 = vmatpush1.msra.mxu0 %v325
      %357 = vmatprep.subr.mxu0 0.0
      %358 = vmatpush1.msra.mxu0 %v326
      %359 = vmatprep.subr.mxu0 0.0
      %360 = vmatpush1.msra.mxu0 0.0
      %361 = vmatprep.subr.mxu0 0.0
      %362 = vmatpush1.msra.mxu0 0.0
      %363 = vmatprep.subr.mxu0 0.0
      %364 = vmatpush1.msra.mxu0 0.0
      %365 = vmatprep.subr.mxu0 0.0
      %366 = vmatpush1.msra.mxu0 0.0
      %367 = vmatprep.subr.mxu0 0.0
      %368 = vmatpush1.msra.mxu0 0.0
      %369 = vmatprep.subr.mxu0 0.0
      %370 = vmatpush1.msra.mxu0 0.0
      %371 = vmatprep.subr.mxu0 0.0
      %372 = vmatpush1.msra.mxu0 0.0
      %373 = vmatprep.subr.mxu0 0.0
      %374 = vmatpush1.msra.mxu0 0.0
      %375 = vmatprep.subr.mxu0 0.0
      %376 = vmatpush1.msra.mxu0 0.0
      %377 = vmatprep.subr.mxu0 0.0
      %378 = vmatpush1.msra.mxu0 0.0
      %379 = vmatprep.subr.mxu0 0.0
      %380 = vmatpush1.msra.mxu0 0.0
      %381 = vmatprep.subr.mxu0 0.0
      %382 = vmatpush1.msra.mxu0 0.0
      %383 = vmatprep.subr.mxu0 0.0
      %384 = vmatpush1.msra.mxu0 0.0
      %385 = vmatprep.subr.mxu0 0.0
      %386 = vmatpush1.msra.mxu0 0.0
      %387 = vmatprep.subr.mxu0 0.0
      %388 = vmatpush1.msra.mxu0 0.0
      %389 = vmatprep.subr.mxu0 0.0
      %390 = vmatpush1.msra.mxu0 0.0
      %391 = vmatprep.mubr.f32.mxu0 0.0
      %392 = vmatmul.mubr.f32.gmra.mrb[0].mxu0 %v183
      %v393 = vpop.f32.mrb[0].mxu0
      %v394 = vadd.f32 0.0, %v393
      %v395 = vpop.f32.mrb[0].mxu0
      %396 = vmatprep.mubr.f32.mxu0 0.0
      %397 = vmatmul.mubr.f32.gmra.mrb[0].mxu0 %v184
      %v398 = vpop.f32.mrb[0].mxu0
      %v399 = vadd.f32 0.0, %v398
      %v400 = vpop.f32.mrb[0].mxu0
      %401 = vmatprep.mubr.f32.mxu0 0.0
      %402 = vmatmul.mubr.f32.gmra.mrb[0].mxu0 %v185
      %v403 = vpop.f32.mrb[0].mxu0
      %v404 = vadd.f32 0.0, %v403
      %v405 = vpop.f32.mrb[0].mxu0
      %406 = vmatprep.mubr.f32.mxu0 0.0
      %407 = vmatmul.mubr.f32.gmra.mrb[0].mxu0 %v186
      %v408 = vpop.f32.mrb[0].mxu0
      %v409 = vadd.f32 0.0, %v408
      %v410 = vpop.f32.mrb[0].mxu0
      %411 = vmatprep.mubr.f32.mxu0 0.0
      %412 = vmatmul.mubr.f32.gmra.mrb[0].mxu0 %v187
      %v413 = vpop.f32.mrb[0].mxu0
      %v414 = vadd.f32 0.0, %v413
      %v415 = vpop.f32.mrb[0].mxu0
      %416 = vmatprep.mubr.f32.mxu0 0.0
      %417 = vmatmul.mubr.f32.gmra.mrb[0].mxu0 %v188
      %v418 = vpop.f32.mrb[0].mxu0
      %v419 = vadd.f32 0.0, %v418
      %v420 = vpop.f32.mrb[0].mxu0
      %421 = vmatprep.mubr.f32.mxu0 0.0
      %422 = vmatmul.mubr.f32.gmra.mrb[0].mxu0 %v189
      %v423 = vpop.f32.mrb[0].mxu0
      %v424 = vadd.f32 0.0, %v423
      %v425 = vpop.f32.mrb[0].mxu0
      %426 = vmatprep.mubr.f32.mxu0 0.0
      %427 = vmatmul.mubr.f32.gmra.mrb[0].mxu0 %v190
      %v428 = vpop.f32.mrb[0].mxu0
      %v429 = vadd.f32 0.0, %v428
      %v430 = vpop.f32.mrb[0].mxu0
      %431 = vmatprep.mubr.f32.mxu0 0.0
      %432 = vmatmul.mubr.f32.gmra.mrb[0].mxu0 %v191
      %v433 = vpop.f32.mrb[0].mxu0
      %v434 = vadd.f32 0.0, %v433
      %v435 = vpop.f32.mrb[0].mxu0
      %436 = vmatprep.mubr.f32.mxu0 0.0
      %437 = vmatmul.mubr.f32.gmra.mrb[0].mxu0 %v192
      %v438 = vpop.f32.mrb[0].mxu0
      %v439 = vadd.f32 0.0, %v438
      %v440 = vpop.f32.mrb[0].mxu0
      %441 = vmatprep.mubr.f32.mxu0 0.0
      %442 = vmatmul.mubr.f32.gmra.mrb[0].mxu0 %v193
      %v443 = vpop.f32.mrb[0].mxu0
      %v444 = vadd.f32 0.0, %v443
      %v445 = vpop.f32.mrb[0].mxu0
      %446 = vmatprep.mubr.f32.mxu0 0.0
      %447 = vmatmul.mubr.f32.gmra.mrb[0].mxu0 %v194
      %v448 = vpop.f32.mrb[0].mxu0
      %v449 = vadd.f32 0.0, %v448
      %v450 = vpop.f32.mrb[0].mxu0
      %451 = vmatprep.mubr.f32.mxu0 0.0
      %452 = vmatmul.mubr.f32.gmra.mrb[0].mxu0 %v195
      %v453 = vpop.f32.mrb[0].mxu0
      %v454 = vadd.f32 0.0, %v453
      %v455 = vpop.f32.mrb[0].mxu0
      %456 = vmatprep.mubr.f32.mxu0 0.0
      %457 = vmatmul.mubr.f32.gmra.mrb[0].mxu0 %v196
      %v458 = vpop.f32.mrb[0].mxu0
      %v459 = vadd.f32 0.0, %v458
      %v460 = vpop.f32.mrb[0].mxu0
      %461 = vmatprep.mubr.f32.mxu0 0.0
      %462 = vmatmul.mubr.f32.gmra.mrb[0].mxu0 %v197
      %v463 = vpop.f32.mrb[0].mxu0
      %v464 = vadd.f32 0.0, %v463
      %v465 = vpop.f32.mrb[0].mxu0
      %466 = vmatprep.mubr.f32.mxu0 0.0
      %467 = vmatmul.mubr.f32.gmra.mrb[0].mxu0 %v198
      %v468 = vpop.f32.mrb[0].mxu0
      %v469 = vadd.f32 0.0, %v468
      %v470 = vpop.f32.mrb[0].mxu0
      %471 = vmatprep.mubr.f32.mxu0 0.0
      %472 = vmatmul.mubr.f32.gmra.mrb[0].mxu0 %v199
      %v473 = vpop.f32.mrb[0].mxu0
      %v474 = vadd.f32 0.0, %v473
      %v475 = vpop.f32.mrb[0].mxu0
      %476 = vmatprep.mubr.f32.mxu0 0.0
      %477 = vmatmul.mubr.f32.gmra.mrb[0].mxu0 %v200
      %v478 = vpop.f32.mrb[0].mxu0
      %v479 = vadd.f32 0.0, %v478
      %v480 = vpop.f32.mrb[0].mxu0
      %481 = vmatprep.mubr.f32.mxu0 0.0
      %482 = vmatmul.mubr.f32.gmra.mrb[0].mxu0 %v201
      %v483 = vpop.f32.mrb[0].mxu0
      %v484 = vadd.f32 0.0, %v483
      %v485 = vpop.f32.mrb[0].mxu0
      %486 = vmatprep.mubr.f32.mxu0 0.0
      %487 = vmatmul.mubr.f32.gmra.mrb[0].mxu0 %v202
      %v488 = vpop.f32.mrb[0].mxu0
      %v489 = vadd.f32 0.0, %v488
      %v490 = vpop.f32.mrb[0].mxu0
      %491 = vmatprep.mubr.f32.mxu0 0.0
      %492 = vmatmul.mubr.f32.gmra.mrb[0].mxu0 %v203
      %v493 = vpop.f32.mrb[0].mxu0
      %v494 = vadd.f32 0.0, %v493
      %v495 = vpop.f32.mrb[0].mxu0
      %496 = vmatprep.mubr.f32.mxu0 0.0
      %497 = vmatmul.mubr.f32.gmra.mrb[0].mxu0 %v204
      %v498 = vpop.f32.mrb[0].mxu0
      %v499 = vadd.f32 0.0, %v498
      %v500 = vpop.f32.mrb[0].mxu0
      %501 = vmatprep.mubr.f32.mxu0 0.0
      %502 = vmatmul.mubr.f32.gmra.mrb[0].mxu0 %v205
      %v503 = vpop.f32.mrb[0].mxu0
      %v504 = vadd.f32 0.0, %v503
      %v505 = vpop.f32.mrb[0].mxu0
      %506 = vmatprep.mubr.f32.mxu0 0.0
      %507 = vmatmul.mubr.f32.gmra.mrb[0].mxu0 %v206
      %v508 = vpop.f32.mrb[0].mxu0
      %v509 = vadd.f32 0.0, %v508
      %v510 = vpop.f32.mrb[0].mxu0
      %511 = vmatprep.mubr.f32.mxu0 0.0
      %512 = vmatmul.mubr.f32.gmra.mrb[0].mxu0 %v207
      %v513 = vpop.f32.mrb[0].mxu0
      %v514 = vadd.f32 0.0, %v513
      %v515 = vpop.f32.mrb[0].mxu0
      %516 = vmatprep.mubr.f32.mxu0 0.0
      %517 = vmatmul.mubr.f32.gmra.mrb[0].mxu0 %v208
      %v518 = vpop.f32.mrb[0].mxu0
      %v519 = vadd.f32 0.0, %v518
      %v520 = vpop.f32.mrb[0].mxu0
      %521 = vmatprep.mubr.f32.mxu0 0.0
      %522 = vmatmul.mubr.f32.gmra.mrb[0].mxu0 %v209
      %v523 = vpop.f32.mrb[0].mxu0
      %v524 = vadd.f32 0.0, %v523
      %v525 = vpop.f32.mrb[0].mxu0
      %526 = vmatprep.mubr.f32.mxu0 0.0
      %527 = vmatmul.mubr.f32.gmra.mrb[0].mxu0 %v210
      %v528 = vpop.f32.mrb[0].mxu0
      %v529 = vadd.f32 0.0, %v528
      %v530 = vpop.f32.mrb[0].mxu0
      %531 = vmatprep.mubr.f32.mxu0 0.0
      %532 = vmatmul.mubr.f32.gmra.mrb[0].mxu0 %v211
      %v533 = vpop.f32.mrb[0].mxu0
      %v534 = vadd.f32 0.0, %v533
      %v535 = vpop.f32.mrb[0].mxu0
      %536 = vmatprep.mubr.f32.mxu0 0.0
      %537 = vmatmul.mubr.f32.gmra.mrb[0].mxu0 %v212
      %v538 = vpop.f32.mrb[0].mxu0
      %v539 = vadd.f32 0.0, %v538
      %v540 = vpop.f32.mrb[0].mxu0
      %541 = vmatprep.mubr.f32.mxu0 0.0
      %542 = vmatmul.mubr.f32.gmra.mrb[0].mxu0 %v213
      %v543 = vpop.f32.mrb[0].mxu0
      %v544 = vadd.f32 0.0, %v543
      %v545 = vpop.f32.mrb[0].mxu0
      %546 = vmatprep.mubr.f32.mxu0 0.0
      %547 = vmatmul.mubr.f32.gmra.mrb[0].mxu0 %v214
      %v548 = vpop.f32.mrb[0].mxu0
      %v549 = vadd.f32 0.0, %v548
      %v550 = vpop.f32.mrb[0].mxu0
      %551 = vmatprep.mubr.f32.mxu0 0.0
      %552 = vmatmul.mubr.f32.gmra.mrb[0].mxu0 %v215
      %v553 = vpop.f32.mrb[0].mxu0
      %v554 = vadd.f32 0.0, %v553
      %v555 = vpop.f32.mrb[0].mxu0
      %556 = vmatprep.mubr.f32.mxu0 0.0
      %557 = vmatmul.mubr.f32.gmra.mrb[0].mxu0 %v216
      %v558 = vpop.f32.mrb[0].mxu0
      %v559 = vadd.f32 0.0, %v558
      %v560 = vpop.f32.mrb[0].mxu0
      %561 = vmatprep.mubr.f32.mxu0 0.0
      %562 = vmatmul.mubr.f32.gmra.mrb[0].mxu0 %v217
      %v563 = vpop.f32.mrb[0].mxu0
      %v564 = vadd.f32 0.0, %v563
      %v565 = vpop.f32.mrb[0].mxu0
      %566 = vmatprep.mubr.f32.mxu0 0.0
      %567 = vmatmul.mubr.f32.gmra.mrb[0].mxu0 %v218
      %v568 = vpop.f32.mrb[0].mxu0
      %v569 = vadd.f32 0.0, %v568
      %v570 = vpop.f32.mrb[0].mxu0
      %571 = vmatprep.mubr.f32.mxu0 0.0
      %572 = vmatmul.mubr.f32.gmra.mrb[0].mxu0 %v219
      %v573 = vpop.f32.mrb[0].mxu0
      %v574 = vadd.f32 0.0, %v573
      %v575 = vpop.f32.mrb[0].mxu0
      %576 = vmatprep.mubr.f32.mxu0 0.0
      %577 = vmatmul.mubr.f32.gmra.mrb[0].mxu0 %v220
      %v578 = vpop.f32.mrb[0].mxu0
      %v579 = vadd.f32 0.0, %v578
      %v580 = vpop.f32.mrb[0].mxu0
      %581 = vmatprep.mubr.f32.mxu0 0.0
      %582 = vmatmul.mubr.f32.gmra.mrb[0].mxu0 %v221
      %v583 = vpop.f32.mrb[0].mxu0
      %v584 = vadd.f32 0.0, %v583
      %v585 = vpop.f32.mrb[0].mxu0
      %586 = vmatprep.mubr.f32.mxu0 0.0
      %587 = vmatmul.mubr.f32.gmra.mrb[0].mxu0 %v222
      %v588 = vpop.f32.mrb[0].mxu0
      %v589 = vadd.f32 0.0, %v588
      %v590 = vpop.f32.mrb[0].mxu0
      %591 = vmatprep.mubr.f32.mxu0 0.0
      %592 = vmatmul.mubr.f32.gmra.mrb[0].mxu0 %v223
      %v593 = vpop.f32.mrb[0].mxu0
      %v594 = vadd.f32 0.0, %v593
      %v595 = vpop.f32.mrb[0].mxu0
      %596 = vmatprep.mubr.f32.mxu0 0.0
      %597 = vmatmul.mubr.f32.gmra.mrb[0].mxu0 %v224
      %v598 = vpop.f32.mrb[0].mxu0
      %v599 = vadd.f32 0.0, %v598
      %v600 = vpop.f32.mrb[0].mxu0
      %601 = vmatprep.mubr.f32.mxu0 0.0
      %602 = vmatmul.mubr.f32.gmra.mrb[0].mxu0 %v225
      %v603 = vpop.f32.mrb[0].mxu0
      %v604 = vadd.f32 0.0, %v603
      %v605 = vpop.f32.mrb[0].mxu0
      %606 = vmatprep.mubr.f32.mxu0 0.0
      %607 = vmatmul.mubr.f32.gmra.mrb[0].mxu0 %v226
      %v608 = vpop.f32.mrb[0].mxu0
      %v609 = vadd.f32 0.0, %v608
      %v610 = vpop.f32.mrb[0].mxu0
      %611 = vmatprep.mubr.f32.mxu0 0.0
      %612 = vmatmul.mubr.f32.gmra.mrb[0].mxu0 %v227
      %v613 = vpop.f32.mrb[0].mxu0
      %v614 = vadd.f32 0.0, %v613
      %v615 = vpop.f32.mrb[0].mxu0
      %616 = vmatprep.mubr.f32.mxu0 0.0
      %617 = vmatmul.mubr.f32.gmra.mrb[0].mxu0 %v228
      %v618 = vpop.f32.mrb[0].mxu0
      %v619 = vadd.f32 0.0, %v618
      %v620 = vpop.f32.mrb[0].mxu0
      %621 = vmatprep.mubr.f32.mxu0 0.0
      %622 = vmatmul.mubr.f32.gmra.mrb[0].mxu0 %v229
      %v623 = vpop.f32.mrb[0].mxu0
      %v624 = vadd.f32 0.0, %v623
      %v625 = vpop.f32.mrb[0].mxu0
      %626 = vmatprep.mubr.f32.mxu0 0.0
      %627 = vmatmul.mubr.f32.gmra.mrb[0].mxu0 %v230
      %v628 = vpop.f32.mrb[0].mxu0
      %v629 = vadd.f32 0.0, %v628
      %v630 = vpop.f32.mrb[0].mxu0
      %631 = vmatprep.mubr.f32.mxu0 0.0
      %632 = vmatmul.mubr.f32.gmra.mrb[0].mxu0 %v231
      %v633 = vpop.f32.mrb[0].mxu0
      %v634 = vadd.f32 0.0, %v633
      %v635 = vpop.f32.mrb[0].mxu0
      %636 = vmatprep.mubr.f32.mxu0 0.0
      %637 = vmatmul.mubr.f32.gmra.mrb[0].mxu0 %v232
      %v638 = vpop.f32.mrb[0].mxu0
      %v639 = vadd.f32 0.0, %v638
      %v640 = vpop.f32.mrb[0].mxu0
      %641 = vmatprep.mubr.f32.mxu0 0.0
      %642 = vmatmul.mubr.f32.gmra.mrb[0].mxu0 %v233
      %v643 = vpop.f32.mrb[0].mxu0
      %v644 = vadd.f32 0.0, %v643
      %v645 = vpop.f32.mrb[0].mxu0
      %646 = vmatprep.mubr.f32.mxu0 0.0
      %647 = vmatmul.mubr.f32.gmra.mrb[0].mxu0 %v234
      %v648 = vpop.f32.mrb[0].mxu0
      %v649 = vadd.f32 0.0, %v648
      %v650 = vpop.f32.mrb[0].mxu0
      %651 = vmatprep.mubr.f32.mxu0 0.0
      %652 = vmatmul.mubr.f32.gmra.mrb[0].mxu0 %v235
      %v653 = vpop.f32.mrb[0].mxu0
      %v654 = vadd.f32 0.0, %v653
      %v655 = vpop.f32.mrb[0].mxu0
      %656 = vmatprep.mubr.f32.mxu0 0.0
      %657 = vmatmul.mubr.f32.gmra.mrb[0].mxu0 %v236
      %v658 = vpop.f32.mrb[0].mxu0
      %v659 = vadd.f32 0.0, %v658
      %v660 = vpop.f32.mrb[0].mxu0
      %661 = vmatprep.mubr.f32.mxu0 0.0
      %662 = vmatmul.mubr.f32.gmra.mrb[0].mxu0 %v237
      %v663 = vpop.f32.mrb[0].mxu0
      %v664 = vadd.f32 0.0, %v663
      %v665 = vpop.f32.mrb[0].mxu0
      %666 = vmatprep.mubr.f32.mxu0 0.0
      %667 = vmatmul.mubr.f32.gmra.mrb[0].mxu0 %v238
      %v668 = vpop.f32.mrb[0].mxu0
      %v669 = vadd.f32 0.0, %v668
      %v670 = vpop.f32.mrb[0].mxu0
      %671 = vmatprep.mubr.f32.mxu0 0.0
      %672 = vmatmul.mubr.f32.gmra.mrb[0].mxu0 %v239
      %v673 = vpop.f32.mrb[0].mxu0
      %v674 = vadd.f32 0.0, %v673
      %v675 = vpop.f32.mrb[0].mxu0
      %676 = vmatprep.mubr.f32.mxu0 0.0
      %677 = vmatmul.mubr.f32.gmra.mrb[0].mxu0 %v240
      %v678 = vpop.f32.mrb[0].mxu0
      %v679 = vadd.f32 0.0, %v678
      %v680 = vpop.f32.mrb[0].mxu0
      %681 = vmatprep.mubr.f32.mxu0 0.0
      %682 = vmatmul.mubr.f32.gmra.mrb[0].mxu0 %v241
      %v683 = vpop.f32.mrb[0].mxu0
      %v684 = vadd.f32 0.0, %v683
      %v685 = vpop.f32.mrb[0].mxu0
      %686 = vmatprep.mubr.f32.mxu0 0.0
      %687 = vmatmul.mubr.f32.gmra.mrb[0].mxu0 %v242
      %v688 = vpop.f32.mrb[0].mxu0
      %v689 = vadd.f32 0.0, %v688
      %v690 = vpop.f32.mrb[0].mxu0
      %691 = vmatprep.mubr.f32.mxu0 0.0
      %692 = vmatmul.mubr.f32.gmra.mrb[0].mxu0 %v243
      %v693 = vpop.f32.mrb[0].mxu0
      %v694 = vadd.f32 0.0, %v693
      %v695 = vpop.f32.mrb[0].mxu0
      %696 = vmatprep.mubr.f32.mxu0 0.0
      %697 = vmatmul.mubr.f32.gmra.mrb[0].mxu0 %v244
      %v698 = vpop.f32.mrb[0].mxu0
      %v699 = vadd.f32 0.0, %v698
      %v700 = vpop.f32.mrb[0].mxu0
      %701 = vmatprep.mubr.f32.mxu0 0.0
      %702 = vmatmul.mubr.f32.gmra.mrb[0].mxu0 %v245
      %v703 = vpop.f32.mrb[0].mxu0
      %v704 = vadd.f32 0.0, %v703
      %v705 = vpop.f32.mrb[0].mxu0
      %706 = vmatprep.mubr.f32.mxu0 0.0
      %707 = vmatmul.mubr.f32.gmra.mrb[0].mxu0 %v246
      %v708 = vpop.f32.mrb[0].mxu0
      %v709 = vadd.f32 0.0, %v708
      %v710 = vpop.f32.mrb[0].mxu0
      %711 = vmatprep.mubr.f32.mxu0 0.0
      %712 = vmatmul.mubr.f32.gmra.mrb[0].mxu0 %v247
      %v713 = vpop.f32.mrb[0].mxu0
      %v714 = vadd.f32 0.0, %v713
      %v715 = vpop.f32.mrb[0].mxu0
      %716 = vmatprep.mubr.f32.mxu0 0.0
      %717 = vmatmul.mubr.f32.gmra.mrb[0].mxu0 %v248
      %v718 = vpop.f32.mrb[0].mxu0
      %v719 = vadd.f32 0.0, %v718
      %v720 = vpop.f32.mrb[0].mxu0
      %721 = vmatprep.mubr.f32.mxu0 0.0
      %722 = vmatmul.mubr.f32.gmra.mrb[0].mxu0 %v249
      %v723 = vpop.f32.mrb[0].mxu0
      %v724 = vadd.f32 0.0, %v723
      %v725 = vpop.f32.mrb[0].mxu0
      %726 = vmatprep.mubr.f32.mxu0 0.0
      %727 = vmatmul.mubr.f32.gmra.mrb[0].mxu0 %v250
      %v728 = vpop.f32.mrb[0].mxu0
      %v729 = vadd.f32 0.0, %v728
      %v730 = vpop.f32.mrb[0].mxu0
      %731 = vmatprep.mubr.f32.mxu0 0.0
      %732 = vmatmul.mubr.f32.gmra.mrb[0].mxu0 %v251
      %v733 = vpop.f32.mrb[0].mxu0
      %v734 = vadd.f32 0.0, %v733
      %v735 = vpop.f32.mrb[0].mxu0
      %736 = vmatprep.mubr.f32.mxu0 0.0
      %737 = vmatmul.mubr.f32.gmra.mrb[0].mxu0 %v252
      %v738 = vpop.f32.mrb[0].mxu0
      %v739 = vadd.f32 0.0, %v738
      %v740 = vpop.f32.mrb[0].mxu0
      %741 = vmatprep.mubr.f32.mxu0 0.0
      %742 = vmatmul.mubr.f32.gmra.mrb[0].mxu0 %v253
      %v743 = vpop.f32.mrb[0].mxu0
      %v744 = vadd.f32 0.0, %v743
      %v745 = vpop.f32.mrb[0].mxu0
      %746 = vmatprep.mubr.f32.mxu0 0.0
      %747 = vmatmul.mubr.f32.gmra.mrb[0].mxu0 %v254
      %v748 = vpop.f32.mrb[0].mxu0
      %v749 = vadd.f32 0.0, %v748
      %v750 = vpop.f32.mrb[0].mxu0
      %751 = vmatprep.mubr.f32.mxu0 0.0
      %752 = vmatmul.mubr.f32.gmra.mrb[0].mxu0 %v255
      %v753 = vpop.f32.mrb[0].mxu0
      %v754 = vadd.f32 0.0, %v753
      %v755 = vpop.f32.mrb[0].mxu0
      %756 = vmatprep.mubr.f32.mxu0 0.0
      %757 = vmatmul.mubr.f32.gmra.mrb[0].mxu0 %v256
      %v758 = vpop.f32.mrb[0].mxu0
      %v759 = vadd.f32 0.0, %v758
      %v760 = vpop.f32.mrb[0].mxu0
      %761 = vmatprep.mubr.f32.mxu0 0.0
      %762 = vmatmul.mubr.f32.gmra.mrb[0].mxu0 %v257
      %v763 = vpop.f32.mrb[0].mxu0
      %v764 = vadd.f32 0.0, %v763
      %v765 = vpop.f32.mrb[0].mxu0
      %766 = vmatprep.mubr.f32.mxu0 0.0
      %767 = vmatmul.mubr.f32.gmra.mrb[0].mxu0 %v258
      %v768 = vpop.f32.mrb[0].mxu0
      %v769 = vadd.f32 0.0, %v768
      %v770 = vpop.f32.mrb[0].mxu0
      %771 = vmatprep.mubr.f32.mxu0 0.0
      %772 = vmatmul.mubr.f32.gmra.mrb[0].mxu0 %v259
      %v773 = vpop.f32.mrb[0].mxu0
      %v774 = vadd.f32 0.0, %v773
      %v775 = vpop.f32.mrb[0].mxu0
      %776 = vmatprep.mubr.f32.mxu0 0.0
      %777 = vmatmul.mubr.f32.gmra.mrb[0].mxu0 %v260
      %v778 = vpop.f32.mrb[0].mxu0
      %v779 = vadd.f32 0.0, %v778
      %v780 = vpop.f32.mrb[0].mxu0
      %781 = vmatprep.mubr.f32.mxu0 0.0
      %782 = vmatmul.mubr.f32.gmra.mrb[0].mxu0 %v261
      %v783 = vpop.f32.mrb[0].mxu0
      %v784 = vadd.f32 0.0, %v783
      %v785 = vpop.f32.mrb[0].mxu0
      %786 = vmatprep.mubr.f32.mxu0 0.0
      %787 = vmatmul.mubr.f32.gmra.mrb[0].mxu0 %v262
      %v788 = vpop.f32.mrb[0].mxu0
      %v789 = vadd.f32 0.0, %v788
      %v790 = vpop.f32.mrb[0].mxu0
      %791 = vmatprep.mubr.f32.mxu0 0.0
      %792 = vmatmul.mubr.f32.gmra.mrb[0].mxu0 %v263
      %v793 = vpop.f32.mrb[0].mxu0
      %v794 = vadd.f32 0.0, %v793
      %v795 = vpop.f32.mrb[0].mxu0
      %796 = vmatprep.mubr.f32.mxu0 0.0
      %797 = vmatmul.mubr.f32.gmra.mrb[0].mxu0 %v264
      %v798 = vpop.f32.mrb[0].mxu0
      %v799 = vadd.f32 0.0, %v798
      %v800 = vpop.f32.mrb[0].mxu0
      %801 = vmatprep.mubr.f32.mxu0 0.0
      %802 = vmatmul.mubr.f32.gmra.mrb[0].mxu0 %v265
      %v803 = vpop.f32.mrb[0].mxu0
      %v804 = vadd.f32 0.0, %v803
      %v805 = vpop.f32.mrb[0].mxu0
      %806 = vmatprep.mubr.f32.mxu0 0.0
      %807 = vmatmul.mubr.f32.gmra.mrb[0].mxu0 %v266
      %v808 = vpop.f32.mrb[0].mxu0
      %v809 = vadd.f32 0.0, %v808
      %v810 = vpop.f32.mrb[0].mxu0
      %811 = vmatprep.mubr.f32.mxu0 0.0
      %812 = vmatmul.mubr.f32.gmra.mrb[0].mxu0 %v267
      %v813 = vpop.f32.mrb[0].mxu0
      %v814 = vadd.f32 0.0, %v813
      %v815 = vpop.f32.mrb[0].mxu0
      %816 = vmatprep.mubr.f32.mxu0 0.0
      %817 = vmatmul.mubr.f32.gmra.mrb[0].mxu0 %v268
      %v818 = vpop.f32.mrb[0].mxu0
      %v819 = vadd.f32 0.0, %v818
      %v820 = vpop.f32.mrb[0].mxu0
      %821 = vmatprep.mubr.f32.mxu0 0.0
      %822 = vmatmul.mubr.f32.gmra.mrb[0].mxu0 %v269
      %v823 = vpop.f32.mrb[0].mxu0
      %v824 = vadd.f32 0.0, %v823
      %v825 = vpop.f32.mrb[0].mxu0
      %826 = vmatprep.mubr.f32.mxu0 0.0
      %827 = vmatmul.mubr.f32.gmra.mrb[0].mxu0 %v270
      %v828 = vpop.f32.mrb[0].mxu0
      %v829 = vadd.f32 0.0, %v828
      %v830 = vpop.f32.mrb[0].mxu0
      %831 = vmatprep.mubr.f32.mxu0 0.0
      %832 = vmatmul.mubr.f32.gmra.mrb[0].mxu0 %v271
      %v833 = vpop.f32.mrb[0].mxu0
      %v834 = vadd.f32 0.0, %v833
      %v835 = vpop.f32.mrb[0].mxu0
      %836 = vmatprep.mubr.f32.mxu0 0.0
      %837 = vmatmul.mubr.f32.gmra.mrb[0].mxu0 %v272
      %v838 = vpop.f32.mrb[0].mxu0
      %v839 = vadd.f32 0.0, %v838
      %v840 = vpop.f32.mrb[0].mxu0
      %841 = vmatprep.mubr.f32.mxu0 0.0
      %842 = vmatmul.mubr.f32.gmra.mrb[0].mxu0 %v273
      %v843 = vpop.f32.mrb[0].mxu0
      %v844 = vadd.f32 0.0, %v843
      %v845 = vpop.f32.mrb[0].mxu0
      %846 = vmatprep.mubr.f32.mxu0 0.0
      %847 = vmatmul.mubr.f32.gmra.mrb[0].mxu0 %v274
      %v848 = vpop.f32.mrb[0].mxu0
      %v849 = vadd.f32 0.0, %v848
      %v850 = vpop.f32.mrb[0].mxu0
      %851 = vmatprep.mubr.f32.mxu0 0.0
      %852 = vmatmul.mubr.f32.gmra.mrb[0].mxu0 %v275
      %v853 = vpop.f32.mrb[0].mxu0
      %v854 = vadd.f32 0.0, %v853
      %v855 = vpop.f32.mrb[0].mxu0
      %856 = vmatprep.mubr.f32.mxu0 0.0
      %857 = vmatmul.mubr.f32.gmra.mrb[0].mxu0 %v276
      %v858 = vpop.f32.mrb[0].mxu0
      %v859 = vadd.f32 0.0, %v858
      %v860 = vpop.f32.mrb[0].mxu0
      %861 = vmatprep.mubr.f32.mxu0 0.0
      %862 = vmatmul.mubr.f32.gmra.mrb[0].mxu0 %v277
      %v863 = vpop.f32.mrb[0].mxu0
      %v864 = vadd.f32 0.0, %v863
      %v865 = vpop.f32.mrb[0].mxu0
      %866 = vmatprep.mubr.f32.mxu0 0.0
      %867 = vmatmul.mubr.f32.gmra.mrb[0].mxu0 %v278
      %v868 = vpop.f32.mrb[0].mxu0
      %v869 = vadd.f32 0.0, %v868
      %v870 = vpop.f32.mrb[0].mxu0
      %871 = vmatprep.mubr.f32.mxu0 0.0
      %872 = vmatmul.mubr.f32.gmra.mrb[0].mxu0 %v279
      %v873 = vpop.f32.mrb[0].mxu0
      %v874 = vadd.f32 0.0, %v873
      %v875 = vpop.f32.mrb[0].mxu0
      %876 = vmatprep.mubr.f32.mxu0 0.0
      %877 = vmatmul.mubr.f32.gmra.mrb[0].mxu0 %v280
      %v878 = vpop.f32.mrb[0].mxu0
      %v879 = vadd.f32 0.0, %v878
      %v880 = vpop.f32.mrb[0].mxu0
      %881 = vmatprep.mubr.f32.mxu0 0.0
      %882 = vmatmul.mubr.f32.gmra.mrb[0].mxu0 %v281
      %v883 = vpop.f32.mrb[0].mxu0
      %v884 = vadd.f32 0.0, %v883
      %v885 = vpop.f32.mrb[0].mxu0
      %886 = vmatprep.mubr.f32.mxu0 0.0
      %887 = vmatmul.mubr.f32.gmra.mrb[0].mxu0 %v282
      %v888 = vpop.f32.mrb[0].mxu0
      %v889 = vadd.f32 0.0, %v888
      %v890 = vpop.f32.mrb[0].mxu0
      %891 = vmatprep.mubr.f32.mxu0 0.0
      %892 = vmatmul.mubr.f32.gmra.mrb[0].mxu0 %v283
      %v893 = vpop.f32.mrb[0].mxu0
      %v894 = vadd.f32 0.0, %v893
      %v895 = vpop.f32.mrb[0].mxu0
      %896 = vmatprep.mubr.f32.mxu0 0.0
      %897 = vmatmul.mubr.f32.gmra.mrb[0].mxu0 %v284
      %v898 = vpop.f32.mrb[0].mxu0
      %v899 = vadd.f32 0.0, %v898
      %v900 = vpop.f32.mrb[0].mxu0
      %901 = vmatprep.mubr.f32.mxu0 0.0
      %902 = vmatmul.mubr.f32.gmra.mrb[0].mxu0 %v285
      %v903 = vpop.f32.mrb[0].mxu0
      %v904 = vadd.f32 0.0, %v903
      %v905 = vpop.f32.mrb[0].mxu0
      %906 = vmatprep.mubr.f32.mxu0 0.0
      %907 = vmatmul.mubr.f32.gmra.mrb[0].mxu0 %v286
      %v908 = vpop.f32.mrb[0].mxu0
      %v909 = vadd.f32 0.0, %v908
      %v910 = vpop.f32.mrb[0].mxu0
      %911 = vmatprep.mubr.f32.mxu0 0.0
      %912 = vmatmul.mubr.f32.gmra.mrb[0].mxu0 %v287
      %v913 = vpop.f32.mrb[0].mxu0
      %v914 = vadd.f32 0.0, %v913
      %v915 = vpop.f32.mrb[0].mxu0
      %916 = vmatprep.mubr.f32.mxu0 0.0
      %917 = vmatmul.mubr.f32.gmra.mrb[0].mxu0 %v288
      %v918 = vpop.f32.mrb[0].mxu0
      %v919 = vadd.f32 0.0, %v918
      %v920 = vpop.f32.mrb[0].mxu0
      %921 = vmatprep.mubr.f32.mxu0 0.0
      %922 = vmatmul.mubr.f32.gmra.mrb[0].mxu0 %v289
      %v923 = vpop.f32.mrb[0].mxu0
      %v924 = vadd.f32 0.0, %v923
      %v925 = vpop.f32.mrb[0].mxu0
      %926 = vmatprep.mubr.f32.mxu0 0.0
      %927 = vmatmul.mubr.f32.gmra.mrb[0].mxu0 %v290
      %v928 = vpop.f32.mrb[0].mxu0
      %v929 = vadd.f32 0.0, %v928
      %v930 = vpop.f32.mrb[0].mxu0
      %931 = vmatprep.mubr.f32.mxu0 0.0
      %932 = vmatmul.mubr.f32.gmra.mrb[0].mxu0 %v291
      %v933 = vpop.f32.mrb[0].mxu0
      %v934 = vadd.f32 0.0, %v933
      %v935 = vpop.f32.mrb[0].mxu0
      %936 = vmatprep.mubr.f32.mxu0 0.0
      %937 = vmatmul.mubr.f32.gmra.mrb[0].mxu0 %v292
      %v938 = vpop.f32.mrb[0].mxu0
      %v939 = vadd.f32 0.0, %v938
      %v940 = vpop.f32.mrb[0].mxu0
      %941 = vmatprep.mubr.f32.mxu0 0.0
      %942 = vmatmul.mubr.f32.gmra.mrb[0].mxu0 %v293
      %v943 = vpop.f32.mrb[0].mxu0
      %v944 = vadd.f32 0.0, %v943
      %v945 = vpop.f32.mrb[0].mxu0
      %946 = vmatprep.mubr.f32.mxu0 0.0
      %947 = vmatmul.mubr.f32.gmra.mrb[0].mxu0 %v294
      %v948 = vpop.f32.mrb[0].mxu0
      %v949 = vadd.f32 0.0, %v948
      %v950 = vpop.f32.mrb[0].mxu0
      %951 = vmatprep.mubr.f32.mxu0 0.0
      %952 = vmatmul.mubr.f32.gmra.mrb[0].mxu0 %v295
      %v953 = vpop.f32.mrb[0].mxu0
      %v954 = vadd.f32 0.0, %v953
      %v955 = vpop.f32.mrb[0].mxu0
      %956 = vmatprep.mubr.f32.mxu0 0.0
      %957 = vmatmul.mubr.f32.gmra.mrb[0].mxu0 %v296
      %v958 = vpop.f32.mrb[0].mxu0
      %v959 = vadd.f32 0.0, %v958
      %v960 = vpop.f32.mrb[0].mxu0
      %961 = vmatprep.mubr.f32.mxu0 0.0
      %962 = vmatmul.mubr.f32.gmra.mrb[0].mxu0 %v297
      %v963 = vpop.f32.mrb[0].mxu0
      %v964 = vadd.f32 0.0, %v963
      %v965 = vpop.f32.mrb[0].mxu0
      %966 = vmatprep.mubr.f32.mxu0 0.0
      %967 = vmatmul.mubr.f32.gmra.mrb[0].mxu0 %v298
      %v968 = vpop.f32.mrb[0].mxu0
      %v969 = vadd.f32 0.0, %v968
      %v970 = vpop.f32.mrb[0].mxu0
      %971 = vmatprep.mubr.f32.mxu0 0.0
      %972 = vmatmul.mubr.f32.gmra.mrb[0].mxu0 %v299
      %v973 = vpop.f32.mrb[0].mxu0
      %v974 = vadd.f32 0.0, %v973
      %v975 = vpop.f32.mrb[0].mxu0
      %976 = vmatprep.mubr.f32.mxu0 0.0
      %977 = vmatmul.mubr.f32.gmra.mrb[0].mxu0 %v300
      %v978 = vpop.f32.mrb[0].mxu0
      %v979 = vadd.f32 0.0, %v978
      %v980 = vpop.f32.mrb[0].mxu0
      %981 = vmatprep.mubr.f32.mxu0 0.0
      %982 = vmatmul.mubr.f32.gmra.mrb[0].mxu0 %v301
      %v983 = vpop.f32.mrb[0].mxu0
      %v984 = vadd.f32 0.0, %v983
      %v985 = vpop.f32.mrb[0].mxu0
      %986 = vmatprep.mubr.f32.mxu0 0.0
      %987 = vmatmul.mubr.f32.gmra.mrb[0].mxu0 %v302
      %v988 = vpop.f32.mrb[0].mxu0
      %v989 = vadd.f32 0.0, %v988
      %v990 = vpop.f32.mrb[0].mxu0
      %991 = vmatprep.mubr.f32.mxu0 0.0
      %992 = vmatmul.mubr.f32.gmra.mrb[0].mxu0 %v303
      %v993 = vpop.f32.mrb[0].mxu0
      %v994 = vadd.f32 0.0, %v993
      %v995 = vpop.f32.mrb[0].mxu0
      %996 = vmatprep.mubr.f32.mxu0 0.0
      %997 = vmatmul.mubr.f32.gmra.mrb[0].mxu0 %v304
      %v998 = vpop.f32.mrb[0].mxu0
      %v999 = vadd.f32 0.0, %v998
      %v1000 = vpop.f32.mrb[0].mxu0
      %1001 = vmatprep.mubr.f32.mxu0 0.0
      %1002 = vmatmul.mubr.f32.gmra.mrb[0].mxu0 %v305
      %v1003 = vpop.f32.mrb[0].mxu0
      %v1004 = vadd.f32 0.0, %v1003
      %v1005 = vpop.f32.mrb[0].mxu0
      %1006 = vmatprep.mubr.f32.mxu0 0.0
      %1007 = vmatmul.mubr.f32.gmra.mrb[0].mxu0 %v306
      %v1008 = vpop.f32.mrb[0].mxu0
      %v1009 = vadd.f32 0.0, %v1008
      %v1010 = vpop.f32.mrb[0].mxu0
      %1011 = vmatprep.mubr.f32.mxu0 0.0
      %1012 = vmatmul.mubr.f32.gmra.mrb[0].mxu0 %v307
      %v1013 = vpop.f32.mrb[0].mxu0
      %v1014 = vadd.f32 0.0, %v1013
      %v1015 = vpop.f32.mrb[0].mxu0
      %1016 = vmatprep.mubr.f32.mxu0 0.0
      %1017 = vmatmul.mubr.f32.gmra.mrb[0].mxu0 %v308
      %v1018 = vpop.f32.mrb[0].mxu0
      %v1019 = vadd.f32 0.0, %v1018
      %v1020 = vpop.f32.mrb[0].mxu0
      %1021 = vmatprep.mubr.f32.mxu0 0.0
      %1022 = vmatmul.mubr.f32.gmra.mrb[0].mxu0 %v309
      %v1023 = vpop.f32.mrb[0].mxu0
      %v1024 = vadd.f32 0.0, %v1023
      %v1025 = vpop.f32.mrb[0].mxu0
      %1026 = vmatprep.mubr.f32.mxu0 0.0
      %1027 = vmatmul.mubr.f32.gmra.mrb[0].mxu0 %v310
      %v1028 = vpop.f32.mrb[0].mxu0
      %v1029 = vadd.f32 0.0, %v1028
      %v1030 = vpop.f32.mrb[0].mxu0
      %1031 = vdwg.mxu0
      %vm1032 = vcmask 523264
      %v1033 = vsel %vm1032, %v394, -inf
      %v1034 = vsel %vm1032, %v399, -inf
      %v1035 = vmax.f32 %v1033, %v1034
      %v1036 = vrot.slane %v1035, 4
      %v1037 = vmax.f32 %v1035, %v1036
      %v1038 = vrot.slane %v1037, 2
      %v1039 = vmax.f32 %v1037, %v1038
      %v1040 = vrot.slane %v1039, 1
      %v1041 = vmax.f32 %v1039, %v1040
      %v1042 = vsel %vm1032, %v404, -inf
      %v1043 = vsel %vm1032, %v409, -inf
      %v1044 = vmax.f32 %v1042, %v1043
      %v1045 = vrot.slane %v1044, 4
      %v1046 = vmax.f32 %v1044, %v1045
      %v1047 = vrot.slane %v1046, 2
      %v1048 = vmax.f32 %v1046, %v1047
      %v1049 = vrot.slane %v1048, 1
      %v1050 = vmax.f32 %v1048, %v1049
      %v1051 = vsel %vm1032, %v414, -inf
      %v1052 = vsel %vm1032, %v419, -inf
      %v1053 = vmax.f32 %v1051, %v1052
      %v1054 = vrot.slane %v1053, 4
      %v1055 = vmax.f32 %v1053, %v1054
      %v1056 = vrot.slane %v1055, 2
      %v1057 = vmax.f32 %v1055, %v1056
      %v1058 = vrot.slane %v1057, 1
      %v1059 = vmax.f32 %v1057, %v1058
      %v1060 = vsel %vm1032, %v424, -inf
      %v1061 = vsel %vm1032, %v429, -inf
      %v1062 = vmax.f32 %v1060, %v1061
      %v1063 = vrot.slane %v1062, 4
      %v1064 = vmax.f32 %v1062, %v1063
      %v1065 = vrot.slane %v1064, 2
      %v1066 = vmax.f32 %v1064, %v1065
      %v1067 = vrot.slane %v1066, 1
      %v1068 = vmax.f32 %v1066, %v1067
      %v1069 = vsel %vm1032, %v434, -inf
      %v1070 = vsel %vm1032, %v439, -inf
      %v1071 = vmax.f32 %v1069, %v1070
      %v1072 = vrot.slane %v1071, 4
      %v1073 = vmax.f32 %v1071, %v1072
      %v1074 = vrot.slane %v1073, 2
      %v1075 = vmax.f32 %v1073, %v1074
      %v1076 = vrot.slane %v1075, 1
      %v1077 = vmax.f32 %v1075, %v1076
      %v1078 = vsel %vm1032, %v444, -inf
      %v1079 = vsel %vm1032, %v449, -inf
      %v1080 = vmax.f32 %v1078, %v1079
      %v1081 = vrot.slane %v1080, 4
      %v1082 = vmax.f32 %v1080, %v1081
      %v1083 = vrot.slane %v1082, 2
      %v1084 = vmax.f32 %v1082, %v1083
      %v1085 = vrot.slane %v1084, 1
      %v1086 = vmax.f32 %v1084, %v1085
      %v1087 = vsel %vm1032, %v454, -inf
      %v1088 = vsel %vm1032, %v459, -inf
      %v1089 = vmax.f32 %v1087, %v1088
      %v1090 = vrot.slane %v1089, 4
      %v1091 = vmax.f32 %v1089, %v1090
      %v1092 = vrot.slane %v1091, 2
      %v1093 = vmax.f32 %v1091, %v1092
      %v1094 = vrot.slane %v1093, 1
      %v1095 = vmax.f32 %v1093, %v1094
      %v1096 = vsel %vm1032, %v464, -inf
      %v1097 = vsel %vm1032, %v469, -inf
      %v1098 = vmax.f32 %v1096, %v1097
      %v1099 = vrot.slane %v1098, 4
      %v1100 = vmax.f32 %v1098, %v1099
      %v1101 = vrot.slane %v1100, 2
      %v1102 = vmax.f32 %v1100, %v1101
      %v1103 = vrot.slane %v1102, 1
      %v1104 = vmax.f32 %v1102, %v1103
      %v1105 = vsel %vm1032, %v474, -inf
      %v1106 = vsel %vm1032, %v479, -inf
      %v1107 = vmax.f32 %v1105, %v1106
      %v1108 = vrot.slane %v1107, 4
      %v1109 = vmax.f32 %v1107, %v1108
      %v1110 = vrot.slane %v1109, 2
      %v1111 = vmax.f32 %v1109, %v1110
      %v1112 = vrot.slane %v1111, 1
      %v1113 = vmax.f32 %v1111, %v1112
      %v1114 = vsel %vm1032, %v484, -inf
      %v1115 = vsel %vm1032, %v489, -inf
      %v1116 = vmax.f32 %v1114, %v1115
      %v1117 = vrot.slane %v1116, 4
      %v1118 = vmax.f32 %v1116, %v1117
      %v1119 = vrot.slane %v1118, 2
      %v1120 = vmax.f32 %v1118, %v1119
      %v1121 = vrot.slane %v1120, 1
      %v1122 = vmax.f32 %v1120, %v1121
      %v1123 = vsel %vm1032, %v494, -inf
      %v1124 = vsel %vm1032, %v499, -inf
      %v1125 = vmax.f32 %v1123, %v1124
      %v1126 = vrot.slane %v1125, 4
      %v1127 = vmax.f32 %v1125, %v1126
      %v1128 = vrot.slane %v1127, 2
      %v1129 = vmax.f32 %v1127, %v1128
      %v1130 = vrot.slane %v1129, 1
      %v1131 = vmax.f32 %v1129, %v1130
      %v1132 = vsel %vm1032, %v504, -inf
      %v1133 = vsel %vm1032, %v509, -inf
      %v1134 = vmax.f32 %v1132, %v1133
      %v1135 = vrot.slane %v1134, 4
      %v1136 = vmax.f32 %v1134, %v1135
      %v1137 = vrot.slane %v1136, 2
      %v1138 = vmax.f32 %v1136, %v1137
      %v1139 = vrot.slane %v1138, 1
      %v1140 = vmax.f32 %v1138, %v1139
      %v1141 = vsel %vm1032, %v514, -inf
      %v1142 = vsel %vm1032, %v519, -inf
      %v1143 = vmax.f32 %v1141, %v1142
      %v1144 = vrot.slane %v1143, 4
      %v1145 = vmax.f32 %v1143, %v1144
      %v1146 = vrot.slane %v1145, 2
      %v1147 = vmax.f32 %v1145, %v1146
      %v1148 = vrot.slane %v1147, 1
      %v1149 = vmax.f32 %v1147, %v1148
      %v1150 = vsel %vm1032, %v524, -inf
      %v1151 = vsel %vm1032, %v529, -inf
      %v1152 = vmax.f32 %v1150, %v1151
      %v1153 = vrot.slane %v1152, 4
      %v1154 = vmax.f32 %v1152, %v1153
      %v1155 = vrot.slane %v1154, 2
      %v1156 = vmax.f32 %v1154, %v1155
      %v1157 = vrot.slane %v1156, 1
      %v1158 = vmax.f32 %v1156, %v1157
      %v1159 = vsel %vm1032, %v534, -inf
      %v1160 = vsel %vm1032, %v539, -inf
      %v1161 = vmax.f32 %v1159, %v1160
      %v1162 = vrot.slane %v1161, 4
      %v1163 = vmax.f32 %v1161, %v1162
      %v1164 = vrot.slane %v1163, 2
      %v1165 = vmax.f32 %v1163, %v1164
      %v1166 = vrot.slane %v1165, 1
      %v1167 = vmax.f32 %v1165, %v1166
      %v1168 = vsel %vm1032, %v544, -inf
      %v1169 = vsel %vm1032, %v549, -inf
      %v1170 = vmax.f32 %v1168, %v1169
      %v1171 = vrot.slane %v1170, 4
      %v1172 = vmax.f32 %v1170, %v1171
      %v1173 = vrot.slane %v1172, 2
      %v1174 = vmax.f32 %v1172, %v1173
      %v1175 = vrot.slane %v1174, 1
      %v1176 = vmax.f32 %v1174, %v1175
      %v1177 = vsel %vm1032, %v554, -inf
      %v1178 = vsel %vm1032, %v559, -inf
      %v1179 = vmax.f32 %v1177, %v1178
      %v1180 = vrot.slane %v1179, 4
      %v1181 = vmax.f32 %v1179, %v1180
      %v1182 = vrot.slane %v1181, 2
      %v1183 = vmax.f32 %v1181, %v1182
      %v1184 = vrot.slane %v1183, 1
      %v1185 = vmax.f32 %v1183, %v1184
      %v1186 = vsel %vm1032, %v564, -inf
      %v1187 = vsel %vm1032, %v569, -inf
      %v1188 = vmax.f32 %v1186, %v1187
      %v1189 = vrot.slane %v1188, 4
      %v1190 = vmax.f32 %v1188, %v1189
      %v1191 = vrot.slane %v1190, 2
      %v1192 = vmax.f32 %v1190, %v1191
      %v1193 = vrot.slane %v1192, 1
      %v1194 = vmax.f32 %v1192, %v1193
      %v1195 = vsel %vm1032, %v574, -inf
      %v1196 = vsel %vm1032, %v579, -inf
      %v1197 = vmax.f32 %v1195, %v1196
      %v1198 = vrot.slane %v1197, 4
      %v1199 = vmax.f32 %v1197, %v1198
      %v1200 = vrot.slane %v1199, 2
      %v1201 = vmax.f32 %v1199, %v1200
      %v1202 = vrot.slane %v1201, 1
      %v1203 = vmax.f32 %v1201, %v1202
      %v1204 = vsel %vm1032, %v584, -inf
      %v1205 = vsel %vm1032, %v589, -inf
      %v1206 = vmax.f32 %v1204, %v1205
      %v1207 = vrot.slane %v1206, 4
      %v1208 = vmax.f32 %v1206, %v1207
      %v1209 = vrot.slane %v1208, 2
      %v1210 = vmax.f32 %v1208, %v1209
      %v1211 = vrot.slane %v1210, 1
      %v1212 = vmax.f32 %v1210, %v1211
      %v1213 = vsel %vm1032, %v594, -inf
      %v1214 = vsel %vm1032, %v599, -inf
      %v1215 = vmax.f32 %v1213, %v1214
      %v1216 = vrot.slane %v1215, 4
      %v1217 = vmax.f32 %v1215, %v1216
      %v1218 = vrot.slane %v1217, 2
      %v1219 = vmax.f32 %v1217, %v1218
      %v1220 = vrot.slane %v1219, 1
      %v1221 = vmax.f32 %v1219, %v1220
      %v1222 = vsel %vm1032, %v604, -inf
      %v1223 = vsel %vm1032, %v609, -inf
      %v1224 = vmax.f32 %v1222, %v1223
      %v1225 = vrot.slane %v1224, 4
      %v1226 = vmax.f32 %v1224, %v1225
      %v1227 = vrot.slane %v1226, 2
      %v1228 = vmax.f32 %v1226, %v1227
      %v1229 = vrot.slane %v1228, 1
      %v1230 = vmax.f32 %v1228, %v1229
      %v1231 = vsel %vm1032, %v614, -inf
      %v1232 = vsel %vm1032, %v619, -inf
      %v1233 = vmax.f32 %v1231, %v1232
      %v1234 = vrot.slane %v1233, 4
      %v1235 = vmax.f32 %v1233, %v1234
      %v1236 = vrot.slane %v1235, 2
      %v1237 = vmax.f32 %v1235, %v1236
      %v1238 = vrot.slane %v1237, 1
      %v1239 = vmax.f32 %v1237, %v1238
      %v1240 = vsel %vm1032, %v624, -inf
      %v1241 = vsel %vm1032, %v629, -inf
      %v1242 = vmax.f32 %v1240, %v1241
      %v1243 = vrot.slane %v1242, 4
      %v1244 = vmax.f32 %v1242, %v1243
      %v1245 = vrot.slane %v1244, 2
      %v1246 = vmax.f32 %v1244, %v1245
      %v1247 = vrot.slane %v1246, 1
      %v1248 = vmax.f32 %v1246, %v1247
      %v1249 = vsel %vm1032, %v634, -inf
      %v1250 = vsel %vm1032, %v639, -inf
      %v1251 = vmax.f32 %v1249, %v1250
      %v1252 = vrot.slane %v1251, 4
      %v1253 = vmax.f32 %v1251, %v1252
      %v1254 = vrot.slane %v1253, 2
      %v1255 = vmax.f32 %v1253, %v1254
      %v1256 = vrot.slane %v1255, 1
      %v1257 = vmax.f32 %v1255, %v1256
      %v1258 = vsel %vm1032, %v644, -inf
      %v1259 = vsel %vm1032, %v649, -inf
      %v1260 = vmax.f32 %v1258, %v1259
      %v1261 = vrot.slane %v1260, 4
      %v1262 = vmax.f32 %v1260, %v1261
      %v1263 = vrot.slane %v1262, 2
      %v1264 = vmax.f32 %v1262, %v1263
      %v1265 = vrot.slane %v1264, 1
      %v1266 = vmax.f32 %v1264, %v1265
      %v1267 = vsel %vm1032, %v654, -inf
      %v1268 = vsel %vm1032, %v659, -inf
      %v1269 = vmax.f32 %v1267, %v1268
      %v1270 = vrot.slane %v1269, 4
      %v1271 = vmax.f32 %v1269, %v1270
      %v1272 = vrot.slane %v1271, 2
      %v1273 = vmax.f32 %v1271, %v1272
      %v1274 = vrot.slane %v1273, 1
      %v1275 = vmax.f32 %v1273, %v1274
      %v1276 = vsel %vm1032, %v664, -inf
      %v1277 = vsel %vm1032, %v669, -inf
      %v1278 = vmax.f32 %v1276, %v1277
      %v1279 = vrot.slane %v1278, 4
      %v1280 = vmax.f32 %v1278, %v1279
      %v1281 = vrot.slane %v1280, 2
      %v1282 = vmax.f32 %v1280, %v1281
      %v1283 = vrot.slane %v1282, 1
      %v1284 = vmax.f32 %v1282, %v1283
      %v1285 = vsel %vm1032, %v674, -inf
      %v1286 = vsel %vm1032, %v679, -inf
      %v1287 = vmax.f32 %v1285, %v1286
      %v1288 = vrot.slane %v1287, 4
      %v1289 = vmax.f32 %v1287, %v1288
      %v1290 = vrot.slane %v1289, 2
      %v1291 = vmax.f32 %v1289, %v1290
      %v1292 = vrot.slane %v1291, 1
      %v1293 = vmax.f32 %v1291, %v1292
      %v1294 = vsel %vm1032, %v684, -inf
      %v1295 = vsel %vm1032, %v689, -inf
      %v1296 = vmax.f32 %v1294, %v1295
      %v1297 = vrot.slane %v1296, 4
      %v1298 = vmax.f32 %v1296, %v1297
      %v1299 = vrot.slane %v1298, 2
      %v1300 = vmax.f32 %v1298, %v1299
      %v1301 = vrot.slane %v1300, 1
      %v1302 = vmax.f32 %v1300, %v1301
      %v1303 = vsel %vm1032, %v694, -inf
      %v1304 = vsel %vm1032, %v699, -inf
      %v1305 = vmax.f32 %v1303, %v1304
      %v1306 = vrot.slane %v1305, 4
      %v1307 = vmax.f32 %v1305, %v1306
      %v1308 = vrot.slane %v1307, 2
      %v1309 = vmax.f32 %v1307, %v1308
      %v1310 = vrot.slane %v1309, 1
      %v1311 = vmax.f32 %v1309, %v1310
      %v1312 = vsel %vm1032, %v704, -inf
      %v1313 = vsel %vm1032, %v709, -inf
      %v1314 = vmax.f32 %v1312, %v1313
      %v1315 = vrot.slane %v1314, 4
      %v1316 = vmax.f32 %v1314, %v1315
      %v1317 = vrot.slane %v1316, 2
      %v1318 = vmax.f32 %v1316, %v1317
      %v1319 = vrot.slane %v1318, 1
      %v1320 = vmax.f32 %v1318, %v1319
      %v1321 = vsel %vm1032, %v714, -inf
      %v1322 = vsel %vm1032, %v719, -inf
      %v1323 = vmax.f32 %v1321, %v1322
      %v1324 = vrot.slane %v1323, 4
      %v1325 = vmax.f32 %v1323, %v1324
      %v1326 = vrot.slane %v1325, 2
      %v1327 = vmax.f32 %v1325, %v1326
      %v1328 = vrot.slane %v1327, 1
      %v1329 = vmax.f32 %v1327, %v1328
      %v1330 = vsel %vm1032, %v724, -inf
      %v1331 = vsel %vm1032, %v729, -inf
      %v1332 = vmax.f32 %v1330, %v1331
      %v1333 = vrot.slane %v1332, 4
      %v1334 = vmax.f32 %v1332, %v1333
      %v1335 = vrot.slane %v1334, 2
      %v1336 = vmax.f32 %v1334, %v1335
      %v1337 = vrot.slane %v1336, 1
      %v1338 = vmax.f32 %v1336, %v1337
      %v1339 = vsel %vm1032, %v734, -inf
      %v1340 = vsel %vm1032, %v739, -inf
      %v1341 = vmax.f32 %v1339, %v1340
      %v1342 = vrot.slane %v1341, 4
      %v1343 = vmax.f32 %v1341, %v1342
      %v1344 = vrot.slane %v1343, 2
      %v1345 = vmax.f32 %v1343, %v1344
      %v1346 = vrot.slane %v1345, 1
      %v1347 = vmax.f32 %v1345, %v1346
      %v1348 = vsel %vm1032, %v744, -inf
      %v1349 = vsel %vm1032, %v749, -inf
      %v1350 = vmax.f32 %v1348, %v1349
      %v1351 = vrot.slane %v1350, 4
      %v1352 = vmax.f32 %v1350, %v1351
      %v1353 = vrot.slane %v1352, 2
      %v1354 = vmax.f32 %v1352, %v1353
      %v1355 = vrot.slane %v1354, 1
      %v1356 = vmax.f32 %v1354, %v1355
      %v1357 = vsel %vm1032, %v754, -inf
      %v1358 = vsel %vm1032, %v759, -inf
      %v1359 = vmax.f32 %v1357, %v1358
      %v1360 = vrot.slane %v1359, 4
      %v1361 = vmax.f32 %v1359, %v1360
      %v1362 = vrot.slane %v1361, 2
      %v1363 = vmax.f32 %v1361, %v1362
      %v1364 = vrot.slane %v1363, 1
      %v1365 = vmax.f32 %v1363, %v1364
      %v1366 = vsel %vm1032, %v764, -inf
      %v1367 = vsel %vm1032, %v769, -inf
      %v1368 = vmax.f32 %v1366, %v1367
      %v1369 = vrot.slane %v1368, 4
      %v1370 = vmax.f32 %v1368, %v1369
      %v1371 = vrot.slane %v1370, 2
      %v1372 = vmax.f32 %v1370, %v1371
      %v1373 = vrot.slane %v1372, 1
      %v1374 = vmax.f32 %v1372, %v1373
      %v1375 = vsel %vm1032, %v774, -inf
      %v1376 = vsel %vm1032, %v779, -inf
      %v1377 = vmax.f32 %v1375, %v1376
      %v1378 = vrot.slane %v1377, 4
      %v1379 = vmax.f32 %v1377, %v1378
      %v1380 = vrot.slane %v1379, 2
      %v1381 = vmax.f32 %v1379, %v1380
      %v1382 = vrot.slane %v1381, 1
      %v1383 = vmax.f32 %v1381, %v1382
      %v1384 = vsel %vm1032, %v784, -inf
      %v1385 = vsel %vm1032, %v789, -inf
      %v1386 = vmax.f32 %v1384, %v1385
      %v1387 = vrot.slane %v1386, 4
      %v1388 = vmax.f32 %v1386, %v1387
      %v1389 = vrot.slane %v1388, 2
      %v1390 = vmax.f32 %v1388, %v1389
      %v1391 = vrot.slane %v1390, 1
      %v1392 = vmax.f32 %v1390, %v1391
      %v1393 = vsel %vm1032, %v794, -inf
      %v1394 = vsel %vm1032, %v799, -inf
      %v1395 = vmax.f32 %v1393, %v1394
      %v1396 = vrot.slane %v1395, 4
      %v1397 = vmax.f32 %v1395, %v1396
      %v1398 = vrot.slane %v1397, 2
      %v1399 = vmax.f32 %v1397, %v1398
      %v1400 = vrot.slane %v1399, 1
      %v1401 = vmax.f32 %v1399, %v1400
      %v1402 = vsel %vm1032, %v804, -inf
      %v1403 = vsel %vm1032, %v809, -inf
      %v1404 = vmax.f32 %v1402, %v1403
      %v1405 = vrot.slane %v1404, 4
      %v1406 = vmax.f32 %v1404, %v1405
      %v1407 = vrot.slane %v1406, 2
      %v1408 = vmax.f32 %v1406, %v1407
      %v1409 = vrot.slane %v1408, 1
      %v1410 = vmax.f32 %v1408, %v1409
      %v1411 = vsel %vm1032, %v814, -inf
      %v1412 = vsel %vm1032, %v819, -inf
      %v1413 = vmax.f32 %v1411, %v1412
      %v1414 = vrot.slane %v1413, 4
      %v1415 = vmax.f32 %v1413, %v1414
      %v1416 = vrot.slane %v1415, 2
      %v1417 = vmax.f32 %v1415, %v1416
      %v1418 = vrot.slane %v1417, 1
      %v1419 = vmax.f32 %v1417, %v1418
      %v1420 = vsel %vm1032, %v824, -inf
      %v1421 = vsel %vm1032, %v829, -inf
      %v1422 = vmax.f32 %v1420, %v1421
      %v1423 = vrot.slane %v1422, 4
      %v1424 = vmax.f32 %v1422, %v1423
      %v1425 = vrot.slane %v1424, 2
      %v1426 = vmax.f32 %v1424, %v1425
      %v1427 = vrot.slane %v1426, 1
      %v1428 = vmax.f32 %v1426, %v1427
      %v1429 = vsel %vm1032, %v834, -inf
      %v1430 = vsel %vm1032, %v839, -inf
      %v1431 = vmax.f32 %v1429, %v1430
      %v1432 = vrot.slane %v1431, 4
      %v1433 = vmax.f32 %v1431, %v1432
      %v1434 = vrot.slane %v1433, 2
      %v1435 = vmax.f32 %v1433, %v1434
      %v1436 = vrot.slane %v1435, 1
      %v1437 = vmax.f32 %v1435, %v1436
      %v1438 = vsel %vm1032, %v844, -inf
      %v1439 = vsel %vm1032, %v849, -inf
      %v1440 = vmax.f32 %v1438, %v1439
      %v1441 = vrot.slane %v1440, 4
      %v1442 = vmax.f32 %v1440, %v1441
      %v1443 = vrot.slane %v1442, 2
      %v1444 = vmax.f32 %v1442, %v1443
      %v1445 = vrot.slane %v1444, 1
      %v1446 = vmax.f32 %v1444, %v1445
      %v1447 = vsel %vm1032, %v854, -inf
      %v1448 = vsel %vm1032, %v859, -inf
      %v1449 = vmax.f32 %v1447, %v1448
      %v1450 = vrot.slane %v1449, 4
      %v1451 = vmax.f32 %v1449, %v1450
      %v1452 = vrot.slane %v1451, 2
      %v1453 = vmax.f32 %v1451, %v1452
      %v1454 = vrot.slane %v1453, 1
      %v1455 = vmax.f32 %v1453, %v1454
      %v1456 = vsel %vm1032, %v864, -inf
      %v1457 = vsel %vm1032, %v869, -inf
      %v1458 = vmax.f32 %v1456, %v1457
      %v1459 = vrot.slane %v1458, 4
      %v1460 = vmax.f32 %v1458, %v1459
      %v1461 = vrot.slane %v1460, 2
      %v1462 = vmax.f32 %v1460, %v1461
      %v1463 = vrot.slane %v1462, 1
      %v1464 = vmax.f32 %v1462, %v1463
      %v1465 = vsel %vm1032, %v874, -inf
      %v1466 = vsel %vm1032, %v879, -inf
      %v1467 = vmax.f32 %v1465, %v1466
      %v1468 = vrot.slane %v1467, 4
      %v1469 = vmax.f32 %v1467, %v1468
      %v1470 = vrot.slane %v1469, 2
      %v1471 = vmax.f32 %v1469, %v1470
      %v1472 = vrot.slane %v1471, 1
      %v1473 = vmax.f32 %v1471, %v1472
      %v1474 = vsel %vm1032, %v884, -inf
      %v1475 = vsel %vm1032, %v889, -inf
      %v1476 = vmax.f32 %v1474, %v1475
      %v1477 = vrot.slane %v1476, 4
      %v1478 = vmax.f32 %v1476, %v1477
      %v1479 = vrot.slane %v1478, 2
      %v1480 = vmax.f32 %v1478, %v1479
      %v1481 = vrot.slane %v1480, 1
      %v1482 = vmax.f32 %v1480, %v1481
      %v1483 = vsel %vm1032, %v894, -inf
      %v1484 = vsel %vm1032, %v899, -inf
      %v1485 = vmax.f32 %v1483, %v1484
      %v1486 = vrot.slane %v1485, 4
      %v1487 = vmax.f32 %v1485, %v1486
      %v1488 = vrot.slane %v1487, 2
      %v1489 = vmax.f32 %v1487, %v1488
      %v1490 = vrot.slane %v1489, 1
      %v1491 = vmax.f32 %v1489, %v1490
      %v1492 = vsel %vm1032, %v904, -inf
      %v1493 = vsel %vm1032, %v909, -inf
      %v1494 = vmax.f32 %v1492, %v1493
      %v1495 = vrot.slane %v1494, 4
      %v1496 = vmax.f32 %v1494, %v1495
      %v1497 = vrot.slane %v1496, 2
      %v1498 = vmax.f32 %v1496, %v1497
      %v1499 = vrot.slane %v1498, 1
      %v1500 = vmax.f32 %v1498, %v1499
      %v1501 = vsel %vm1032, %v914, -inf
      %v1502 = vsel %vm1032, %v919, -inf
      %v1503 = vmax.f32 %v1501, %v1502
      %v1504 = vrot.slane %v1503, 4
      %v1505 = vmax.f32 %v1503, %v1504
      %v1506 = vrot.slane %v1505, 2
      %v1507 = vmax.f32 %v1505, %v1506
      %v1508 = vrot.slane %v1507, 1
      %v1509 = vmax.f32 %v1507, %v1508
      %v1510 = vsel %vm1032, %v924, -inf
      %v1511 = vsel %vm1032, %v929, -inf
      %v1512 = vmax.f32 %v1510, %v1511
      %v1513 = vrot.slane %v1512, 4
      %v1514 = vmax.f32 %v1512, %v1513
      %v1515 = vrot.slane %v1514, 2
      %v1516 = vmax.f32 %v1514, %v1515
      %v1517 = vrot.slane %v1516, 1
      %v1518 = vmax.f32 %v1516, %v1517
      %v1519 = vsel %vm1032, %v934, -inf
      %v1520 = vsel %vm1032, %v939, -inf
      %v1521 = vmax.f32 %v1519, %v1520
      %v1522 = vrot.slane %v1521, 4
      %v1523 = vmax.f32 %v1521, %v1522
      %v1524 = vrot.slane %v1523, 2
      %v1525 = vmax.f32 %v1523, %v1524
      %v1526 = vrot.slane %v1525, 1
      %v1527 = vmax.f32 %v1525, %v1526
      %v1528 = vsel %vm1032, %v944, -inf
      %v1529 = vsel %vm1032, %v949, -inf
      %v1530 = vmax.f32 %v1528, %v1529
      %v1531 = vrot.slane %v1530, 4
      %v1532 = vmax.f32 %v1530, %v1531
      %v1533 = vrot.slane %v1532, 2
      %v1534 = vmax.f32 %v1532, %v1533
      %v1535 = vrot.slane %v1534, 1
      %v1536 = vmax.f32 %v1534, %v1535
      %v1537 = vsel %vm1032, %v954, -inf
      %v1538 = vsel %vm1032, %v959, -inf
      %v1539 = vmax.f32 %v1537, %v1538
      %v1540 = vrot.slane %v1539, 4
      %v1541 = vmax.f32 %v1539, %v1540
      %v1542 = vrot.slane %v1541, 2
      %v1543 = vmax.f32 %v1541, %v1542
      %v1544 = vrot.slane %v1543, 1
      %v1545 = vmax.f32 %v1543, %v1544
      %v1546 = vsel %vm1032, %v964, -inf
      %v1547 = vsel %vm1032, %v969, -inf
      %v1548 = vmax.f32 %v1546, %v1547
      %v1549 = vrot.slane %v1548, 4
      %v1550 = vmax.f32 %v1548, %v1549
      %v1551 = vrot.slane %v1550, 2
      %v1552 = vmax.f32 %v1550, %v1551
      %v1553 = vrot.slane %v1552, 1
      %v1554 = vmax.f32 %v1552, %v1553
      %v1555 = vsel %vm1032, %v974, -inf
      %v1556 = vsel %vm1032, %v979, -inf
      %v1557 = vmax.f32 %v1555, %v1556
      %v1558 = vrot.slane %v1557, 4
      %v1559 = vmax.f32 %v1557, %v1558
      %v1560 = vrot.slane %v1559, 2
      %v1561 = vmax.f32 %v1559, %v1560
      %v1562 = vrot.slane %v1561, 1
      %v1563 = vmax.f32 %v1561, %v1562
      %v1564 = vsel %vm1032, %v984, -inf
      %v1565 = vsel %vm1032, %v989, -inf
      %v1566 = vmax.f32 %v1564, %v1565
      %v1567 = vrot.slane %v1566, 4
      %v1568 = vmax.f32 %v1566, %v1567
      %v1569 = vrot.slane %v1568, 2
      %v1570 = vmax.f32 %v1568, %v1569
      %v1571 = vrot.slane %v1570, 1
      %v1572 = vmax.f32 %v1570, %v1571
      %v1573 = vsel %vm1032, %v994, -inf
      %v1574 = vsel %vm1032, %v999, -inf
      %v1575 = vmax.f32 %v1573, %v1574
      %v1576 = vrot.slane %v1575, 4
      %v1577 = vmax.f32 %v1575, %v1576
      %v1578 = vrot.slane %v1577, 2
      %v1579 = vmax.f32 %v1577, %v1578
      %v1580 = vrot.slane %v1579, 1
      %v1581 = vmax.f32 %v1579, %v1580
      %v1582 = vsel %vm1032, %v1004, -inf
      %v1583 = vsel %vm1032, %v1009, -inf
      %v1584 = vmax.f32 %v1582, %v1583
      %v1585 = vrot.slane %v1584, 4
      %v1586 = vmax.f32 %v1584, %v1585
      %v1587 = vrot.slane %v1586, 2
      %v1588 = vmax.f32 %v1586, %v1587
      %v1589 = vrot.slane %v1588, 1
      %v1590 = vmax.f32 %v1588, %v1589
      %v1591 = vsel %vm1032, %v1014, -inf
      %v1592 = vsel %vm1032, %v1019, -inf
      %v1593 = vmax.f32 %v1591, %v1592
      %v1594 = vrot.slane %v1593, 4
      %v1595 = vmax.f32 %v1593, %v1594
      %v1596 = vrot.slane %v1595, 2
      %v1597 = vmax.f32 %v1595, %v1596
      %v1598 = vrot.slane %v1597, 1
      %v1599 = vmax.f32 %v1597, %v1598
      %v1600 = vsel %vm1032, %v1024, -inf
      %v1601 = vsel %vm1032, %v1029, -inf
      %v1602 = vmax.f32 %v1600, %v1601
      %v1603 = vrot.slane %v1602, 4
      %v1604 = vmax.f32 %v1602, %v1603
      %v1605 = vrot.slane %v1604, 2
      %v1606 = vmax.f32 %v1604, %v1605
      %v1607 = vrot.slane %v1606, 1
      %v1608 = vmax.f32 %v1606, %v1607
      %v1609 = vmax.f32 %v1041, 0.0
      %v1610 = vmax.f32 %v1050, 0.0
      %v1611 = vmax.f32 %v1059, 0.0
      %v1612 = vmax.f32 %v1068, 0.0
      %v1613 = vmax.f32 %v1077, 0.0
      %v1614 = vmax.f32 %v1086, 0.0
      %v1615 = vmax.f32 %v1095, 0.0
      %v1616 = vmax.f32 %v1104, 0.0
      %v1617 = vmax.f32 %v1113, 0.0
      %v1618 = vmax.f32 %v1122, 0.0
      %v1619 = vmax.f32 %v1131, 0.0
      %v1620 = vmax.f32 %v1140, 0.0
      %v1621 = vmax.f32 %v1149, 0.0
      %v1622 = vmax.f32 %v1158, 0.0
      %v1623 = vmax.f32 %v1167, 0.0
      %v1624 = vmax.f32 %v1176, 0.0
      %v1625 = vmax.f32 %v1185, 0.0
      %v1626 = vmax.f32 %v1194, 0.0
      %v1627 = vmax.f32 %v1203, 0.0
      %v1628 = vmax.f32 %v1212, 0.0
      %v1629 = vmax.f32 %v1221, 0.0
      %v1630 = vmax.f32 %v1230, 0.0
      %v1631 = vmax.f32 %v1239, 0.0
      %v1632 = vmax.f32 %v1248, 0.0
      %v1633 = vmax.f32 %v1257, 0.0
      %v1634 = vmax.f32 %v1266, 0.0
      %v1635 = vmax.f32 %v1275, 0.0
      %v1636 = vmax.f32 %v1284, 0.0
      %v1637 = vmax.f32 %v1293, 0.0
      %v1638 = vmax.f32 %v1302, 0.0
      %v1639 = vmax.f32 %v1311, 0.0
      %v1640 = vmax.f32 %v1320, 0.0
      %v1641 = vmax.f32 %v1329, 0.0
      %v1642 = vmax.f32 %v1338, 0.0
      %v1643 = vmax.f32 %v1347, 0.0
      %v1644 = vmax.f32 %v1356, 0.0
      %v1645 = vmax.f32 %v1365, 0.0
      %v1646 = vmax.f32 %v1374, 0.0
      %v1647 = vmax.f32 %v1383, 0.0
      %v1648 = vmax.f32 %v1392, 0.0
      %v1649 = vmax.f32 %v1401, 0.0
      %v1650 = vmax.f32 %v1410, 0.0
      %v1651 = vmax.f32 %v1419, 0.0
      %v1652 = vmax.f32 %v1428, 0.0
      %v1653 = vmax.f32 %v1437, 0.0
      %v1654 = vmax.f32 %v1446, 0.0
      %v1655 = vmax.f32 %v1455, 0.0
      %v1656 = vmax.f32 %v1464, 0.0
      %v1657 = vmax.f32 %v1473, 0.0
      %v1658 = vmax.f32 %v1482, 0.0
      %v1659 = vmax.f32 %v1491, 0.0
      %v1660 = vmax.f32 %v1500, 0.0
      %v1661 = vmax.f32 %v1509, 0.0
      %v1662 = vmax.f32 %v1518, 0.0
      %v1663 = vmax.f32 %v1527, 0.0
      %v1664 = vmax.f32 %v1536, 0.0
      %v1665 = vmax.f32 %v1545, 0.0
      %v1666 = vmax.f32 %v1554, 0.0
      %v1667 = vmax.f32 %v1563, 0.0
      %v1668 = vmax.f32 %v1572, 0.0
      %v1669 = vmax.f32 %v1581, 0.0
      %v1670 = vmax.f32 %v1590, 0.0
      %v1671 = vmax.f32 %v1599, 0.0
      %v1672 = vmax.f32 %v1608, 0.0
      %vm1737 = vcmask 1041409
      %v1738 = vsel %vm1737, %v1610, %v1609
      %vm1739 = vcmask 1042434
      %v1740 = vsel %vm1739, %v1611, %v1738
      %vm1741 = vcmask 1043459
      %v1742 = vsel %vm1741, %v1612, %v1740
      %vm1743 = vcmask 1044484
      %v1744 = vsel %vm1743, %v1613, %v1742
      %vm1745 = vcmask 1045509
      %v1746 = vsel %vm1745, %v1614, %v1744
      %vm1747 = vcmask 1046534
      %v1748 = vsel %vm1747, %v1615, %v1746
      %vm1749 = vcmask 1047559
      %v1750 = vsel %vm1749, %v1616, %v1748
      %v1751 = vsel %vm1737, %v1618, %v1617
      %v1752 = vsel %vm1739, %v1619, %v1751
      %v1753 = vsel %vm1741, %v1620, %v1752
      %v1754 = vsel %vm1743, %v1621, %v1753
      %v1755 = vsel %vm1745, %v1622, %v1754
      %v1756 = vsel %vm1747, %v1623, %v1755
      %v1757 = vsel %vm1749, %v1624, %v1756
      %v1758 = vsel %vm1737, %v1626, %v1625
      %v1759 = vsel %vm1739, %v1627, %v1758
      %v1760 = vsel %vm1741, %v1628, %v1759
      %v1761 = vsel %vm1743, %v1629, %v1760
      %v1762 = vsel %vm1745, %v1630, %v1761
      %v1763 = vsel %vm1747, %v1631, %v1762
      %v1764 = vsel %vm1749, %v1632, %v1763
      %v1765 = vsel %vm1737, %v1634, %v1633
      %v1766 = vsel %vm1739, %v1635, %v1765
      %v1767 = vsel %vm1741, %v1636, %v1766
      %v1768 = vsel %vm1743, %v1637, %v1767
      %v1769 = vsel %vm1745, %v1638, %v1768
      %v1770 = vsel %vm1747, %v1639, %v1769
      %v1771 = vsel %vm1749, %v1640, %v1770
      %v1772 = vsel %vm1737, %v1642, %v1641
      %v1773 = vsel %vm1739, %v1643, %v1772
      %v1774 = vsel %vm1741, %v1644, %v1773
      %v1775 = vsel %vm1743, %v1645, %v1774
      %v1776 = vsel %vm1745, %v1646, %v1775
      %v1777 = vsel %vm1747, %v1647, %v1776
      %v1778 = vsel %vm1749, %v1648, %v1777
      %v1779 = vsel %vm1737, %v1650, %v1649
      %v1780 = vsel %vm1739, %v1651, %v1779
      %v1781 = vsel %vm1741, %v1652, %v1780
      %v1782 = vsel %vm1743, %v1653, %v1781
      %v1783 = vsel %vm1745, %v1654, %v1782
      %v1784 = vsel %vm1747, %v1655, %v1783
      %v1785 = vsel %vm1749, %v1656, %v1784
      %v1786 = vsel %vm1737, %v1658, %v1657
      %v1787 = vsel %vm1739, %v1659, %v1786
      %v1788 = vsel %vm1741, %v1660, %v1787
      %v1789 = vsel %vm1743, %v1661, %v1788
      %v1790 = vsel %vm1745, %v1662, %v1789
      %v1791 = vsel %vm1747, %v1663, %v1790
      %v1792 = vsel %vm1749, %v1664, %v1791
      %v1793 = vsel %vm1737, %v1666, %v1665
      %v1794 = vsel %vm1739, %v1667, %v1793
      %v1795 = vsel %vm1741, %v1668, %v1794
      %v1796 = vsel %vm1743, %v1669, %v1795
      %v1797 = vsel %vm1745, %v1670, %v1796
      %v1798 = vsel %vm1747, %v1671, %v1797
      %v1799 = vsel %vm1749, %v1672, %v1798
      %1808 = vst.msk [vmem:[%s181] sm:$0xff] %vm1032, %v1750
      %1809 = vst.msk [vmem:[%s181 + $0x8] sm:$0xff] %vm1032, %v1757
      %1810 = vst.msk [vmem:[%s181 + $0x10] sm:$0xff] %vm1032, %v1764
      %1811 = vst.msk [vmem:[%s181 + $0x18] sm:$0xff] %vm1032, %v1771
      %1812 = vst.msk [vmem:[%s181 + $0x20] sm:$0xff] %vm1032, %v1778
      %1813 = vst.msk [vmem:[%s181 + $0x28] sm:$0xff] %vm1032, %v1785
      %1814 = vst.msk [vmem:[%s181 + $0x30] sm:$0xff] %vm1032, %v1792
      %1815 = vst.msk [vmem:[%s181 + $0x38] sm:$0xff] %vm1032, %v1799
      %s1816 = smul.u32 8, %s18
      %p1817 = scmp.lt.s32.totalorder %s17, 1
      %s1818 = scalar_select %p1817, %s17, 1
      %p1819 = scmp.lt.s32.totalorder %s1816, 31
      %s1820 = scalar_select %p1819, %s1816, 31
      %s1821 = smul.addr %s1818, 32
      %s1822 = sadd.s32 %s1820, %s1821
      %s1823 = smul.addr %s1822, 8
      %s1824 = scalar_lea.vmem %s2, %s1823
      // Predicated region
      $region29: #{spec_encoder_forward.4} parent=27 // pred_check
        %p1825 = pneg %p94
      $region30: #{spec_encoder_forward.4} parent=27 // pred_check_branch
        %1827 = sbr.rel (%p1825) target = $region32
      $region31: #{spec_encoder_forward.4} parent=27 // pred_region
        %s1828 = smul.u32 8, %s18
      $region32: #{spec_encoder_forward.4} parent=27 // pred_fallthru
        _
    $region28: #{spec_encoder_forward.4} parent=5 // pred_fallthru
      _
    %p1829 = scmp.le.s32.totalorder 2, %s8
    // Predicated region
    $region33: #{spec_encoder_forward.4} parent=5 // pred_check
      %p1830 = pneg %p1829
    $region34: #{spec_encoder_forward.4} parent=5 // pred_check_branch
      %1832 = sbr.rel (%p1830) target = $region36
    $region35: #{spec_encoder_forward.4} parent=5 // pred_region
      %s1833 = ssub.s32 %s8, 2
      // Predicated region
      $region37: #{spec_encoder_forward.4} parent=35 // pred_check
        %p1834 = pneg %p100
      $region38: #{spec_encoder_forward.4} parent=35 // pred_check_branch
        %1836 = sbr.rel (%p1834) target = $region40
      $region39: #{spec_encoder_forward.4} parent=35 // pred_region
        %s1837 = smul.u32 8, %s20
        %p1838 = scmp.lt.s32.totalorder %s19, 1
        %s1839 = scalar_select %p1838, %s19, 1
        %p1840 = scmp.lt.s32.totalorder %s1837, 31
        %s1841 = scalar_select %p1840, %s1837, 31
        %s1842 = smul.addr %s1839, 32
        %s1843 = sadd.s32 %s1841, %s1842
        %s1844 = smul.addr %s1843, 8
        %s1845 = scalar_lea.vmem %s2, %s1844
      $region40: #{spec_encoder_forward.4} parent=35 // pred_fallthru
        _
    $region36: #{spec_encoder_forward.4} parent=5 // pred_fallthru
      _
  $region6: #{spec_encoder_forward.4} parent=0 // loop_footer
    %s12 = sadd.s32 1, %s8
  $region7: #{spec_encoder_forward.4} parent=0 // loop_footer_branch
    %7 = sbr.rel target = $region3
  $region8: #{spec_encoder_forward.4} parent=0 // loop_exit
    _

// kernel: spec_encoder_forward.5
$region0: #{spec_encoder_forward.5}
  #allocation0 [shape = 'u32[]', space=smem, size = 0x4, offset = 0x4, fixed_abs, tag = 'smem constant byte address 0x4 - core index']
  #allocation1 [shape = 'u32[144,128]{1,0:T(1,128)}', space=vmem, size = 0x12000, scoped, tag = 'internal scratch']
  %s0 = inlined_call_operand.vmem [shape: f32[2,256,640], index: 0, kind: input, shape index: {}]
  %s1 = inlined_call_operand.vmem [shape: f32[640,128], index: 1, kind: input, shape index: {}]
  %s2 = inlined_call_operand.vmem [shape: f32[2,16,128], index: 2, kind: output, shape index: {}]
  %s3 = sld [smem:[#allocation0]]
  $region41: #{spec_encoder_forward.5} parent=0
    _
  %s5 = ssub.s32 1, %s3
  %s6 = scalar_select 0, %s5, %s3
  loop: start=0, step=1, limit=4
  $region2: #{spec_encoder_forward.5} parent=0 // loop_pre_header
    _
  $region3: #{spec_encoder_forward.5} parent=0 // loop_header
    %s8 = sphi 0, %s12
    %p9 = scmp.ge.s32.totalorder %s8, 4
    %s15 = sphi 0, %s27
    %s16 = sphi 0, %s23
    %s17 = sphi 0, %s15
    %s18 = sphi 0, %s16
    %s19 = sphi 0, %s17
    %s20 = sphi 0, %s18
    %s32 = sphi 0, %s34
    %s35 = sphi 0, %s32
    %s36 = sphi 0, %s35
    %s52 = sphi 0, %s36
    %s56 = sphi 0, %s56
    %s58 = sphi 0, %s56
    %s59 = sphi 0, %s58
    %s73 = sphi 0, %s59
    %s81 = sphi 0, %s83
    %s84 = sphi 0, %s81
    %s85 = sphi 0, %s84
    %s101 = sphi 0, %s85
  $region4: #{spec_encoder_forward.5} parent=0 // loop_header_branch
    %11 = sbr.rel (%p9) target = $region8
  $region5: #{spec_encoder_forward.5} parent=0 // loop_body
    %s13 = ssub.s32 %s8, 1
    %s14 = ssub.s32 %s8, 2
    %s21 = sadd.s32 1, %s16
    %p22 = scmp.ge.s32.totalorder %s21, 1
    %s23 = scalar_select %p22, 0, %s21
    %s24 = sadd.s32 1, %s15
    %s25 = scalar_select %p22, %s24, %s15
    %p26 = scmp.ge.s32.totalorder %s25, 2
    %s27 = scalar_select %p26, 0, %s25
    %s28 = ssub.s32 %s15, %s27
    %s29 = ssub.s32 %s16, %s23
    %s30 = sor.u32 %s28, %s29
    %p31 = scmp.eq.s32.totalorder %s30, 0
    %s33 = sadd.s32 %s32, 1
    %s34 = scalar_select %p31, %s32, %s33
    %p37 = pneg %p31
    %p38 = scmp.eq.s32.totalorder %s8, 1
    %p39 = por %p37, %p38
    %p40 = scmp.ne.s32.totalorder %s32, %s35
    %p41 = scmp.eq.s32.totalorder %s8, 0
    %p42 = por %p40, %p41
    %p43 = scmp.ne.s32.totalorder %s32, %s35
    %p44 = scmp.eq.s32.totalorder %s13, 1
    %p45 = por %p43, %p44
    %p46 = scmp.ne.s32.totalorder %s35, %s36
    %p47 = scmp.eq.s32.totalorder %s13, 0
    %p48 = por %p46, %p47
    %p49 = scmp.ne.s32.totalorder %s35, %s36
    %p50 = scmp.eq.s32.totalorder %s14, 1
    %p51 = por %p49, %p50
    %p53 = scmp.ne.s32.totalorder %s36, %s52
    %p54 = scmp.eq.s32.totalorder %s14, 0
    %p55 = por %p53, %p54
    %s57 = sadd.s32 %s56, 1
    %p60 = scmp.eq.s32.totalorder %s8, 1
    %p61 = scmp.ne.s32.totalorder %s56, %s58
    %p62 = scmp.eq.s32.totalorder %s8, 0
    %p63 = por %p61, %p62
    %p64 = scmp.ne.s32.totalorder %s56, %s58
    %p65 = scmp.eq.s32.totalorder %s13, 1
    %p66 = por %p64, %p65
    %p67 = scmp.ne.s32.totalorder %s58, %s59
    %p68 = scmp.eq.s32.totalorder %s13, 0
    %p69 = por %p67, %p68
    %p70 = scmp.ne.s32.totalorder %s58, %s59
    %p71 = scmp.eq.s32.totalorder %s14, 1
    %p72 = por %p70, %p71
    %p74 = scmp.ne.s32.totalorder %s59, %s73
    %p75 = scmp.eq.s32.totalorder %s14, 0
    %p76 = por %p74, %p75
    %s77 = ssub.s32 %s15, %s27
    %s78 = ssub.s32 %s16, %s23
    %s79 = sor.u32 %s77, %s78
    %p80 = scmp.eq.s32.totalorder %s79, 0
    %s82 = sadd.s32 %s81, 1
    %s83 = scalar_select %p80, %s81, %s82
    %p86 = pneg %p80
    %p87 = scmp.eq.s32.totalorder %s8, 1
    %p88 = por %p86, %p87
    %p89 = scmp.ne.s32.totalorder %s81, %s84
    %p90 = scmp.eq.s32.totalorder %s8, 0
    %p91 = por %p89, %p90
    %p92 = scmp.ne.s32.totalorder %s81, %s84
    %p93 = scmp.eq.s32.totalorder %s13, 1
    %p94 = por %p92, %p93
    %p95 = scmp.ne.s32.totalorder %s84, %s85
    %p96 = scmp.eq.s32.totalorder %s13, 0
    %p97 = por %p95, %p96
    %p98 = scmp.ne.s32.totalorder %s84, %s85
    %p99 = scmp.eq.s32.totalorder %s14, 1
    %p100 = por %p98, %p99
    %p102 = scmp.ne.s32.totalorder %s85, %s101
    %p103 = scmp.eq.s32.totalorder %s14, 0
    %p104 = por %p102, %p103
    %p105 = scmp.le.s32.totalorder 1, %s8
    %p106 = scmp.lt.s32.totalorder %s8, 3
    %p107 = pnand %p105, %p106
    %p108 = pneg %p107
    // Predicated region
    $region9: #{spec_encoder_forward.5} parent=5 // pred_check
      _
    $region10: #{spec_encoder_forward.5} parent=5 // pred_check_branch
      %110 = sbr.rel (%p107) target = $region12
    $region11: #{spec_encoder_forward.5} parent=5 // pred_region
      %s111 = ssub.s32 %s8, 1
      // Predicated region
      $region13: #{spec_encoder_forward.5} parent=11 // pred_check
        %p112 = pneg %p69
      $region14: #{spec_encoder_forward.5} parent=11 // pred_check_branch
        %114 = sbr.rel (%p112) target = $region16
      $region15: #{spec_encoder_forward.5} parent=11 // pred_region
        _
      $region16: #{spec_encoder_forward.5} parent=11 // pred_fallthru
        _
    $region12: #{spec_encoder_forward.5} parent=5 // pred_fallthru
      _
    %p115 = scmp.lt.s32.totalorder %s8, 2
    // Predicated region
    $region17: #{spec_encoder_forward.5} parent=5 // pred_check
      %p116 = pneg %p115
    $region18: #{spec_encoder_forward.5} parent=5 // pred_check_branch
      %118 = sbr.rel (%p116) target = $region20
    $region19: #{spec_encoder_forward.5} parent=5 // pred_region
      // Predicated region
      $region21: #{spec_encoder_forward.5} parent=19 // pred_check
        %p119 = pneg %p42
      $region22: #{spec_encoder_forward.5} parent=19 // pred_check_branch
        %121 = sbr.rel (%p119) target = $region24
      $region23: #{spec_encoder_forward.5} parent=19 // pred_region
        %s122 = smul.u32 32, %s16
        %p123 = scmp.lt.s32.totalorder %s15, 1
        %s124 = scalar_select %p123, %s15, 1
        %p125 = scmp.lt.s32.totalorder %s122, 31
        %s126 = scalar_select %p125, %s122, 31
        %s127 = smul.addr %s126, 5
        %s128 = smul.addr %s124, 160
        %s129 = sadd.s32 %s127, %s128
        %s130 = smul.addr %s129, 8
        %s131 = scalar_lea.vmem %s0, %s130
        %s132 = smul.u32 32, %s16
      $region24: #{spec_encoder_forward.5} parent=19 // pred_fallthru
        _
    $region20: #{spec_encoder_forward.5} parent=5 // pred_fallthru
      _
    %p133 = scmp.le.s32.totalorder 1, %s8
    %p134 = scmp.lt.s32.totalorder %s8, 3
    %p135 = pnand %p133, %p134
    %p136 = pneg %p135
    // Predicated region
    $region25: #{spec_encoder_forward.5} parent=5 // pred_check
      _
    $region26: #{spec_encoder_forward.5} parent=5 // pred_check_branch
      %138 = sbr.rel (%p135) target = $region28
    $region27: #{spec_encoder_forward.5} parent=5 // pred_region
      %s139 = ssub.s32 %s8, 1
      %s140 = smul.u32 32, %s18
      %p141 = scmp.lt.s32.totalorder %s17, 1
      %s142 = scalar_select %p141, %s17, 1
      %p143 = scmp.lt.s32.totalorder %s140, 31
      %s144 = scalar_select %p143, %s140, 31
      %s145 = smul.addr %s144, 5
      %s146 = smul.addr %s142, 160
      %s147 = sadd.s32 %s145, %s146
      %s148 = smul.addr %s147, 8
      %s149 = scalar_lea.vmem %s0, %s148
      %p150 = pneg %p48
      %p151 = pneg %p45
      %p152 = pneg %p69
      %p153 = pneg %p66
      %p154 = pneg %p97
      %p155 = pneg %p94
      %s156 = smul.u32 2, %s18
      %p157 = scmp.lt.s32.totalorder %s17, 1
      %s158 = scalar_select %p157, %s17, 1
      %p159 = scmp.lt.s32.totalorder %s156, 1
      %s160 = scalar_select %p159, %s156, 1
      %s161 = smul.addr %s158, 2
      %s162 = sadd.s32 %s160, %s161
      %s163 = smul.addr %s162, 8
      %s164 = scalar_lea.vmem %s2, %s163
      %s165 = smul.u32 32, %s18
      %p166 = scmp.lt.s32.totalorder %s17, 1
      %s167 = scalar_select %p166, %s17, 1
      %p168 = scmp.lt.s32.totalorder %s165, 31
      %s169 = scalar_select %p168, %s165, 31
      %s170 = smul.addr %s169, 5
      %s171 = smul.addr %s167, 160
      %s172 = sadd.s32 %s170, %s171
      %s173 = smul.addr %s172, 8
      %s174 = scalar_lea.vmem %s0, %s173
      %s175 = smul.u32 32, %s18
      %s176 = smul.u32 2, %s18
      %p177 = scmp.lt.s32.totalorder %s17, 1
      %s178 = scalar_select %p177, %s17, 1
      %p179 = scmp.lt.s32.totalorder %s176, 1
      %s180 = scalar_select %p179, %s176, 1
      %s181 = smul.addr %s178, 2
      %s182 = sadd.s32 %s180, %s181
      %s183 = smul.addr %s182, 8
      %s184 = scalar_lea.vmem %s2, %s183
      %s185 = smul.u32 2, %s18
      %v186 = vld [vmem:[%s174] sm:$0xff]
      %v187 = vld [vmem:[%s174 + $0x8] sm:$0xff]
      %v188 = vld [vmem:[%s174 + $0x10] sm:$0xff]
      %v189 = vld [vmem:[%s174 + $0x18] sm:$0xff]
      %v190 = vld [vmem:[%s174 + $0x20] sm:$0xff]
      %v191 = vld [vmem:[%s174 + $0x28] sm:$0xff]
      %v192 = vld [vmem:[%s174 + $0x30] sm:$0xff]
      %v193 = vld [vmem:[%s174 + $0x38] sm:$0xff]
      %v194 = vld [vmem:[%s174 + $0x40] sm:$0xff]
      %v195 = vld [vmem:[%s174 + $0x48] sm:$0xff]
      %v196 = vld [vmem:[%s174 + $0x50] sm:$0xff]
      %v197 = vld [vmem:[%s174 + $0x58] sm:$0xff]
      %v198 = vld [vmem:[%s174 + $0x60] sm:$0xff]
      %v199 = vld [vmem:[%s174 + $0x68] sm:$0xff]
      %v200 = vld [vmem:[%s174 + $0x70] sm:$0xff]
      %v201 = vld [vmem:[%s174 + $0x78] sm:$0xff]
      %v202 = vld [vmem:[%s174 + $0x80] sm:$0xff]
      %v203 = vld [vmem:[%s174 + $0x88] sm:$0xff]
      %v204 = vld [vmem:[%s174 + $0x90] sm:$0xff]
      %v205 = vld [vmem:[%s174 + $0x98] sm:$0xff]
      %v206 = vld [vmem:[%s174 + $0xa0] sm:$0xff]
      %v207 = vld [vmem:[%s174 + $0xa8] sm:$0xff]
      %v208 = vld [vmem:[%s174 + $0xb0] sm:$0xff]
      %v209 = vld [vmem:[%s174 + $0xb8] sm:$0xff]
      %v210 = vld [vmem:[%s174 + $0xc0] sm:$0xff]
      %v211 = vld [vmem:[%s174 + $0xc8] sm:$0xff]
      %v212 = vld [vmem:[%s174 + $0xd0] sm:$0xff]
      %v213 = vld [vmem:[%s174 + $0xd8] sm:$0xff]
      %v214 = vld [vmem:[%s174 + $0xe0] sm:$0xff]
      %v215 = vld [vmem:[%s174 + $0xe8] sm:$0xff]
      %v216 = vld [vmem:[%s174 + $0xf0] sm:$0xff]
      %v217 = vld [vmem:[%s174 + $0xf8] sm:$0xff]
      %v218 = vld [vmem:[%s174 + $0x100] sm:$0xff]
      %v219 = vld [vmem:[%s174 + $0x108] sm:$0xff]
      %v220 = vld [vmem:[%s174 + $0x110] sm:$0xff]
      %v221 = vld [vmem:[%s174 + $0x118] sm:$0xff]
      %v222 = vld [vmem:[%s174 + $0x120] sm:$0xff]
      %v223 = vld [vmem:[%s174 + $0x128] sm:$0xff]
      %v224 = vld [vmem:[%s174 + $0x130] sm:$0xff]
      %v225 = vld [vmem:[%s174 + $0x138] sm:$0xff]
      %v226 = vld [vmem:[%s174 + $0x140] sm:$0xff]
      %v227 = vld [vmem:[%s174 + $0x148] sm:$0xff]
      %v228 = vld [vmem:[%s174 + $0x150] sm:$0xff]
      %v229 = vld [vmem:[%s174 + $0x158] sm:$0xff]
      %v230 = vld [vmem:[%s174 + $0x160] sm:$0xff]
      %v231 = vld [vmem:[%s174 + $0x168] sm:$0xff]
      %v232 = vld [vmem:[%s174 + $0x170] sm:$0xff]
      %v233 = vld [vmem:[%s174 + $0x178] sm:$0xff]
      %v234 = vld [vmem:[%s174 + $0x180] sm:$0xff]
      %v235 = vld [vmem:[%s174 + $0x188] sm:$0xff]
      %v236 = vld [vmem:[%s174 + $0x190] sm:$0xff]
      %v237 = vld [vmem:[%s174 + $0x198] sm:$0xff]
      %v238 = vld [vmem:[%s174 + $0x1a0] sm:$0xff]
      %v239 = vld [vmem:[%s174 + $0x1a8] sm:$0xff]
      %v240 = vld [vmem:[%s174 + $0x1b0] sm:$0xff]
      %v241 = vld [vmem:[%s174 + $0x1b8] sm:$0xff]
      %v242 = vld [vmem:[%s174 + $0x1c0] sm:$0xff]
      %v243 = vld [vmem:[%s174 + $0x1c8] sm:$0xff]
      %v244 = vld [vmem:[%s174 + $0x1d0] sm:$0xff]
      %v245 = vld [vmem:[%s174 + $0x1d8] sm:$0xff]
      %v246 = vld [vmem:[%s174 + $0x1e0] sm:$0xff]
      %v247 = vld [vmem:[%s174 + $0x1e8] sm:$0xff]
      %v248 = vld [vmem:[%s174 + $0x1f0] sm:$0xff]
      %v249 = vld [vmem:[%s174 + $0x1f8] sm:$0xff]
      %v250 = vld [vmem:[%s174 + $0x200] sm:$0xff]
      %v251 = vld [vmem:[%s174 + $0x208] sm:$0xff]
      %v252 = vld [vmem:[%s174 + $0x210] sm:$0xff]
      %v253 = vld [vmem:[%s174 + $0x218] sm:$0xff]
      %v254 = vld [vmem:[%s174 + $0x220] sm:$0xff]
      %v255 = vld [vmem:[%s174 + $0x228] sm:$0xff]
      %v256 = vld [vmem:[%s174 + $0x230] sm:$0xff]
      %v257 = vld [vmem:[%s174 + $0x238] sm:$0xff]
      %v258 = vld [vmem:[%s174 + $0x240] sm:$0xff]
      %v259 = vld [vmem:[%s174 + $0x248] sm:$0xff]
      %v260 = vld [vmem:[%s174 + $0x250] sm:$0xff]
      %v261 = vld [vmem:[%s174 + $0x258] sm:$0xff]
      %v262 = vld [vmem:[%s174 + $0x260] sm:$0xff]
      %v263 = vld [vmem:[%s174 + $0x268] sm:$0xff]
      %v264 = vld [vmem:[%s174 + $0x270] sm:$0xff]
      %v265 = vld [vmem:[%s174 + $0x278] sm:$0xff]
      %v266 = vld [vmem:[%s174 + $0x280] sm:$0xff]
      %v267 = vld [vmem:[%s174 + $0x288] sm:$0xff]
      %v268 = vld [vmem:[%s174 + $0x290] sm:$0xff]
      %v269 = vld [vmem:[%s174 + $0x298] sm:$0xff]
      %v270 = vld [vmem:[%s174 + $0x2a0] sm:$0xff]
      %v271 = vld [vmem:[%s174 + $0x2a8] sm:$0xff]
      %v272 = vld [vmem:[%s174 + $0x2b0] sm:$0xff]
      %v273 = vld [vmem:[%s174 + $0x2b8] sm:$0xff]
      %v274 = vld [vmem:[%s174 + $0x2c0] sm:$0xff]
      %v275 = vld [vmem:[%s174 + $0x2c8] sm:$0xff]
      %v276 = vld [vmem:[%s174 + $0x2d0] sm:$0xff]
      %v277 = vld [vmem:[%s174 + $0x2d8] sm:$0xff]
      %v278 = vld [vmem:[%s174 + $0x2e0] sm:$0xff]
      %v279 = vld [vmem:[%s174 + $0x2e8] sm:$0xff]
      %v280 = vld [vmem:[%s174 + $0x2f0] sm:$0xff]
      %v281 = vld [vmem:[%s174 + $0x2f8] sm:$0xff]
      %v282 = vld [vmem:[%s174 + $0x300] sm:$0xff]
      %v283 = vld [vmem:[%s174 + $0x308] sm:$0xff]
      %v284 = vld [vmem:[%s174 + $0x310] sm:$0xff]
      %v285 = vld [vmem:[%s174 + $0x318] sm:$0xff]
      %v286 = vld [vmem:[%s174 + $0x320] sm:$0xff]
      %v287 = vld [vmem:[%s174 + $0x328] sm:$0xff]
      %v288 = vld [vmem:[%s174 + $0x330] sm:$0xff]
      %v289 = vld [vmem:[%s174 + $0x338] sm:$0xff]
      %v290 = vld [vmem:[%s174 + $0x340] sm:$0xff]
      %v291 = vld [vmem:[%s174 + $0x348] sm:$0xff]
      %v292 = vld [vmem:[%s174 + $0x350] sm:$0xff]
      %v293 = vld [vmem:[%s174 + $0x358] sm:$0xff]
      %v294 = vld [vmem:[%s174 + $0x360] sm:$0xff]
      %v295 = vld [vmem:[%s174 + $0x368] sm:$0xff]
      %v296 = vld [vmem:[%s174 + $0x370] sm:$0xff]
      %v297 = vld [vmem:[%s174 + $0x378] sm:$0xff]
      %v298 = vld [vmem:[%s174 + $0x380] sm:$0xff]
      %v299 = vld [vmem:[%s174 + $0x388] sm:$0xff]
      %v300 = vld [vmem:[%s174 + $0x390] sm:$0xff]
      %v301 = vld [vmem:[%s174 + $0x398] sm:$0xff]
      %v302 = vld [vmem:[%s174 + $0x3a0] sm:$0xff]
      %v303 = vld [vmem:[%s174 + $0x3a8] sm:$0xff]
      %v304 = vld [vmem:[%s174 + $0x3b0] sm:$0xff]
      %v305 = vld [vmem:[%s174 + $0x3b8] sm:$0xff]
      %v306 = vld [vmem:[%s174 + $0x3c0] sm:$0xff]
      %v307 = vld [vmem:[%s174 + $0x3c8] sm:$0xff]
      %v308 = vld [vmem:[%s174 + $0x3d0] sm:$0xff]
      %v309 = vld [vmem:[%s174 + $0x3d8] sm:$0xff]
      %v310 = vld [vmem:[%s174 + $0x3e0] sm:$0xff]
      %v311 = vld [vmem:[%s174 + $0x3e8] sm:$0xff]
      %v312 = vld [vmem:[%s174 + $0x3f0] sm:$0xff]
      %v313 = vld [vmem:[%s174 + $0x3f8] sm:$0xff]
      %v314 = vld [vmem:[%s174 + $0x400] sm:$0xff]
      %v315 = vld [vmem:[%s174 + $0x408] sm:$0xff]
      %v316 = vld [vmem:[%s174 + $0x410] sm:$0xff]
      %v317 = vld [vmem:[%s174 + $0x418] sm:$0xff]
      %v318 = vld [vmem:[%s174 + $0x420] sm:$0xff]
      %v319 = vld [vmem:[%s174 + $0x428] sm:$0xff]
      %v320 = vld [vmem:[%s174 + $0x430] sm:$0xff]
      %v321 = vld [vmem:[%s174 + $0x438] sm:$0xff]
      %v322 = vld [vmem:[%s174 + $0x440] sm:$0xff]
      %v323 = vld [vmem:[%s174 + $0x448] sm:$0xff]
      %v324 = vld [vmem:[%s174 + $0x450] sm:$0xff]
      %v325 = vld [vmem:[%s174 + $0x458] sm:$0xff]
      %v326 = vld [vmem:[%s174 + $0x460] sm:$0xff]
      %v327 = vld [vmem:[%s174 + $0x468] sm:$0xff]
      %v328 = vld [vmem:[%s174 + $0x470] sm:$0xff]
      %v329 = vld [vmem:[%s174 + $0x478] sm:$0xff]
      %v330 = vld [vmem:[%s174 + $0x480] sm:$0xff]
      %v331 = vld [vmem:[%s174 + $0x488] sm:$0xff]
      %v332 = vld [vmem:[%s174 + $0x490] sm:$0xff]
      %v333 = vld [vmem:[%s174 + $0x498] sm:$0xff]
      %v334 = vld [vmem:[%s174 + $0x4a0] sm:$0xff]
      %v335 = vld [vmem:[%s174 + $0x4a8] sm:$0xff]
      %v336 = vld [vmem:[%s174 + $0x4b0] sm:$0xff]
      %v337 = vld [vmem:[%s174 + $0x4b8] sm:$0xff]
      %v338 = vld [vmem:[%s174 + $0x4c0] sm:$0xff]
      %v339 = vld [vmem:[%s174 + $0x4c8] sm:$0xff]
      %v340 = vld [vmem:[%s174 + $0x4d0] sm:$0xff]
      %v341 = vld [vmem:[%s174 + $0x4d8] sm:$0xff]
      %v342 = vld [vmem:[%s174 + $0x4e0] sm:$0xff]
      %v343 = vld [vmem:[%s174 + $0x4e8] sm:$0xff]
      %v344 = vld [vmem:[%s174 + $0x4f0] sm:$0xff]
      %v345 = vld [vmem:[%s174 + $0x4f8] sm:$0xff]
      %v346 = vld [vmem:[%s1] sm:$0xff]
      %v347 = vld [vmem:[%s1 + $0x8] sm:$0xff]
      %v348 = vld [vmem:[%s1 + $0x10] sm:$0xff]
      %v349 = vld [vmem:[%s1 + $0x18] sm:$0xff]
      %v350 = vld [vmem:[%s1 + $0x20] sm:$0xff]
      %v351 = vld [vmem:[%s1 + $0x28] sm:$0xff]
      %v352 = vld [vmem:[%s1 + $0x30] sm:$0xff]
      %v353 = vld [vmem:[%s1 + $0x38] sm:$0xff]
      %v354 = vld [vmem:[%s1 + $0x40] sm:$0xff]
      %v355 = vld [vmem:[%s1 + $0x48] sm:$0xff]
      %v356 = vld [vmem:[%s1 + $0x50] sm:$0xff]
      %v357 = vld [vmem:[%s1 + $0x58] sm:$0xff]
      %v358 = vld [vmem:[%s1 + $0x60] sm:$0xff]
      %v359 = vld [vmem:[%s1 + $0x68] sm:$0xff]
      %v360 = vld [vmem:[%s1 + $0x70] sm:$0xff]
      %v361 = vld [vmem:[%s1 + $0x78] sm:$0xff]
      %v362 = vld [vmem:[%s1 + $0x80] sm:$0xff]
      %v363 = vld [vmem:[%s1 + $0x88] sm:$0xff]
      %v364 = vld [vmem:[%s1 + $0x90] sm:$0xff]
      %v365 = vld [vmem:[%s1 + $0x98] sm:$0xff]
      %v366 = vld [vmem:[%s1 + $0xa0] sm:$0xff]
      %v367 = vld [vmem:[%s1 + $0xa8] sm:$0xff]
      %v368 = vld [vmem:[%s1 + $0xb0] sm:$0xff]
      %v369 = vld [vmem:[%s1 + $0xb8] sm:$0xff]
      %v370 = vld [vmem:[%s1 + $0xc0] sm:$0xff]
      %v371 = vld [vmem:[%s1 + $0xc8] sm:$0xff]
      %v372 = vld [vmem:[%s1 + $0xd0] sm:$0xff]
      %v373 = vld [vmem:[%s1 + $0xd8] sm:$0xff]
      %v374 = vld [vmem:[%s1 + $0xe0] sm:$0xff]
      %v375 = vld [vmem:[%s1 + $0xe8] sm:$0xff]
      %v376 = vld [vmem:[%s1 + $0xf0] sm:$0xff]
      %v377 = vld [vmem:[%s1 + $0xf8] sm:$0xff]
      %v378 = vld [vmem:[%s1 + $0x100] sm:$0xff]
      %v379 = vld [vmem:[%s1 + $0x108] sm:$0xff]
      %v380 = vld [vmem:[%s1 + $0x110] sm:$0xff]
      %v381 = vld [vmem:[%s1 + $0x118] sm:$0xff]
      %v382 = vld [vmem:[%s1 + $0x120] sm:$0xff]
      %v383 = vld [vmem:[%s1 + $0x128] sm:$0xff]
      %v384 = vld [vmem:[%s1 + $0x130] sm:$0xff]
      %v385 = vld [vmem:[%s1 + $0x138] sm:$0xff]
      %v386 = vld [vmem:[%s1 + $0x140] sm:$0xff]
      %v387 = vld [vmem:[%s1 + $0x148] sm:$0xff]
      %v388 = vld [vmem:[%s1 + $0x150] sm:$0xff]
      %v389 = vld [vmem:[%s1 + $0x158] sm:$0xff]
      %v390 = vld [vmem:[%s1 + $0x160] sm:$0xff]
      %v391 = vld [vmem:[%s1 + $0x168] sm:$0xff]
      %v392 = vld [vmem:[%s1 + $0x170] sm:$0xff]
      %v393 = vld [vmem:[%s1 + $0x178] sm:$0xff]
      %v394 = vld [vmem:[%s1 + $0x180] sm:$0xff]
      %v395 = vld [vmem:[%s1 + $0x188] sm:$0xff]
      %v396 = vld [vmem:[%s1 + $0x190] sm:$0xff]
      %v397 = vld [vmem:[%s1 + $0x198] sm:$0xff]
      %v398 = vld [vmem:[%s1 + $0x1a0] sm:$0xff]
      %v399 = vld [vmem:[%s1 + $0x1a8] sm:$0xff]
      %v400 = vld [vmem:[%s1 + $0x1b0] sm:$0xff]
      %v401 = vld [vmem:[%s1 + $0x1b8] sm:$0xff]
      %v402 = vld [vmem:[%s1 + $0x1c0] sm:$0xff]
      %v403 = vld [vmem:[%s1 + $0x1c8] sm:$0xff]
      %v404 = vld [vmem:[%s1 + $0x1d0] sm:$0xff]
      %v405 = vld [vmem:[%s1 + $0x1d8] sm:$0xff]
      %v406 = vld [vmem:[%s1 + $0x1e0] sm:$0xff]
      %v407 = vld [vmem:[%s1 + $0x1e8] sm:$0xff]
      %v408 = vld [vmem:[%s1 + $0x1f0] sm:$0xff]
      %v409 = vld [vmem:[%s1 + $0x1f8] sm:$0xff]
      %v410 = vld [vmem:[%s1 + $0x200] sm:$0xff]
      %v411 = vld [vmem:[%s1 + $0x208] sm:$0xff]
      %v412 = vld [vmem:[%s1 + $0x210] sm:$0xff]
      %v413 = vld [vmem:[%s1 + $0x218] sm:$0xff]
      %v414 = vld [vmem:[%s1 + $0x220] sm:$0xff]
      %v415 = vld [vmem:[%s1 + $0x228] sm:$0xff]
      %v416 = vld [vmem:[%s1 + $0x230] sm:$0xff]
      %v417 = vld [vmem:[%s1 + $0x238] sm:$0xff]
      %v418 = vld [vmem:[%s1 + $0x240] sm:$0xff]
      %v419 = vld [vmem:[%s1 + $0x248] sm:$0xff]
      %v420 = vld [vmem:[%s1 + $0x250] sm:$0xff]
      %v421 = vld [vmem:[%s1 + $0x258] sm:$0xff]
      %v422 = vld [vmem:[%s1 + $0x260] sm:$0xff]
      %v423 = vld [vmem:[%s1 + $0x268] sm:$0xff]
      %v424 = vld [vmem:[%s1 + $0x270] sm:$0xff]
      %v425 = vld [vmem:[%s1 + $0x278] sm:$0xff]
      %426 = vmatprep.subr.mxu0 0.0
      %427 = vmatpush1.msra.mxu0 %v346
      %428 = vmatprep.subr.mxu0 0.0
      %429 = vmatpush1.msra.mxu0 %v347
      %430 = vmatprep.subr.mxu0 0.0
      %431 = vmatpush1.msra.mxu0 %v348
      %432 = vmatprep.subr.mxu0 0.0
      %433 = vmatpush1.msra.mxu0 %v349
      %434 = vmatprep.subr.mxu0 0.0
      %435 = vmatpush1.msra.mxu0 %v350
      %436 = vmatprep.subr.mxu0 0.0
      %437 = vmatpush1.msra.mxu0 %v351
      %438 = vmatprep.subr.mxu0 0.0
      %439 = vmatpush1.msra.mxu0 %v352
      %440 = vmatprep.subr.mxu0 0.0
      %441 = vmatpush1.msra.mxu0 %v353
      %442 = vmatprep.subr.mxu0 0.0
      %443 = vmatpush1.msra.mxu0 %v354
      %444 = vmatprep.subr.mxu0 0.0
      %445 = vmatpush1.msra.mxu0 %v355
      %446 = vmatprep.subr.mxu0 0.0
      %447 = vmatpush1.msra.mxu0 %v356
      %448 = vmatprep.subr.mxu0 0.0
      %449 = vmatpush1.msra.mxu0 %v357
      %450 = vmatprep.subr.mxu0 0.0
      %451 = vmatpush1.msra.mxu0 %v358
      %452 = vmatprep.subr.mxu0 0.0
      %453 = vmatpush1.msra.mxu0 %v359
      %454 = vmatprep.subr.mxu0 0.0
      %455 = vmatpush1.msra.mxu0 %v360
      %456 = vmatprep.subr.mxu0 0.0
      %457 = vmatpush1.msra.mxu0 %v361
      %458 = vmatprep.subr.mxu0 0.0
      %459 = vmatpush1.msra.mxu0 %v362
      %460 = vmatprep.subr.mxu0 0.0
      %461 = vmatpush1.msra.mxu0 %v363
      %462 = vmatprep.subr.mxu0 0.0
      %463 = vmatpush1.msra.mxu0 %v364
      %464 = vmatprep.subr.mxu0 0.0
      %465 = vmatpush1.msra.mxu0 %v365
      %466 = vmatprep.subr.mxu0 0.0
      %467 = vmatpush1.msra.mxu0 %v366
      %468 = vmatprep.subr.mxu0 0.0
      %469 = vmatpush1.msra.mxu0 %v367
      %470 = vmatprep.subr.mxu0 0.0
      %471 = vmatpush1.msra.mxu0 %v368
      %472 = vmatprep.subr.mxu0 0.0
      %473 = vmatpush1.msra.mxu0 %v369
      %474 = vmatprep.subr.mxu0 0.0
      %475 = vmatpush1.msra.mxu0 %v370
      %476 = vmatprep.subr.mxu0 0.0
      %477 = vmatpush1.msra.mxu0 %v371
      %478 = vmatprep.subr.mxu0 0.0
      %479 = vmatpush1.msra.mxu0 %v372
      %480 = vmatprep.subr.mxu0 0.0
      %481 = vmatpush1.msra.mxu0 %v373
      %482 = vmatprep.subr.mxu0 0.0
      %483 = vmatpush1.msra.mxu0 %v374
      %484 = vmatprep.subr.mxu0 0.0
      %485 = vmatpush1.msra.mxu0 %v375
      %486 = vmatprep.subr.mxu0 0.0
      %487 = vmatpush1.msra.mxu0 %v376
      %488 = vmatprep.subr.mxu0 0.0
      %489 = vmatpush1.msra.mxu0 %v377
      %490 = vmatprep.mubr.f32.mxu0 %v187
      %491 = vmatmul.mubr.f32.gmra.mrb[0].mxu0 %v186
      %v492 = vpop.f32.mrb[0].mxu0
      %v493 = vadd.f32 0.0, %v492
      %v494 = vpop.f32.mrb[0].mxu0
      %495 = vmatprep.mubr.f32.mxu0 %v192
      %496 = vmatmul.mubr.f32.gmra.mrb[0].mxu0 %v191
      %v497 = vpop.f32.mrb[0].mxu0
      %v498 = vadd.f32 0.0, %v497
      %v499 = vpop.f32.mrb[0].mxu0
      %500 = vmatprep.mubr.f32.mxu0 %v197
      %501 = vmatmul.mubr.f32.gmra.mrb[0].mxu0 %v196
      %v502 = vpop.f32.mrb[0].mxu0
      %v503 = vadd.f32 0.0, %v502
      %v504 = vpop.f32.mrb[0].mxu0
      %505 = vmatprep.mubr.f32.mxu0 %v202
      %506 = vmatmul.mubr.f32.gmra.mrb[0].mxu0 %v201
      %v507 = vpop.f32.mrb[0].mxu0
      %v508 = vadd.f32 0.0, %v507
      %v509 = vpop.f32.mrb[0].mxu0
      %510 = vmatprep.mubr.f32.mxu0 %v207
      %511 = vmatmul.mubr.f32.gmra.mrb[0].mxu0 %v206
      %v512 = vpop.f32.mrb[0].mxu0
      %v513 = vadd.f32 0.0, %v512
      %v514 = vpop.f32.mrb[0].mxu0
      %515 = vmatprep.mubr.f32.mxu0 %v212
      %516 = vmatmul.mubr.f32.gmra.mrb[0].mxu0 %v211
      %v517 = vpop.f32.mrb[0].mxu0
      %v518 = vadd.f32 0.0, %v517
      %v519 = vpop.f32.mrb[0].mxu0
      %520 = vmatprep.mubr.f32.mxu0 %v217
      %521 = vmatmul.mubr.f32.gmra.mrb[0].mxu0 %v216
      %v522 = vpop.f32.mrb[0].mxu0
      %v523 = vadd.f32 0.0, %v522
      %v524 = vpop.f32.mrb[0].mxu0
      %525 = vmatprep.mubr.f32.mxu0 %v222
      %526 = vmatmul.mubr.f32.gmra.mrb[0].mxu0 %v221
      %v527 = vpop.f32.mrb[0].mxu0
      %v528 = vadd.f32 0.0, %v527
      %v529 = vpop.f32.mrb[0].mxu0
      %530 = vmatprep.mubr.f32.mxu0 %v227
      %531 = vmatmul.mubr.f32.gmra.mrb[0].mxu0 %v226
      %v532 = vpop.f32.mrb[0].mxu0
      %v533 = vadd.f32 0.0, %v532
      %v534 = vpop.f32.mrb[0].mxu0
      %535 = vmatprep.mubr.f32.mxu0 %v232
      %536 = vmatmul.mubr.f32.gmra.mrb[0].mxu0 %v231
      %v537 = vpop.f32.mrb[0].mxu0
      %v538 = vadd.f32 0.0, %v537
      %v539 = vpop.f32.mrb[0].mxu0
      %540 = vmatprep.mubr.f32.mxu0 %v237
      %541 = vmatmul.mubr.f32.gmra.mrb[0].mxu0 %v236
      %v542 = vpop.f32.mrb[0].mxu0
      %v543 = vadd.f32 0.0, %v542
      %v544 = vpop.f32.mrb[0].mxu0
      %545 = vmatprep.mubr.f32.mxu0 %v242
      %546 = vmatmul.mubr.f32.gmra.mrb[0].mxu0 %v241
      %v547 = vpop.f32.mrb[0].mxu0
      %v548 = vadd.f32 0.0, %v547
      %v549 = vpop.f32.mrb[0].mxu0
      %550 = vmatprep.mubr.f32.mxu0 %v247
      %551 = vmatmul.mubr.f32.gmra.mrb[0].mxu0 %v246
      %v552 = vpop.f32.mrb[0].mxu0
      %v553 = vadd.f32 0.0, %v552
      %v554 = vpop.f32.mrb[0].mxu0
      %555 = vmatprep.mubr.f32.mxu0 %v252
      %556 = vmatmul.mubr.f32.gmra.mrb[0].mxu0 %v251
      %v557 = vpop.f32.mrb[0].mxu0
      %v558 = vadd.f32 0.0, %v557
      %v559 = vpop.f32.mrb[0].mxu0
      %560 = vmatprep.mubr.f32.mxu0 %v257
      %561 = vmatmul.mubr.f32.gmra.mrb[0].mxu0 %v256
      %v562 = vpop.f32.mrb[0].mxu0
      %v563 = vadd.f32 0.0, %v562
      %v564 = vpop.f32.mrb[0].mxu0
      %565 = vmatprep.mubr.f32.mxu0 %v262
      %566 = vmatmul.mubr.f32.gmra.mrb[0].mxu0 %v261
      %v567 = vpop.f32.mrb[0].mxu0
      %v568 = vadd.f32 0.0, %v567
      %v569 = vpop.f32.mrb[0].mxu0
      %570 = vmatprep.mubr.f32.mxu0 %v267
      %571 = vmatmul.mubr.f32.gmra.mrb[0].mxu0 %v266
      %v572 = vpop.f32.mrb[0].mxu0
      %v573 = vadd.f32 0.0, %v572
      %v574 = vpop.f32.mrb[0].mxu0
      %575 = vmatprep.mubr.f32.mxu0 %v272
      %576 = vmatmul.mubr.f32.gmra.mrb[0].mxu0 %v271
      %v577 = vpop.f32.mrb[0].mxu0
      %v578 = vadd.f32 0.0, %v577
      %v579 = vpop.f32.mrb[0].mxu0
      %580 = vmatprep.mubr.f32.mxu0 %v277
      %581 = vmatmul.mubr.f32.gmra.mrb[0].mxu0 %v276
      %v582 = vpop.f32.mrb[0].mxu0
      %v583 = vadd.f32 0.0, %v582
      %v584 = vpop.f32.mrb[0].mxu0
      %585 = vmatprep.mubr.f32.mxu0 %v282
      %586 = vmatmul.mubr.f32.gmra.mrb[0].mxu0 %v281
      %v587 = vpop.f32.mrb[0].mxu0
      %v588 = vadd.f32 0.0, %v587
      %v589 = vpop.f32.mrb[0].mxu0
      %590 = vmatprep.mubr.f32.mxu0 %v287
      %591 = vmatmul.mubr.f32.gmra.mrb[0].mxu0 %v286
      %v592 = vpop.f32.mrb[0].mxu0
      %v593 = vadd.f32 0.0, %v592
      %v594 = vpop.f32.mrb[0].mxu0
      %595 = vmatprep.mubr.f32.mxu0 %v292
      %596 = vmatmul.mubr.f32.gmra.mrb[0].mxu0 %v291
      %v597 = vpop.f32.mrb[0].mxu0
      %v598 = vadd.f32 0.0, %v597
      %v599 = vpop.f32.mrb[0].mxu0
      %600 = vmatprep.mubr.f32.mxu0 %v297
      %601 = vmatmul.mubr.f32.gmra.mrb[0].mxu0 %v296
      %v602 = vpop.f32.mrb[0].mxu0
      %v603 = vadd.f32 0.0, %v602
      %v604 = vpop.f32.mrb[0].mxu0
      %605 = vmatprep.mubr.f32.mxu0 %v302
      %606 = vmatmul.mubr.f32.gmra.mrb[0].mxu0 %v301
      %v607 = vpop.f32.mrb[0].mxu0
      %v608 = vadd.f32 0.0, %v607
      %v609 = vpop.f32.mrb[0].mxu0
      %610 = vmatprep.mubr.f32.mxu0 %v307
      %611 = vmatmul.mubr.f32.gmra.mrb[0].mxu0 %v306
      %v612 = vpop.f32.mrb[0].mxu0
      %v613 = vadd.f32 0.0, %v612
      %v614 = vpop.f32.mrb[0].mxu0
      %615 = vmatprep.mubr.f32.mxu0 %v312
      %616 = vmatmul.mubr.f32.gmra.mrb[0].mxu0 %v311
      %v617 = vpop.f32.mrb[0].mxu0
      %v618 = vadd.f32 0.0, %v617
      %v619 = vpop.f32.mrb[0].mxu0
      %620 = vmatprep.mubr.f32.mxu0 %v317
      %621 = vmatmul.mubr.f32.gmra.mrb[0].mxu0 %v316
      %v622 = vpop.f32.mrb[0].mxu0
      %v623 = vadd.f32 0.0, %v622
      %v624 = vpop.f32.mrb[0].mxu0
      %625 = vmatprep.mubr.f32.mxu0 %v322
      %626 = vmatmul.mubr.f32.gmra.mrb[0].mxu0 %v321
      %v627 = vpop.f32.mrb[0].mxu0
      %v628 = vadd.f32 0.0, %v627
      %v629 = vpop.f32.mrb[0].mxu0
      %630 = vmatprep.mubr.f32.mxu0 %v327
      %631 = vmatmul.mubr.f32.gmra.mrb[0].mxu0 %v326
      %v632 = vpop.f32.mrb[0].mxu0
      %v633 = vadd.f32 0.0, %v632
      %v634 = vpop.f32.mrb[0].mxu0
      %635 = vmatprep.mubr.f32.mxu0 %v332
      %636 = vmatmul.mubr.f32.gmra.mrb[0].mxu0 %v331
      %v637 = vpop.f32.mrb[0].mxu0
      %v638 = vadd.f32 0.0, %v637
      %v639 = vpop.f32.mrb[0].mxu0
      %640 = vmatprep.mubr.f32.mxu0 %v337
      %641 = vmatmul.mubr.f32.gmra.mrb[0].mxu0 %v336
      %v642 = vpop.f32.mrb[0].mxu0
      %v643 = vadd.f32 0.0, %v642
      %v644 = vpop.f32.mrb[0].mxu0
      %645 = vmatprep.mubr.f32.mxu0 %v342
      %646 = vmatmul.mubr.f32.gmra.mrb[0].mxu0 %v341
      %v647 = vpop.f32.mrb[0].mxu0
      %v648 = vadd.f32 0.0, %v647
      %v649 = vpop.f32.mrb[0].mxu0
      %650 = vdwg.mxu0
      %651 = vmatprep.subr.mxu0 0.0
      %652 = vmatpush1.msra.mxu0 %v378
      %653 = vmatprep.subr.mxu0 0.0
      %654 = vmatpush1.msra.mxu0 %v379
      %655 = vmatprep.subr.mxu0 0.0
      %656 = vmatpush1.msra.mxu0 %v380
      %657 = vmatprep.subr.mxu0 0.0
      %658 = vmatpush1.msra.mxu0 %v381
      %659 = vmatprep.subr.mxu0 0.0
      %660 = vmatpush1.msra.mxu0 %v382
      %661 = vmatprep.subr.mxu0 0.0
      %662 = vmatpush1.msra.mxu0 %v383
      %663 = vmatprep.subr.mxu0 0.0
      %664 = vmatpush1.msra.mxu0 %v384
      %665 = vmatprep.subr.mxu0 0.0
      %666 = vmatpush1.msra.mxu0 %v385
      %667 = vmatprep.subr.mxu0 0.0
      %668 = vmatpush1.msra.mxu0 %v386
      %669 = vmatprep.subr.mxu0 0.0
      %670 = vmatpush1.msra.mxu0 %v387
      %671 = vmatprep.subr.mxu0 0.0
      %672 = vmatpush1.msra.mxu0 %v388
      %673 = vmatprep.subr.mxu0 0.0
      %674 = vmatpush1.msra.mxu0 %v389
      %675 = vmatprep.subr.mxu0 0.0
      %676 = vmatpush1.msra.mxu0 %v390
      %677 = vmatprep.subr.mxu0 0.0
      %678 = vmatpush1.msra.mxu0 %v391
      %679 = vmatprep.subr.mxu0 0.0
      %680 = vmatpush1.msra.mxu0 %v392
      %681 = vmatprep.subr.mxu0 0.0
      %682 = vmatpush1.msra.mxu0 %v393
      %683 = vmatprep.subr.mxu0 0.0
      %684 = vmatpush1.msra.mxu0 %v394
      %685 = vmatprep.subr.mxu0 0.0
      %686 = vmatpush1.msra.mxu0 %v395
      %687 = vmatprep.subr.mxu0 0.0
      %688 = vmatpush1.msra.mxu0 %v396
      %689 = vmatprep.subr.mxu0 0.0
      %690 = vmatpush1.msra.mxu0 %v397
      %691 = vmatprep.subr.mxu0 0.0
      %692 = vmatpush1.msra.mxu0 %v398
      %693 = vmatprep.subr.mxu0 0.0
      %694 = vmatpush1.msra.mxu0 %v399
      %695 = vmatprep.subr.mxu0 0.0
      %696 = vmatpush1.msra.mxu0 %v400
      %697 = vmatprep.subr.mxu0 0.0
      %698 = vmatpush1.msra.mxu0 %v401
      %699 = vmatprep.subr.mxu0 0.0
      %700 = vmatpush1.msra.mxu0 %v402
      %701 = vmatprep.subr.mxu0 0.0
      %702 = vmatpush1.msra.mxu0 %v403
      %703 = vmatprep.subr.mxu0 0.0
      %704 = vmatpush1.msra.mxu0 %v404
      %705 = vmatprep.subr.mxu0 0.0
      %706 = vmatpush1.msra.mxu0 %v405
      %707 = vmatprep.subr.mxu0 0.0
      %708 = vmatpush1.msra.mxu0 %v406
      %709 = vmatprep.subr.mxu0 0.0
      %710 = vmatpush1.msra.mxu0 %v407
      %711 = vmatprep.subr.mxu0 0.0
      %712 = vmatpush1.msra.mxu0 %v408
      %713 = vmatprep.subr.mxu0 0.0
      %714 = vmatpush1.msra.mxu0 %v409
      %715 = vmatprep.mubr.f32.mxu0 %v189
      %716 = vmatmul.mubr.f32.gmra.mrb[0].mxu0 %v188
      %v717 = vpop.f32.mrb[0].mxu0
      %v718 = vadd.f32 %v493, %v717
      %v719 = vpop.f32.mrb[0].mxu0
      %720 = vmatprep.mubr.f32.mxu0 %v194
      %721 = vmatmul.mubr.f32.gmra.mrb[0].mxu0 %v193
      %v722 = vpop.f32.mrb[0].mxu0
      %v723 = vadd.f32 %v498, %v722
      %v724 = vpop.f32.mrb[0].mxu0
      %725 = vmatprep.mubr.f32.mxu0 %v199
      %726 = vmatmul.mubr.f32.gmra.mrb[0].mxu0 %v198
      %v727 = vpop.f32.mrb[0].mxu0
      %v728 = vadd.f32 %v503, %v727
      %v729 = vpop.f32.mrb[0].mxu0
      %730 = vmatprep.mubr.f32.mxu0 %v204
      %731 = vmatmul.mubr.f32.gmra.mrb[0].mxu0 %v203
      %v732 = vpop.f32.mrb[0].mxu0
      %v733 = vadd.f32 %v508, %v732
      %v734 = vpop.f32.mrb[0].mxu0
      %735 = vmatprep.mubr.f32.mxu0 %v209
      %736 = vmatmul.mubr.f32.gmra.mrb[0].mxu0 %v208
      %v737 = vpop.f32.mrb[0].mxu0
      %v738 = vadd.f32 %v513, %v737
      %v739 = vpop.f32.mrb[0].mxu0
      %740 = vmatprep.mubr.f32.mxu0 %v214
      %741 = vmatmul.mubr.f32.gmra.mrb[0].mxu0 %v213
      %v742 = vpop.f32.mrb[0].mxu0
      %v743 = vadd.f32 %v518, %v742
      %v744 = vpop.f32.mrb[0].mxu0
      %745 = vmatprep.mubr.f32.mxu0 %v219
      %746 = vmatmul.mubr.f32.gmra.mrb[0].mxu0 %v218
      %v747 = vpop.f32.mrb[0].mxu0
      %v748 = vadd.f32 %v523, %v747
      %v749 = vpop.f32.mrb[0].mxu0
      %750 = vmatprep.mubr.f32.mxu0 %v224
      %751 = vmatmul.mubr.f32.gmra.mrb[0].mxu0 %v223
      %v752 = vpop.f32.mrb[0].mxu0
      %v753 = vadd.f32 %v528, %v752
      %v754 = vpop.f32.mrb[0].mxu0
      %755 = vmatprep.mubr.f32.mxu0 %v229
      %756 = vmatmul.mubr.f32.gmra.mrb[0].mxu0 %v228
      %v757 = vpop.f32.mrb[0].mxu0
      %v758 = vadd.f32 %v533, %v757
      %v759 = vpop.f32.mrb[0].mxu0
      %760 = vmatprep.mubr.f32.mxu0 %v234
      %761 = vmatmul.mubr.f32.gmra.mrb[0].mxu0 %v233
      %v762 = vpop.f32.mrb[0].mxu0
      %v763 = vadd.f32 %v538, %v762
      %v764 = vpop.f32.mrb[0].mxu0
      %765 = vmatprep.mubr.f32.mxu0 %v239
      %766 = vmatmul.mubr.f32.gmra.mrb[0].mxu0 %v238
      %v767 = vpop.f32.mrb[0].mxu0
      %v768 = vadd.f32 %v543, %v767
      %v769 = vpop.f32.mrb[0].mxu0
      %770 = vmatprep.mubr.f32.mxu0 %v244
      %771 = vmatmul.mubr.f32.gmra.mrb[0].mxu0 %v243
      %v772 = vpop.f32.mrb[0].mxu0
      %v773 = vadd.f32 %v548, %v772
      %v774 = vpop.f32.mrb[0].mxu0
      %775 = vmatprep.mubr.f32.mxu0 %v249
      %776 = vmatmul.mubr.f32.gmra.mrb[0].mxu0 %v248
      %v777 = vpop.f32.mrb[0].mxu0
      %v778 = vadd.f32 %v553, %v777
      %v779 = vpop.f32.mrb[0].mxu0
      %780 = vmatprep.mubr.f32.mxu0 %v254
      %781 = vmatmul.mubr.f32.gmra.mrb[0].mxu0 %v253
      %v782 = vpop.f32.mrb[0].mxu0
      %v783 = vadd.f32 %v558, %v782
      %v784 = vpop.f32.mrb[0].mxu0
      %785 = vmatprep.mubr.f32.mxu0 %v259
      %786 = vmatmul.mubr.f32.gmra.mrb[0].mxu0 %v258
      %v787 = vpop.f32.mrb[0].mxu0
      %v788 = vadd.f32 %v563, %v787
      %v789 = vpop.f32.mrb[0].mxu0
      %790 = vmatprep.mubr.f32.mxu0 %v264
      %791 = vmatmul.mubr.f32.gmra.mrb[0].mxu0 %v263
      %v792 = vpop.f32.mrb[0].mxu0
      %v793 = vadd.f32 %v568, %v792
      %v794 = vpop.f32.mrb[0].mxu0
      %795 = vmatprep.mubr.f32.mxu0 %v269
      %796 = vmatmul.mubr.f32.gmra.mrb[0].mxu0 %v268
      %v797 = vpop.f32.mrb[0].mxu0
      %v798 = vadd.f32 %v573, %v797
      %v799 = vpop.f32.mrb[0].mxu0
      %800 = vmatprep.mubr.f32.mxu0 %v274
      %801 = vmatmul.mubr.f32.gmra.mrb[0].mxu0 %v273
      %v802 = vpop.f32.mrb[0].mxu0
      %v803 = vadd.f32 %v578, %v802
      %v804 = vpop.f32.mrb[0].mxu0
      %805 = vmatprep.mubr.f32.mxu0 %v279
      %806 = vmatmul.mubr.f32.gmra.mrb[0].mxu0 %v278
      %v807 = vpop.f32.mrb[0].mxu0
      %v808 = vadd.f32 %v583, %v807
      %v809 = vpop.f32.mrb[0].mxu0
      %810 = vmatprep.mubr.f32.mxu0 %v284
      %811 = vmatmul.mubr.f32.gmra.mrb[0].mxu0 %v283
      %v812 = vpop.f32.mrb[0].mxu0
      %v813 = vadd.f32 %v588, %v812
      %v814 = vpop.f32.mrb[0].mxu0
      %815 = vmatprep.mubr.f32.mxu0 %v289
      %816 = vmatmul.mubr.f32.gmra.mrb[0].mxu0 %v288
      %v817 = vpop.f32.mrb[0].mxu0
      %v818 = vadd.f32 %v593, %v817
      %v819 = vpop.f32.mrb[0].mxu0
      %820 = vmatprep.mubr.f32.mxu0 %v294
      %821 = vmatmul.mubr.f32.gmra.mrb[0].mxu0 %v293
      %v822 = vpop.f32.mrb[0].mxu0
      %v823 = vadd.f32 %v598, %v822
      %v824 = vpop.f32.mrb[0].mxu0
      %825 = vmatprep.mubr.f32.mxu0 %v299
      %826 = vmatmul.mubr.f32.gmra.mrb[0].mxu0 %v298
      %v827 = vpop.f32.mrb[0].mxu0
      %v828 = vadd.f32 %v603, %v827
      %v829 = vpop.f32.mrb[0].mxu0
      %830 = vmatprep.mubr.f32.mxu0 %v304
      %831 = vmatmul.mubr.f32.gmra.mrb[0].mxu0 %v303
      %v832 = vpop.f32.mrb[0].mxu0
      %v833 = vadd.f32 %v608, %v832
      %v834 = vpop.f32.mrb[0].mxu0
      %835 = vmatprep.mubr.f32.mxu0 %v309
      %836 = vmatmul.mubr.f32.gmra.mrb[0].mxu0 %v308
      %v837 = vpop.f32.mrb[0].mxu0
      %v838 = vadd.f32 %v613, %v837
      %v839 = vpop.f32.mrb[0].mxu0
      %840 = vmatprep.mubr.f32.mxu0 %v314
      %841 = vmatmul.mubr.f32.gmra.mrb[0].mxu0 %v313
      %v842 = vpop.f32.mrb[0].mxu0
      %v843 = vadd.f32 %v618, %v842
      %v844 = vpop.f32.mrb[0].mxu0
      %845 = vmatprep.mubr.f32.mxu0 %v319
      %846 = vmatmul.mubr.f32.gmra.mrb[0].mxu0 %v318
      %v847 = vpop.f32.mrb[0].mxu0
      %v848 = vadd.f32 %v623, %v847
      %v849 = vpop.f32.mrb[0].mxu0
      %850 = vmatprep.mubr.f32.mxu0 %v324
      %851 = vmatmul.mubr.f32.gmra.mrb[0].mxu0 %v323
      %v852 = vpop.f32.mrb[0].mxu0
      %v853 = vadd.f32 %v628, %v852
      %v854 = vpop.f32.mrb[0].mxu0
      %855 = vmatprep.mubr.f32.mxu0 %v329
      %856 = vmatmul.mubr.f32.gmra.mrb[0].mxu0 %v328
      %v857 = vpop.f32.mrb[0].mxu0
      %v858 = vadd.f32 %v633, %v857
      %v859 = vpop.f32.mrb[0].mxu0
      %860 = vmatprep.mubr.f32.mxu0 %v334
      %861 = vmatmul.mubr.f32.gmra.mrb[0].mxu0 %v333
      %v862 = vpop.f32.mrb[0].mxu0
      %v863 = vadd.f32 %v638, %v862
      %v864 = vpop.f32.mrb[0].mxu0
      %865 = vmatprep.mubr.f32.mxu0 %v339
      %866 = vmatmul.mubr.f32.gmra.mrb[0].mxu0 %v338
      %v867 = vpop.f32.mrb[0].mxu0
      %v868 = vadd.f32 %v643, %v867
      %v869 = vpop.f32.mrb[0].mxu0
      %870 = vmatprep.mubr.f32.mxu0 %v344
      %871 = vmatmul.mubr.f32.gmra.mrb[0].mxu0 %v343
      %v872 = vpop.f32.mrb[0].mxu0
      %v873 = vadd.f32 %v648, %v872
      %v874 = vpop.f32.mrb[0].mxu0
      %875 = vdwg.mxu0
      %876 = vmatprep.subr.mxu0 0.0
      %877 = vmatpush1.msra.mxu0 %v410
      %878 = vmatprep.subr.mxu0 0.0
      %879 = vmatpush1.msra.mxu0 %v411
      %880 = vmatprep.subr.mxu0 0.0
      %881 = vmatpush1.msra.mxu0 %v412
      %882 = vmatprep.subr.mxu0 0.0
      %883 = vmatpush1.msra.mxu0 %v413
      %884 = vmatprep.subr.mxu0 0.0
      %885 = vmatpush1.msra.mxu0 %v414
      %886 = vmatprep.subr.mxu0 0.0
      %887 = vmatpush1.msra.mxu0 %v415
      %888 = vmatprep.subr.mxu0 0.0
      %889 = vmatpush1.msra.mxu0 %v416
      %890 = vmatprep.subr.mxu0 0.0
      %891 = vmatpush1.msra.mxu0 %v417
      %892 = vmatprep.subr.mxu0 0.0
      %893 = vmatpush1.msra.mxu0 %v418
      %894 = vmatprep.subr.mxu0 0.0
      %895 = vmatpush1.msra.mxu0 %v419
      %896 = vmatprep.subr.mxu0 0.0
      %897 = vmatpush1.msra.mxu0 %v420
      %898 = vmatprep.subr.mxu0 0.0
      %899 = vmatpush1.msra.mxu0 %v421
      %900 = vmatprep.subr.mxu0 0.0
      %901 = vmatpush1.msra.mxu0 %v422
      %902 = vmatprep.subr.mxu0 0.0
      %903 = vmatpush1.msra.mxu0 %v423
      %904 = vmatprep.subr.mxu0 0.0
      %905 = vmatpush1.msra.mxu0 %v424
      %906 = vmatprep.subr.mxu0 0.0
      %907 = vmatpush1.msra.mxu0 %v425
      %908 = vmatprep.subr.mxu0 0.0
      %909 = vmatpush1.msra.mxu0 0.0
      %910 = vmatprep.subr.mxu0 0.0
      %911 = vmatpush1.msra.mxu0 0.0
      %912 = vmatprep.subr.mxu0 0.0
      %913 = vmatpush1.msra.mxu0 0.0
      %914 = vmatprep.subr.mxu0 0.0
      %915 = vmatpush1.msra.mxu0 0.0
      %916 = vmatprep.subr.mxu0 0.0
      %917 = vmatpush1.msra.mxu0 0.0
      %918 = vmatprep.subr.mxu0 0.0
      %919 = vmatpush1.msra.mxu0 0.0
      %920 = vmatprep.subr.mxu0 0.0
      %921 = vmatpush1.msra.mxu0 0.0
      %922 = vmatprep.subr.mxu0 0.0
      %923 = vmatpush1.msra.mxu0 0.0
      %924 = vmatprep.subr.mxu0 0.0
      %925 = vmatpush1.msra.mxu0 0.0
      %926 = vmatprep.subr.mxu0 0.0
      %927 = vmatpush1.msra.mxu0 0.0
      %928 = vmatprep.subr.mxu0 0.0
      %929 = vmatpush1.msra.mxu0 0.0
      %930 = vmatprep.subr.mxu0 0.0
      %931 = vmatpush1.msra.mxu0 0.0
      %932 = vmatprep.subr.mxu0 0.0
      %933 = vmatpush1.msra.mxu0 0.0
      %934 = vmatprep.subr.mxu0 0.0
      %935 = vmatpush1.msra.mxu0 0.0
      %936 = vmatprep.subr.mxu0 0.0
      %937 = vmatpush1.msra.mxu0 0.0
      %938 = vmatprep.subr.mxu0 0.0
      %939 = vmatpush1.msra.mxu0 0.0
      %940 = vmatprep.mubr.f32.mxu0 0.0
      %941 = vmatmul.mubr.f32.gmra.mrb[0].mxu0 %v190
      %v942 = vpop.f32.mrb[0].mxu0
      %v943 = vadd.f32 %v718, %v942
      %v944 = vpop.f32.mrb[0].mxu0
      %945 = vmatprep.mubr.f32.mxu0 0.0
      %946 = vmatmul.mubr.f32.gmra.mrb[0].mxu0 %v195
      %v947 = vpop.f32.mrb[0].mxu0
      %v948 = vadd.f32 %v723, %v947
      %v949 = vpop.f32.mrb[0].mxu0
      %950 = vmatprep.mubr.f32.mxu0 0.0
      %951 = vmatmul.mubr.f32.gmra.mrb[0].mxu0 %v200
      %v952 = vpop.f32.mrb[0].mxu0
      %v953 = vadd.f32 %v728, %v952
      %v954 = vpop.f32.mrb[0].mxu0
      %955 = vmatprep.mubr.f32.mxu0 0.0
      %956 = vmatmul.mubr.f32.gmra.mrb[0].mxu0 %v205
      %v957 = vpop.f32.mrb[0].mxu0
      %v958 = vadd.f32 %v733, %v957
      %v959 = vpop.f32.mrb[0].mxu0
      %960 = vmatprep.mubr.f32.mxu0 0.0
      %961 = vmatmul.mubr.f32.gmra.mrb[0].mxu0 %v210
      %v962 = vpop.f32.mrb[0].mxu0
      %v963 = vadd.f32 %v738, %v962
      %v964 = vpop.f32.mrb[0].mxu0
      %965 = vmatprep.mubr.f32.mxu0 0.0
      %966 = vmatmul.mubr.f32.gmra.mrb[0].mxu0 %v215
      %v967 = vpop.f32.mrb[0].mxu0
      %v968 = vadd.f32 %v743, %v967
      %v969 = vpop.f32.mrb[0].mxu0
      %970 = vmatprep.mubr.f32.mxu0 0.0
      %971 = vmatmul.mubr.f32.gmra.mrb[0].mxu0 %v220
      %v972 = vpop.f32.mrb[0].mxu0
      %v973 = vadd.f32 %v748, %v972
      %v974 = vpop.f32.mrb[0].mxu0
      %975 = vmatprep.mubr.f32.mxu0 0.0
      %976 = vmatmul.mubr.f32.gmra.mrb[0].mxu0 %v225
      %v977 = vpop.f32.mrb[0].mxu0
      %v978 = vadd.f32 %v753, %v977
      %v979 = vpop.f32.mrb[0].mxu0
      %980 = vmatprep.mubr.f32.mxu0 0.0
      %981 = vmatmul.mubr.f32.gmra.mrb[0].mxu0 %v230
      %v982 = vpop.f32.mrb[0].mxu0
      %v983 = vadd.f32 %v758, %v982
      %v984 = vpop.f32.mrb[0].mxu0
      %985 = vmatprep.mubr.f32.mxu0 0.0
      %986 = vmatmul.mubr.f32.gmra.mrb[0].mxu0 %v235
      %v987 = vpop.f32.mrb[0].mxu0
      %v988 = vadd.f32 %v763, %v987
      %v989 = vpop.f32.mrb[0].mxu0
      %990 = vmatprep.mubr.f32.mxu0 0.0
      %991 = vmatmul.mubr.f32.gmra.mrb[0].mxu0 %v240
      %v992 = vpop.f32.mrb[0].mxu0
      %v993 = vadd.f32 %v768, %v992
      %v994 = vpop.f32.mrb[0].mxu0
      %995 = vmatprep.mubr.f32.mxu0 0.0
      %996 = vmatmul.mubr.f32.gmra.mrb[0].mxu0 %v245
      %v997 = vpop.f32.mrb[0].mxu0
      %v998 = vadd.f32 %v773, %v997
      %v999 = vpop.f32.mrb[0].mxu0
      %1000 = vmatprep.mubr.f32.mxu0 0.0
      %1001 = vmatmul.mubr.f32.gmra.mrb[0].mxu0 %v250
      %v1002 = vpop.f32.mrb[0].mxu0
      %v1003 = vadd.f32 %v778, %v1002
      %v1004 = vpop.f32.mrb[0].mxu0
      %1005 = vmatprep.mubr.f32.mxu0 0.0
      %1006 = vmatmul.mubr.f32.gmra.mrb[0].mxu0 %v255
      %v1007 = vpop.f32.mrb[0].mxu0
      %v1008 = vadd.f32 %v783, %v1007
      %v1009 = vpop.f32.mrb[0].mxu0
      %1010 = vmatprep.mubr.f32.mxu0 0.0
      %1011 = vmatmul.mubr.f32.gmra.mrb[0].mxu0 %v260
      %v1012 = vpop.f32.mrb[0].mxu0
      %v1013 = vadd.f32 %v788, %v1012
      %v1014 = vpop.f32.mrb[0].mxu0
      %1015 = vmatprep.mubr.f32.mxu0 0.0
      %1016 = vmatmul.mubr.f32.gmra.mrb[0].mxu0 %v265
      %v1017 = vpop.f32.mrb[0].mxu0
      %v1018 = vadd.f32 %v793, %v1017
      %v1019 = vpop.f32.mrb[0].mxu0
      %1020 = vmatprep.mubr.f32.mxu0 0.0
      %1021 = vmatmul.mubr.f32.gmra.mrb[0].mxu0 %v270
      %v1022 = vpop.f32.mrb[0].mxu0
      %v1023 = vadd.f32 %v798, %v1022
      %v1024 = vpop.f32.mrb[0].mxu0
      %1025 = vmatprep.mubr.f32.mxu0 0.0
      %1026 = vmatmul.mubr.f32.gmra.mrb[0].mxu0 %v275
      %v1027 = vpop.f32.mrb[0].mxu0
      %v1028 = vadd.f32 %v803, %v1027
      %v1029 = vpop.f32.mrb[0].mxu0
      %1030 = vmatprep.mubr.f32.mxu0 0.0
      %1031 = vmatmul.mubr.f32.gmra.mrb[0].mxu0 %v280
      %v1032 = vpop.f32.mrb[0].mxu0
      %v1033 = vadd.f32 %v808, %v1032
      %v1034 = vpop.f32.mrb[0].mxu0
      %1035 = vmatprep.mubr.f32.mxu0 0.0
      %1036 = vmatmul.mubr.f32.gmra.mrb[0].mxu0 %v285
      %v1037 = vpop.f32.mrb[0].mxu0
      %v1038 = vadd.f32 %v813, %v1037
      %v1039 = vpop.f32.mrb[0].mxu0
      %1040 = vmatprep.mubr.f32.mxu0 0.0
      %1041 = vmatmul.mubr.f32.gmra.mrb[0].mxu0 %v290
      %v1042 = vpop.f32.mrb[0].mxu0
      %v1043 = vadd.f32 %v818, %v1042
      %v1044 = vpop.f32.mrb[0].mxu0
      %1045 = vmatprep.mubr.f32.mxu0 0.0
      %1046 = vmatmul.mubr.f32.gmra.mrb[0].mxu0 %v295
      %v1047 = vpop.f32.mrb[0].mxu0
      %v1048 = vadd.f32 %v823, %v1047
      %v1049 = vpop.f32.mrb[0].mxu0
      %1050 = vmatprep.mubr.f32.mxu0 0.0
      %1051 = vmatmul.mubr.f32.gmra.mrb[0].mxu0 %v300
      %v1052 = vpop.f32.mrb[0].mxu0
      %v1053 = vadd.f32 %v828, %v1052
      %v1054 = vpop.f32.mrb[0].mxu0
      %1055 = vmatprep.mubr.f32.mxu0 0.0
      %1056 = vmatmul.mubr.f32.gmra.mrb[0].mxu0 %v305
      %v1057 = vpop.f32.mrb[0].mxu0
      %v1058 = vadd.f32 %v833, %v1057
      %v1059 = vpop.f32.mrb[0].mxu0
      %1060 = vmatprep.mubr.f32.mxu0 0.0
      %1061 = vmatmul.mubr.f32.gmra.mrb[0].mxu0 %v310
      %v1062 = vpop.f32.mrb[0].mxu0
      %v1063 = vadd.f32 %v838, %v1062
      %v1064 = vpop.f32.mrb[0].mxu0
      %1065 = vmatprep.mubr.f32.mxu0 0.0
      %1066 = vmatmul.mubr.f32.gmra.mrb[0].mxu0 %v315
      %v1067 = vpop.f32.mrb[0].mxu0
      %v1068 = vadd.f32 %v843, %v1067
      %v1069 = vpop.f32.mrb[0].mxu0
      %1070 = vmatprep.mubr.f32.mxu0 0.0
      %1071 = vmatmul.mubr.f32.gmra.mrb[0].mxu0 %v320
      %v1072 = vpop.f32.mrb[0].mxu0
      %v1073 = vadd.f32 %v848, %v1072
      %v1074 = vpop.f32.mrb[0].mxu0
      %1075 = vmatprep.mubr.f32.mxu0 0.0
      %1076 = vmatmul.mubr.f32.gmra.mrb[0].mxu0 %v325
      %v1077 = vpop.f32.mrb[0].mxu0
      %v1078 = vadd.f32 %v853, %v1077
      %v1079 = vpop.f32.mrb[0].mxu0
      %1080 = vmatprep.mubr.f32.mxu0 0.0
      %1081 = vmatmul.mubr.f32.gmra.mrb[0].mxu0 %v330
      %v1082 = vpop.f32.mrb[0].mxu0
      %v1083 = vadd.f32 %v858, %v1082
      %v1084 = vpop.f32.mrb[0].mxu0
      %1085 = vmatprep.mubr.f32.mxu0 0.0
      %1086 = vmatmul.mubr.f32.gmra.mrb[0].mxu0 %v335
      %v1087 = vpop.f32.mrb[0].mxu0
      %v1088 = vadd.f32 %v863, %v1087
      %v1089 = vpop.f32.mrb[0].mxu0
      %1090 = vmatprep.mubr.f32.mxu0 0.0
      %1091 = vmatmul.mubr.f32.gmra.mrb[0].mxu0 %v340
      %v1092 = vpop.f32.mrb[0].mxu0
      %v1093 = vadd.f32 %v868, %v1092
      %v1094 = vpop.f32.mrb[0].mxu0
      %1095 = vmatprep.mubr.f32.mxu0 0.0
      %1096 = vmatmul.mubr.f32.gmra.mrb[0].mxu0 %v345
      %v1097 = vpop.f32.mrb[0].mxu0
      %v1098 = vadd.f32 %v873, %v1097
      %v1099 = vpop.f32.mrb[0].mxu0
      %1100 = vdwg.mxu0
      %v1101 = vmax.f32 %v943, %v948
      %v1102 = vrot.slane %v1101, 4
      %v1103 = vmax.f32 %v1101, %v1102
      %v1104 = vrot.slane %v1103, 2
      %v1105 = vmax.f32 %v1103, %v1104
      %v1106 = vrot.slane %v1105, 1
      %v1107 = vmax.f32 %v1105, %v1106
      %v1108 = vmax.f32 %v953, %v958
      %v1109 = vrot.slane %v1108, 4
      %v1110 = vmax.f32 %v1108, %v1109
      %v1111 = vrot.slane %v1110, 2
      %v1112 = vmax.f32 %v1110, %v1111
      %v1113 = vrot.slane %v1112, 1
      %v1114 = vmax.f32 %v1112, %v1113
      %v1115 = vmax.f32 %v963, %v968
      %v1116 = vrot.slane %v1115, 4
      %v1117 = vmax.f32 %v1115, %v1116
      %v1118 = vrot.slane %v1117, 2
      %v1119 = vmax.f32 %v1117, %v1118
      %v1120 = vrot.slane %v1119, 1
      %v1121 = vmax.f32 %v1119, %v1120
      %v1122 = vmax.f32 %v973, %v978
      %v1123 = vrot.slane %v1122, 4
      %v1124 = vmax.f32 %v1122, %v1123
      %v1125 = vrot.slane %v1124, 2
      %v1126 = vmax.f32 %v1124, %v1125
      %v1127 = vrot.slane %v1126, 1
      %v1128 = vmax.f32 %v1126, %v1127
      %v1129 = vmax.f32 %v983, %v988
      %v1130 = vrot.slane %v1129, 4
      %v1131 = vmax.f32 %v1129, %v1130
      %v1132 = vrot.slane %v1131, 2
      %v1133 = vmax.f32 %v1131, %v1132
      %v1134 = vrot.slane %v1133, 1
      %v1135 = vmax.f32 %v1133, %v1134
      %v1136 = vmax.f32 %v993, %v998
      %v1137 = vrot.slane %v1136, 4
      %v1138 = vmax.f32 %v1136, %v1137
      %v1139 = vrot.slane %v1138, 2
      %v1140 = vmax.f32 %v1138, %v1139
      %v1141 = vrot.slane %v1140, 1
      %v1142 = vmax.f32 %v1140, %v1141
      %v1143 = vmax.f32 %v1003, %v1008
      %v1144 = vrot.slane %v1143, 4
      %v1145 = vmax.f32 %v1143, %v1144
      %v1146 = vrot.slane %v1145, 2
      %v1147 = vmax.f32 %v1145, %v1146
      %v1148 = vrot.slane %v1147, 1
      %v1149 = vmax.f32 %v1147, %v1148
      %v1150 = vmax.f32 %v1013, %v1018
      %v1151 = vrot.slane %v1150, 4
      %v1152 = vmax.f32 %v1150, %v1151
      %v1153 = vrot.slane %v1152, 2
      %v1154 = vmax.f32 %v1152, %v1153
      %v1155 = vrot.slane %v1154, 1
      %v1156 = vmax.f32 %v1154, %v1155
      %v1157 = vmax.f32 %v1023, %v1028
      %v1158 = vrot.slane %v1157, 4
      %v1159 = vmax.f32 %v1157, %v1158
      %v1160 = vrot.slane %v1159, 2
      %v1161 = vmax.f32 %v1159, %v1160
      %v1162 = vrot.slane %v1161, 1
      %v1163 = vmax.f32 %v1161, %v1162
      %v1164 = vmax.f32 %v1033, %v1038
      %v1165 = vrot.slane %v1164, 4
      %v1166 = vmax.f32 %v1164, %v1165
      %v1167 = vrot.slane %v1166, 2
      %v1168 = vmax.f32 %v1166, %v1167
      %v1169 = vrot.slane %v1168, 1
      %v1170 = vmax.f32 %v1168, %v1169
      %v1171 = vmax.f32 %v1043, %v1048
      %v1172 = vrot.slane %v1171, 4
      %v1173 = vmax.f32 %v1171, %v1172
      %v1174 = vrot.slane %v1173, 2
      %v1175 = vmax.f32 %v1173, %v1174
      %v1176 = vrot.slane %v1175, 1
      %v1177 = vmax.f32 %v1175, %v1176
      %v1178 = vmax.f32 %v1053, %v1058
      %v1179 = vrot.slane %v1178, 4
      %v1180 = vmax.f32 %v1178, %v1179
      %v1181 = vrot.slane %v1180, 2
      %v1182 = vmax.f32 %v1180, %v1181
      %v1183 = vrot.slane %v1182, 1
      %v1184 = vmax.f32 %v1182, %v1183
      %v1185 = vmax.f32 %v1063, %v1068
      %v1186 = vrot.slane %v1185, 4
      %v1187 = vmax.f32 %v1185, %v1186
      %v1188 = vrot.slane %v1187, 2
      %v1189 = vmax.f32 %v1187, %v1188
      %v1190 = vrot.slane %v1189, 1
      %v1191 = vmax.f32 %v1189, %v1190
      %v1192 = vmax.f32 %v1073, %v1078
      %v1193 = vrot.slane %v1192, 4
      %v1194 = vmax.f32 %v1192, %v1193
      %v1195 = vrot.slane %v1194, 2
      %v1196 = vmax.f32 %v1194, %v1195
      %v1197 = vrot.slane %v1196, 1
      %v1198 = vmax.f32 %v1196, %v1197
      %v1199 = vmax.f32 %v1083, %v1088
      %v1200 = vrot.slane %v1199, 4
      %v1201 = vmax.f32 %v1199, %v1200
      %v1202 = vrot.slane %v1201, 2
      %v1203 = vmax.f32 %v1201, %v1202
      %v1204 = vrot.slane %v1203, 1
      %v1205 = vmax.f32 %v1203, %v1204
      %v1206 = vmax.f32 %v1093, %v1098
      %v1207 = vrot.slane %v1206, 4
      %v1208 = vmax.f32 %v1206, %v1207
      %v1209 = vrot.slane %v1208, 2
      %v1210 = vmax.f32 %v1208, %v1209
      %v1211 = vrot.slane %v1210, 1
      %v1212 = vmax.f32 %v1210, %v1211
      %v1213 = vmax.f32 %v1107, 0.0
      %v1214 = vmax.f32 %v1114, 0.0
      %v1215 = vmax.f32 %v1121, 0.0
      %v1216 = vmax.f32 %v1128, 0.0
      %v1217 = vmax.f32 %v1135, 0.0
      %v1218 = vmax.f32 %v1142, 0.0
      %v1219 = vmax.f32 %v1149, 0.0
      %v1220 = vmax.f32 %v1156, 0.0
      %v1221 = vmax.f32 %v1163, 0.0
      %v1222 = vmax.f32 %v1170, 0.0
      %v1223 = vmax.f32 %v1177, 0.0
      %v1224 = vmax.f32 %v1184, 0.0
      %v1225 = vmax.f32 %v1191, 0.0
      %v1226 = vmax.f32 %v1198, 0.0
      %v1227 = vmax.f32 %v1205, 0.0
      %v1228 = vmax.f32 %v1212, 0.0
      %vm1245 = vcmask 1041409
      %v1246 = vsel %vm1245, %v1214, %v1213
      %vm1247 = vcmask 1042434
      %v1248 = vsel %vm1247, %v1215, %v1246
      %vm1249 = vcmask 1043459
      %v1250 = vsel %vm1249, %v1216, %v1248
      %vm1251 = vcmask 1044484
      %v1252 = vsel %vm1251, %v1217, %v1250
      %vm1253 = vcmask 1045509
      %v1254 = vsel %vm1253, %v1218, %v1252
      %vm1255 = vcmask 1046534
      %v1256 = vsel %vm1255, %v1219, %v1254
      %vm1257 = vcmask 1047559
      %v1258 = vsel %vm1257, %v1220, %v1256
      %v1259 = vsel %vm1245, %v1222, %v1221
      %v1260 = vsel %vm1247, %v1223, %v1259
      %v1261 = vsel %vm1249, %v1224, %v1260
      %v1262 = vsel %vm1251, %v1225, %v1261
      %v1263 = vsel %vm1253, %v1226, %v1262
      %v1264 = vsel %vm1255, %v1227, %v1263
      %v1265 = vsel %vm1257, %v1228, %v1264
      %1268 = vst [vmem:[%s184] sm:$0xff] %v1258
      %1269 = vst [vmem:[%s184 + $0x8] sm:$0xff] %v1265
      %s1270 = smul.u32 2, %s18
      %p1271 = scmp.lt.s32.totalorder %s17, 1
      %s1272 = scalar_select %p1271, %s17, 1
      %p1273 = scmp.lt.s32.totalorder %s1270, 1
      %s1274 = scalar_select %p1273, %s1270, 1
      %s1275 = smul.addr %s1272, 2
      %s1276 = sadd.s32 %s1274, %s1275
      %s1277 = smul.addr %s1276, 8
      %s1278 = scalar_lea.vmem %s2, %s1277
      // Predicated region
      $region29: #{spec_encoder_forward.5} parent=27 // pred_check
        %p1279 = pneg %p94
      $region30: #{spec_encoder_forward.5} parent=27 // pred_check_branch
        %1281 = sbr.rel (%p1279) target = $region32
      $region31: #{spec_encoder_forward.5} parent=27 // pred_region
        %s1282 = smul.u32 2, %s18
      $region32: #{spec_encoder_forward.5} parent=27 // pred_fallthru
        _
    $region28: #{spec_encoder_forward.5} parent=5 // pred_fallthru
      _
    %p1283 = scmp.le.s32.totalorder 2, %s8
    // Predicated region
    $region33: #{spec_encoder_forward.5} parent=5 // pred_check
      %p1284 = pneg %p1283
    $region34: #{spec_encoder_forward.5} parent=5 // pred_check_branch
      %1286 = sbr.rel (%p1284) target = $region36
    $region35: #{spec_encoder_forward.5} parent=5 // pred_region
      %s1287 = ssub.s32 %s8, 2
      // Predicated region
      $region37: #{spec_encoder_forward.5} parent=35 // pred_check
        %p1288 = pneg %p100
      $region38: #{spec_encoder_forward.5} parent=35 // pred_check_branch
        %1290 = sbr.rel (%p1288) target = $region40
      $region39: #{spec_encoder_forward.5} parent=35 // pred_region
        %s1291 = smul.u32 2, %s20
        %p1292 = scmp.lt.s32.totalorder %s19, 1
        %s1293 = scalar_select %p1292, %s19, 1
        %p1294 = scmp.lt.s32.totalorder %s1291, 1
        %s1295 = scalar_select %p1294, %s1291, 1
        %s1296 = smul.addr %s1293, 2
        %s1297 = sadd.s32 %s1295, %s1296
        %s1298 = smul.addr %s1297, 8
        %s1299 = scalar_lea.vmem %s2, %s1298
      $region40: #{spec_encoder_forward.5} parent=35 // pred_fallthru
        _
    $region36: #{spec_encoder_forward.5} parent=5 // pred_fallthru
      _
  $region6: #{spec_encoder_forward.5} parent=0 // loop_footer
    %s12 = sadd.s32 1, %s8
  $region7: #{spec_encoder_forward.5} parent=0 // loop_footer_branch
    %7 = sbr.rel target = $region3
  $region8: #{spec_encoder_forward.5} parent=0 // loop_exit
    _

// kernel: spec_encoder_forward.6
$region0: #{spec_encoder_forward.6}
  #allocation0 [shape = 'u32[]', space=smem, size = 0x4, offset = 0x4, fixed_abs, tag = 'smem constant byte address 0x4 - core index']
  #allocation1 [shape = 'u32[144,128]{1,0:T(1,128)}', space=vmem, size = 0x12000, scoped, tag = 'internal scratch']
  %s0 = inlined_call_operand.vmem [shape: f32[2,16,1280], index: 0, kind: input, shape index: {}]
  %s1 = inlined_call_operand.vmem [shape: f32[1280,128], index: 1, kind: input, shape index: {}]
  %s2 = inlined_call_operand.vmem [shape: f32[2,1,128], index: 2, kind: output, shape index: {}]
  %s3 = sld [smem:[#allocation0]]
  $region41: #{spec_encoder_forward.6} parent=0
    _
  %s5 = ssub.s32 1, %s3
  %s6 = scalar_select 0, %s5, %s3
  loop: start=0, step=1, limit=4
  $region2: #{spec_encoder_forward.6} parent=0 // loop_pre_header
    _
  $region3: #{spec_encoder_forward.6} parent=0 // loop_header
    %s8 = sphi 0, %s12
    %p9 = scmp.ge.s32.totalorder %s8, 4
    %s15 = sphi 0, %s27
    %s16 = sphi 0, %s23
    %s17 = sphi 0, %s15
    %s18 = sphi 0, %s16
    %s19 = sphi 0, %s17
    %s20 = sphi 0, %s18
    %s32 = sphi 0, %s34
    %s35 = sphi 0, %s32
    %s36 = sphi 0, %s35
    %s52 = sphi 0, %s36
    %s56 = sphi 0, %s56
    %s58 = sphi 0, %s56
    %s59 = sphi 0, %s58
    %s73 = sphi 0, %s59
    %s81 = sphi 0, %s83
    %s84 = sphi 0, %s81
    %s85 = sphi 0, %s84
    %s101 = sphi 0, %s85
  $region4: #{spec_encoder_forward.6} parent=0 // loop_header_branch
    %11 = sbr.rel (%p9) target = $region8
  $region5: #{spec_encoder_forward.6} parent=0 // loop_body
    %s13 = ssub.s32 %s8, 1
    %s14 = ssub.s32 %s8, 2
    %s21 = sadd.s32 1, %s16
    %p22 = scmp.ge.s32.totalorder %s21, 1
    %s23 = scalar_select %p22, 0, %s21
    %s24 = sadd.s32 1, %s15
    %s25 = scalar_select %p22, %s24, %s15
    %p26 = scmp.ge.s32.totalorder %s25, 2
    %s27 = scalar_select %p26, 0, %s25
    %s28 = ssub.s32 %s15, %s27
    %s29 = ssub.s32 %s16, %s23
    %s30 = sor.u32 %s28, %s29
    %p31 = scmp.eq.s32.totalorder %s30, 0
    %s33 = sadd.s32 %s32, 1
    %s34 = scalar_select %p31, %s32, %s33
    %p37 = pneg %p31
    %p38 = scmp.eq.s32.totalorder %s8, 1
    %p39 = por %p37, %p38
    %p40 = scmp.ne.s32.totalorder %s32, %s35
    %p41 = scmp.eq.s32.totalorder %s8, 0
    %p42 = por %p40, %p41
    %p43 = scmp.ne.s32.totalorder %s32, %s35
    %p44 = scmp.eq.s32.totalorder %s13, 1
    %p45 = por %p43, %p44
    %p46 = scmp.ne.s32.totalorder %s35, %s36
    %p47 = scmp.eq.s32.totalorder %s13, 0
    %p48 = por %p46, %p47
    %p49 = scmp.ne.s32.totalorder %s35, %s36
    %p50 = scmp.eq.s32.totalorder %s14, 1
    %p51 = por %p49, %p50
    %p53 = scmp.ne.s32.totalorder %s36, %s52
    %p54 = scmp.eq.s32.totalorder %s14, 0
    %p55 = por %p53, %p54
    %s57 = sadd.s32 %s56, 1
    %p60 = scmp.eq.s32.totalorder %s8, 1
    %p61 = scmp.ne.s32.totalorder %s56, %s58
    %p62 = scmp.eq.s32.totalorder %s8, 0
    %p63 = por %p61, %p62
    %p64 = scmp.ne.s32.totalorder %s56, %s58
    %p65 = scmp.eq.s32.totalorder %s13, 1
    %p66 = por %p64, %p65
    %p67 = scmp.ne.s32.totalorder %s58, %s59
    %p68 = scmp.eq.s32.totalorder %s13, 0
    %p69 = por %p67, %p68
    %p70 = scmp.ne.s32.totalorder %s58, %s59
    %p71 = scmp.eq.s32.totalorder %s14, 1
    %p72 = por %p70, %p71
    %p74 = scmp.ne.s32.totalorder %s59, %s73
    %p75 = scmp.eq.s32.totalorder %s14, 0
    %p76 = por %p74, %p75
    %s77 = ssub.s32 %s15, %s27
    %s78 = ssub.s32 %s16, %s23
    %s79 = sor.u32 %s77, %s78
    %p80 = scmp.eq.s32.totalorder %s79, 0
    %s82 = sadd.s32 %s81, 1
    %s83 = scalar_select %p80, %s81, %s82
    %p86 = pneg %p80
    %p87 = scmp.eq.s32.totalorder %s8, 1
    %p88 = por %p86, %p87
    %p89 = scmp.ne.s32.totalorder %s81, %s84
    %p90 = scmp.eq.s32.totalorder %s8, 0
    %p91 = por %p89, %p90
    %p92 = scmp.ne.s32.totalorder %s81, %s84
    %p93 = scmp.eq.s32.totalorder %s13, 1
    %p94 = por %p92, %p93
    %p95 = scmp.ne.s32.totalorder %s84, %s85
    %p96 = scmp.eq.s32.totalorder %s13, 0
    %p97 = por %p95, %p96
    %p98 = scmp.ne.s32.totalorder %s84, %s85
    %p99 = scmp.eq.s32.totalorder %s14, 1
    %p100 = por %p98, %p99
    %p102 = scmp.ne.s32.totalorder %s85, %s101
    %p103 = scmp.eq.s32.totalorder %s14, 0
    %p104 = por %p102, %p103
    %p105 = scmp.le.s32.totalorder 1, %s8
    %p106 = scmp.lt.s32.totalorder %s8, 3
    %p107 = pnand %p105, %p106
    %p108 = pneg %p107
    // Predicated region
    $region9: #{spec_encoder_forward.6} parent=5 // pred_check
      _
    $region10: #{spec_encoder_forward.6} parent=5 // pred_check_branch
      %110 = sbr.rel (%p107) target = $region12
    $region11: #{spec_encoder_forward.6} parent=5 // pred_region
      %s111 = ssub.s32 %s8, 1
      // Predicated region
      $region13: #{spec_encoder_forward.6} parent=11 // pred_check
        %p112 = pneg %p69
      $region14: #{spec_encoder_forward.6} parent=11 // pred_check_branch
        %114 = sbr.rel (%p112) target = $region16
      $region15: #{spec_encoder_forward.6} parent=11 // pred_region
        _
      $region16: #{spec_encoder_forward.6} parent=11 // pred_fallthru
        _
    $region12: #{spec_encoder_forward.6} parent=5 // pred_fallthru
      _
    %p115 = scmp.lt.s32.totalorder %s8, 2
    // Predicated region
    $region17: #{spec_encoder_forward.6} parent=5 // pred_check
      %p116 = pneg %p115
    $region18: #{spec_encoder_forward.6} parent=5 // pred_check_branch
      %118 = sbr.rel (%p116) target = $region20
    $region19: #{spec_encoder_forward.6} parent=5 // pred_region
      // Predicated region
      $region21: #{spec_encoder_forward.6} parent=19 // pred_check
        %p119 = pneg %p42
      $region22: #{spec_encoder_forward.6} parent=19 // pred_check_branch
        %121 = sbr.rel (%p119) target = $region24
      $region23: #{spec_encoder_forward.6} parent=19 // pred_region
        %s122 = smul.u32 2, %s16
        %p123 = scmp.lt.s32.totalorder %s15, 1
        %s124 = scalar_select %p123, %s15, 1
        %p125 = scmp.lt.s32.totalorder %s122, 1
        %s126 = scalar_select %p125, %s122, 1
        %s127 = smul.addr %s126, 10
        %s128 = smul.addr %s124, 20
        %s129 = sadd.s32 %s127, %s128
        %s130 = smul.addr %s129, 8
        %s131 = scalar_lea.vmem %s0, %s130
        %s132 = smul.u32 2, %s16
      $region24: #{spec_encoder_forward.6} parent=19 // pred_fallthru
        _
    $region20: #{spec_encoder_forward.6} parent=5 // pred_fallthru
      _
    %p133 = scmp.le.s32.totalorder 1, %s8
    %p134 = scmp.lt.s32.totalorder %s8, 3
    %p135 = pnand %p133, %p134
    %p136 = pneg %p135
    // Predicated region
    $region25: #{spec_encoder_forward.6} parent=5 // pred_check
      _
    $region26: #{spec_encoder_forward.6} parent=5 // pred_check_branch
      %138 = sbr.rel (%p135) target = $region28
    $region27: #{spec_encoder_forward.6} parent=5 // pred_region
      %s139 = ssub.s32 %s8, 1
      %s140 = smul.u32 2, %s18
      %p141 = scmp.lt.s32.totalorder %s17, 1
      %s142 = scalar_select %p141, %s17, 1
      %p143 = scmp.lt.s32.totalorder %s140, 1
      %s144 = scalar_select %p143, %s140, 1
      %s145 = smul.addr %s144, 10
      %s146 = smul.addr %s142, 20
      %s147 = sadd.s32 %s145, %s146
      %s148 = smul.addr %s147, 8
      %s149 = scalar_lea.vmem %s0, %s148
      %p150 = pneg %p48
      %p151 = pneg %p45
      %p152 = pneg %p69
      %p153 = pneg %p66
      %p154 = pneg %p97
      %p155 = pneg %p94
      %p156 = scmp.lt.s32.totalorder %s17, 1
      %s157 = scalar_select %p156, %s17, 1
      %p158 = scmp.lt.s32.totalorder %s18, 0
      %s159 = scalar_select %p158, %s18, 0
      %s160 = sadd.s32 %s159, %s157
      %s161 = scalar_lea.vmem %s2, %s160
      %s162 = smul.u32 2, %s18
      %p163 = scmp.lt.s32.totalorder %s17, 1
      %s164 = scalar_select %p163, %s17, 1
      %p165 = scmp.lt.s32.totalorder %s162, 1
      %s166 = scalar_select %p165, %s162, 1
      %s167 = smul.addr %s166, 10
      %s168 = smul.addr %s164, 20
      %s169 = sadd.s32 %s167, %s168
      %s170 = smul.addr %s169, 8
      %s171 = scalar_lea.vmem %s0, %s170
      %s172 = smul.u32 2, %s18
      %p173 = scmp.lt.s32.totalorder %s17, 1
      %s174 = scalar_select %p173, %s17, 1
      %p175 = scmp.lt.s32.totalorder %s18, 0
      %s176 = scalar_select %p175, %s18, 0
      %s177 = sadd.s32 %s176, %s174
      %s178 = scalar_lea.vmem %s2, %s177
      %v179 = vld [vmem:[%s171] sm:$0xff]
      %v180 = vld [vmem:[%s171 + $0x8] sm:$0xff]
      %v181 = vld [vmem:[%s171 + $0x10] sm:$0xff]
      %v182 = vld [vmem:[%s171 + $0x18] sm:$0xff]
      %v183 = vld [vmem:[%s171 + $0x20] sm:$0xff]
      %v184 = vld [vmem:[%s171 + $0x28] sm:$0xff]
      %v185 = vld [vmem:[%s171 + $0x30] sm:$0xff]
      %v186 = vld [vmem:[%s171 + $0x38] sm:$0xff]
      %v187 = vld [vmem:[%s171 + $0x40] sm:$0xff]
      %v188 = vld [vmem:[%s171 + $0x48] sm:$0xff]
      %v189 = vld [vmem:[%s171 + $0x50] sm:$0xff]
      %v190 = vld [vmem:[%s171 + $0x58] sm:$0xff]
      %v191 = vld [vmem:[%s171 + $0x60] sm:$0xff]
      %v192 = vld [vmem:[%s171 + $0x68] sm:$0xff]
      %v193 = vld [vmem:[%s171 + $0x70] sm:$0xff]
      %v194 = vld [vmem:[%s171 + $0x78] sm:$0xff]
      %v195 = vld [vmem:[%s171 + $0x80] sm:$0xff]
      %v196 = vld [vmem:[%s171 + $0x88] sm:$0xff]
      %v197 = vld [vmem:[%s171 + $0x90] sm:$0xff]
      %v198 = vld [vmem:[%s171 + $0x98] sm:$0xff]
      %v199 = vld [vmem:[%s1] sm:$0xff]
      %v200 = vld [vmem:[%s1 + $0x8] sm:$0xff]
      %v201 = vld [vmem:[%s1 + $0x10] sm:$0xff]
      %v202 = vld [vmem:[%s1 + $0x18] sm:$0xff]
      %v203 = vld [vmem:[%s1 + $0x20] sm:$0xff]
      %v204 = vld [vmem:[%s1 + $0x28] sm:$0xff]
      %v205 = vld [vmem:[%s1 + $0x30] sm:$0xff]
      %v206 = vld [vmem:[%s1 + $0x38] sm:$0xff]
      %v207 = vld [vmem:[%s1 + $0x40] sm:$0xff]
      %v208 = vld [vmem:[%s1 + $0x48] sm:$0xff]
      %v209 = vld [vmem:[%s1 + $0x50] sm:$0xff]
      %v210 = vld [vmem:[%s1 + $0x58] sm:$0xff]
      %v211 = vld [vmem:[%s1 + $0x60] sm:$0xff]
      %v212 = vld [vmem:[%s1 + $0x68] sm:$0xff]
      %v213 = vld [vmem:[%s1 + $0x70] sm:$0xff]
      %v214 = vld [vmem:[%s1 + $0x78] sm:$0xff]
      %v215 = vld [vmem:[%s1 + $0x80] sm:$0xff]
      %v216 = vld [vmem:[%s1 + $0x88] sm:$0xff]
      %v217 = vld [vmem:[%s1 + $0x90] sm:$0xff]
      %v218 = vld [vmem:[%s1 + $0x98] sm:$0xff]
      %v219 = vld [vmem:[%s1 + $0xa0] sm:$0xff]
      %v220 = vld [vmem:[%s1 + $0xa8] sm:$0xff]
      %v221 = vld [vmem:[%s1 + $0xb0] sm:$0xff]
      %v222 = vld [vmem:[%s1 + $0xb8] sm:$0xff]
      %v223 = vld [vmem:[%s1 + $0xc0] sm:$0xff]
      %v224 = vld [vmem:[%s1 + $0xc8] sm:$0xff]
      %v225 = vld [vmem:[%s1 + $0xd0] sm:$0xff]
      %v226 = vld [vmem:[%s1 + $0xd8] sm:$0xff]
      %v227 = vld [vmem:[%s1 + $0xe0] sm:$0xff]
      %v228 = vld [vmem:[%s1 + $0xe8] sm:$0xff]
      %v229 = vld [vmem:[%s1 + $0xf0] sm:$0xff]
      %v230 = vld [vmem:[%s1 + $0xf8] sm:$0xff]
      %v231 = vld [vmem:[%s1 + $0x100] sm:$0xff]
      %v232 = vld [vmem:[%s1 + $0x108] sm:$0xff]
      %v233 = vld [vmem:[%s1 + $0x110] sm:$0xff]
      %v234 = vld [vmem:[%s1 + $0x118] sm:$0xff]
      %v235 = vld [vmem:[%s1 + $0x120] sm:$0xff]
      %v236 = vld [vmem:[%s1 + $0x128] sm:$0xff]
      %v237 = vld [vmem:[%s1 + $0x130] sm:$0xff]
      %v238 = vld [vmem:[%s1 + $0x138] sm:$0xff]
      %v239 = vld [vmem:[%s1 + $0x140] sm:$0xff]
      %v240 = vld [vmem:[%s1 + $0x148] sm:$0xff]
      %v241 = vld [vmem:[%s1 + $0x150] sm:$0xff]
      %v242 = vld [vmem:[%s1 + $0x158] sm:$0xff]
      %v243 = vld [vmem:[%s1 + $0x160] sm:$0xff]
      %v244 = vld [vmem:[%s1 + $0x168] sm:$0xff]
      %v245 = vld [vmem:[%s1 + $0x170] sm:$0xff]
      %v246 = vld [vmem:[%s1 + $0x178] sm:$0xff]
      %v247 = vld [vmem:[%s1 + $0x180] sm:$0xff]
      %v248 = vld [vmem:[%s1 + $0x188] sm:$0xff]
      %v249 = vld [vmem:[%s1 + $0x190] sm:$0xff]
      %v250 = vld [vmem:[%s1 + $0x198] sm:$0xff]
      %v251 = vld [vmem:[%s1 + $0x1a0] sm:$0xff]
      %v252 = vld [vmem:[%s1 + $0x1a8] sm:$0xff]
      %v253 = vld [vmem:[%s1 + $0x1b0] sm:$0xff]
      %v254 = vld [vmem:[%s1 + $0x1b8] sm:$0xff]
      %v255 = vld [vmem:[%s1 + $0x1c0] sm:$0xff]
      %v256 = vld [vmem:[%s1 + $0x1c8] sm:$0xff]
      %v257 = vld [vmem:[%s1 + $0x1d0] sm:$0xff]
      %v258 = vld [vmem:[%s1 + $0x1d8] sm:$0xff]
      %v259 = vld [vmem:[%s1 + $0x1e0] sm:$0xff]
      %v260 = vld [vmem:[%s1 + $0x1e8] sm:$0xff]
      %v261 = vld [vmem:[%s1 + $0x1f0] sm:$0xff]
      %v262 = vld [vmem:[%s1 + $0x1f8] sm:$0xff]
      %v263 = vld [vmem:[%s1 + $0x200] sm:$0xff]
      %v264 = vld [vmem:[%s1 + $0x208] sm:$0xff]
      %v265 = vld [vmem:[%s1 + $0x210] sm:$0xff]
      %v266 = vld [vmem:[%s1 + $0x218] sm:$0xff]
      %v267 = vld [vmem:[%s1 + $0x220] sm:$0xff]
      %v268 = vld [vmem:[%s1 + $0x228] sm:$0xff]
      %v269 = vld [vmem:[%s1 + $0x230] sm:$0xff]
      %v270 = vld [vmem:[%s1 + $0x238] sm:$0xff]
      %v271 = vld [vmem:[%s1 + $0x240] sm:$0xff]
      %v272 = vld [vmem:[%s1 + $0x248] sm:$0xff]
      %v273 = vld [vmem:[%s1 + $0x250] sm:$0xff]
      %v274 = vld [vmem:[%s1 + $0x258] sm:$0xff]
      %v275 = vld [vmem:[%s1 + $0x260] sm:$0xff]
      %v276 = vld [vmem:[%s1 + $0x268] sm:$0xff]
      %v277 = vld [vmem:[%s1 + $0x270] sm:$0xff]
      %v278 = vld [vmem:[%s1 + $0x278] sm:$0xff]
      %v279 = vld [vmem:[%s1 + $0x280] sm:$0xff]
      %v280 = vld [vmem:[%s1 + $0x288] sm:$0xff]
      %v281 = vld [vmem:[%s1 + $0x290] sm:$0xff]
      %v282 = vld [vmem:[%s1 + $0x298] sm:$0xff]
      %v283 = vld [vmem:[%s1 + $0x2a0] sm:$0xff]
      %v284 = vld [vmem:[%s1 + $0x2a8] sm:$0xff]
      %v285 = vld [vmem:[%s1 + $0x2b0] sm:$0xff]
      %v286 = vld [vmem:[%s1 + $0x2b8] sm:$0xff]
      %v287 = vld [vmem:[%s1 + $0x2c0] sm:$0xff]
      %v288 = vld [vmem:[%s1 + $0x2c8] sm:$0xff]
      %v289 = vld [vmem:[%s1 + $0x2d0] sm:$0xff]
      %v290 = vld [vmem:[%s1 + $0x2d8] sm:$0xff]
      %v291 = vld [vmem:[%s1 + $0x2e0] sm:$0xff]
      %v292 = vld [vmem:[%s1 + $0x2e8] sm:$0xff]
      %v293 = vld [vmem:[%s1 + $0x2f0] sm:$0xff]
      %v294 = vld [vmem:[%s1 + $0x2f8] sm:$0xff]
      %v295 = vld [vmem:[%s1 + $0x300] sm:$0xff]
      %v296 = vld [vmem:[%s1 + $0x308] sm:$0xff]
      %v297 = vld [vmem:[%s1 + $0x310] sm:$0xff]
      %v298 = vld [vmem:[%s1 + $0x318] sm:$0xff]
      %v299 = vld [vmem:[%s1 + $0x320] sm:$0xff]
      %v300 = vld [vmem:[%s1 + $0x328] sm:$0xff]
      %v301 = vld [vmem:[%s1 + $0x330] sm:$0xff]
      %v302 = vld [vmem:[%s1 + $0x338] sm:$0xff]
      %v303 = vld [vmem:[%s1 + $0x340] sm:$0xff]
      %v304 = vld [vmem:[%s1 + $0x348] sm:$0xff]
      %v305 = vld [vmem:[%s1 + $0x350] sm:$0xff]
      %v306 = vld [vmem:[%s1 + $0x358] sm:$0xff]
      %v307 = vld [vmem:[%s1 + $0x360] sm:$0xff]
      %v308 = vld [vmem:[%s1 + $0x368] sm:$0xff]
      %v309 = vld [vmem:[%s1 + $0x370] sm:$0xff]
      %v310 = vld [vmem:[%s1 + $0x378] sm:$0xff]
      %v311 = vld [vmem:[%s1 + $0x380] sm:$0xff]
      %v312 = vld [vmem:[%s1 + $0x388] sm:$0xff]
      %v313 = vld [vmem:[%s1 + $0x390] sm:$0xff]
      %v314 = vld [vmem:[%s1 + $0x398] sm:$0xff]
      %v315 = vld [vmem:[%s1 + $0x3a0] sm:$0xff]
      %v316 = vld [vmem:[%s1 + $0x3a8] sm:$0xff]
      %v317 = vld [vmem:[%s1 + $0x3b0] sm:$0xff]
      %v318 = vld [vmem:[%s1 + $0x3b8] sm:$0xff]
      %v319 = vld [vmem:[%s1 + $0x3c0] sm:$0xff]
      %v320 = vld [vmem:[%s1 + $0x3c8] sm:$0xff]
      %v321 = vld [vmem:[%s1 + $0x3d0] sm:$0xff]
      %v322 = vld [vmem:[%s1 + $0x3d8] sm:$0xff]
      %v323 = vld [vmem:[%s1 + $0x3e0] sm:$0xff]
      %v324 = vld [vmem:[%s1 + $0x3e8] sm:$0xff]
      %v325 = vld [vmem:[%s1 + $0x3f0] sm:$0xff]
      %v326 = vld [vmem:[%s1 + $0x3f8] sm:$0xff]
      %v327 = vld [vmem:[%s1 + $0x400] sm:$0xff]
      %v328 = vld [vmem:[%s1 + $0x408] sm:$0xff]
      %v329 = vld [vmem:[%s1 + $0x410] sm:$0xff]
      %v330 = vld [vmem:[%s1 + $0x418] sm:$0xff]
      %v331 = vld [vmem:[%s1 + $0x420] sm:$0xff]
      %v332 = vld [vmem:[%s1 + $0x428] sm:$0xff]
      %v333 = vld [vmem:[%s1 + $0x430] sm:$0xff]
      %v334 = vld [vmem:[%s1 + $0x438] sm:$0xff]
      %v335 = vld [vmem:[%s1 + $0x440] sm:$0xff]
      %v336 = vld [vmem:[%s1 + $0x448] sm:$0xff]
      %v337 = vld [vmem:[%s1 + $0x450] sm:$0xff]
      %v338 = vld [vmem:[%s1 + $0x458] sm:$0xff]
      %v339 = vld [vmem:[%s1 + $0x460] sm:$0xff]
      %v340 = vld [vmem:[%s1 + $0x468] sm:$0xff]
      %v341 = vld [vmem:[%s1 + $0x470] sm:$0xff]
      %v342 = vld [vmem:[%s1 + $0x478] sm:$0xff]
      %v343 = vld [vmem:[%s1 + $0x480] sm:$0xff]
      %v344 = vld [vmem:[%s1 + $0x488] sm:$0xff]
      %v345 = vld [vmem:[%s1 + $0x490] sm:$0xff]
      %v346 = vld [vmem:[%s1 + $0x498] sm:$0xff]
      %v347 = vld [vmem:[%s1 + $0x4a0] sm:$0xff]
      %v348 = vld [vmem:[%s1 + $0x4a8] sm:$0xff]
      %v349 = vld [vmem:[%s1 + $0x4b0] sm:$0xff]
      %v350 = vld [vmem:[%s1 + $0x4b8] sm:$0xff]
      %v351 = vld [vmem:[%s1 + $0x4c0] sm:$0xff]
      %v352 = vld [vmem:[%s1 + $0x4c8] sm:$0xff]
      %v353 = vld [vmem:[%s1 + $0x4d0] sm:$0xff]
      %v354 = vld [vmem:[%s1 + $0x4d8] sm:$0xff]
      %v355 = vld [vmem:[%s1 + $0x4e0] sm:$0xff]
      %v356 = vld [vmem:[%s1 + $0x4e8] sm:$0xff]
      %v357 = vld [vmem:[%s1 + $0x4f0] sm:$0xff]
      %v358 = vld [vmem:[%s1 + $0x4f8] sm:$0xff]
      %359 = vmatprep.subr.mxu0 0.0
      %360 = vmatpush1.msra.mxu0 %v199
      %361 = vmatprep.subr.mxu0 0.0
      %362 = vmatpush1.msra.mxu0 %v200
      %363 = vmatprep.subr.mxu0 0.0
      %364 = vmatpush1.msra.mxu0 %v201
      %365 = vmatprep.subr.mxu0 0.0
      %366 = vmatpush1.msra.mxu0 %v202
      %367 = vmatprep.subr.mxu0 0.0
      %368 = vmatpush1.msra.mxu0 %v203
      %369 = vmatprep.subr.mxu0 0.0
      %370 = vmatpush1.msra.mxu0 %v204
      %371 = vmatprep.subr.mxu0 0.0
      %372 = vmatpush1.msra.mxu0 %v205
      %373 = vmatprep.subr.mxu0 0.0
      %374 = vmatpush1.msra.mxu0 %v206
      %375 = vmatprep.subr.mxu0 0.0
      %376 = vmatpush1.msra.mxu0 %v207
      %377 = vmatprep.subr.mxu0 0.0
      %378 = vmatpush1.msra.mxu0 %v208
      %379 = vmatprep.subr.mxu0 0.0
      %380 = vmatpush1.msra.mxu0 %v209
      %381 = vmatprep.subr.mxu0 0.0
      %382 = vmatpush1.msra.mxu0 %v210
      %383 = vmatprep.subr.mxu0 0.0
      %384 = vmatpush1.msra.mxu0 %v211
      %385 = vmatprep.subr.mxu0 0.0
      %386 = vmatpush1.msra.mxu0 %v212
      %387 = vmatprep.subr.mxu0 0.0
      %388 = vmatpush1.msra.mxu0 %v213
      %389 = vmatprep.subr.mxu0 0.0
      %390 = vmatpush1.msra.mxu0 %v214
      %391 = vmatprep.subr.mxu0 0.0
      %392 = vmatpush1.msra.mxu0 %v215
      %393 = vmatprep.subr.mxu0 0.0
      %394 = vmatpush1.msra.mxu0 %v216
      %395 = vmatprep.subr.mxu0 0.0
      %396 = vmatpush1.msra.mxu0 %v217
      %397 = vmatprep.subr.mxu0 0.0
      %398 = vmatpush1.msra.mxu0 %v218
      %399 = vmatprep.subr.mxu0 0.0
      %400 = vmatpush1.msra.mxu0 %v219
      %401 = vmatprep.subr.mxu0 0.0
      %402 = vmatpush1.msra.mxu0 %v220
      %403 = vmatprep.subr.mxu0 0.0
      %404 = vmatpush1.msra.mxu0 %v221
      %405 = vmatprep.subr.mxu0 0.0
      %406 = vmatpush1.msra.mxu0 %v222
      %407 = vmatprep.subr.mxu0 0.0
      %408 = vmatpush1.msra.mxu0 %v223
      %409 = vmatprep.subr.mxu0 0.0
      %410 = vmatpush1.msra.mxu0 %v224
      %411 = vmatprep.subr.mxu0 0.0
      %412 = vmatpush1.msra.mxu0 %v225
      %413 = vmatprep.subr.mxu0 0.0
      %414 = vmatpush1.msra.mxu0 %v226
      %415 = vmatprep.subr.mxu0 0.0
      %416 = vmatpush1.msra.mxu0 %v227
      %417 = vmatprep.subr.mxu0 0.0
      %418 = vmatpush1.msra.mxu0 %v228
      %419 = vmatprep.subr.mxu0 0.0
      %420 = vmatpush1.msra.mxu0 %v229
      %421 = vmatprep.subr.mxu0 0.0
      %422 = vmatpush1.msra.mxu0 %v230
      %423 = vmatprep.mubr.f32.mxu0 %v180
      %424 = vmatmul.mubr.f32.gmra.mrb[0].mxu0 %v179
      %v425 = vpop.f32.mrb[0].mxu0
      %v426 = vadd.f32 0.0, %v425
      %v427 = vpop.f32.mrb[0].mxu0
      %428 = vmatprep.mubr.f32.mxu0 %v190
      %429 = vmatmul.mubr.f32.gmra.mrb[0].mxu0 %v189
      %v430 = vpop.f32.mrb[0].mxu0
      %v431 = vadd.f32 0.0, %v430
      %v432 = vpop.f32.mrb[0].mxu0
      %433 = vdwg.mxu0
      %434 = vmatprep.subr.mxu0 0.0
      %435 = vmatpush1.msra.mxu0 %v231
      %436 = vmatprep.subr.mxu0 0.0
      %437 = vmatpush1.msra.mxu0 %v232
      %438 = vmatprep.subr.mxu0 0.0
      %439 = vmatpush1.msra.mxu0 %v233
      %440 = vmatprep.subr.mxu0 0.0
      %441 = vmatpush1.msra.mxu0 %v234
      %442 = vmatprep.subr.mxu0 0.0
      %443 = vmatpush1.msra.mxu0 %v235
      %444 = vmatprep.subr.mxu0 0.0
      %445 = vmatpush1.msra.mxu0 %v236
      %446 = vmatprep.subr.mxu0 0.0
      %447 = vmatpush1.msra.mxu0 %v237
      %448 = vmatprep.subr.mxu0 0.0
      %449 = vmatpush1.msra.mxu0 %v238
      %450 = vmatprep.subr.mxu0 0.0
      %451 = vmatpush1.msra.mxu0 %v239
      %452 = vmatprep.subr.mxu0 0.0
      %453 = vmatpush1.msra.mxu0 %v240
      %454 = vmatprep.subr.mxu0 0.0
      %455 = vmatpush1.msra.mxu0 %v241
      %456 = vmatprep.subr.mxu0 0.0
      %457 = vmatpush1.msra.mxu0 %v242
      %458 = vmatprep.subr.mxu0 0.0
      %459 = vmatpush1.msra.mxu0 %v243
      %460 = vmatprep.subr.mxu0 0.0
      %461 = vmatpush1.msra.mxu0 %v244
      %462 = vmatprep.subr.mxu0 0.0
      %463 = vmatpush1.msra.mxu0 %v245
      %464 = vmatprep.subr.mxu0 0.0
      %465 = vmatpush1.msra.mxu0 %v246
      %466 = vmatprep.subr.mxu0 0.0
      %467 = vmatpush1.msra.mxu0 %v247
      %468 = vmatprep.subr.mxu0 0.0
      %469 = vmatpush1.msra.mxu0 %v248
      %470 = vmatprep.subr.mxu0 0.0
      %471 = vmatpush1.msra.mxu0 %v249
      %472 = vmatprep.subr.mxu0 0.0
      %473 = vmatpush1.msra.mxu0 %v250
      %474 = vmatprep.subr.mxu0 0.0
      %475 = vmatpush1.msra.mxu0 %v251
      %476 = vmatprep.subr.mxu0 0.0
      %477 = vmatpush1.msra.mxu0 %v252
      %478 = vmatprep.subr.mxu0 0.0
      %479 = vmatpush1.msra.mxu0 %v253
      %480 = vmatprep.subr.mxu0 0.0
      %481 = vmatpush1.msra.mxu0 %v254
      %482 = vmatprep.subr.mxu0 0.0
      %483 = vmatpush1.msra.mxu0 %v255
      %484 = vmatprep.subr.mxu0 0.0
      %485 = vmatpush1.msra.mxu0 %v256
      %486 = vmatprep.subr.mxu0 0.0
      %487 = vmatpush1.msra.mxu0 %v257
      %488 = vmatprep.subr.mxu0 0.0
      %489 = vmatpush1.msra.mxu0 %v258
      %490 = vmatprep.subr.mxu0 0.0
      %491 = vmatpush1.msra.mxu0 %v259
      %492 = vmatprep.subr.mxu0 0.0
      %493 = vmatpush1.msra.mxu0 %v260
      %494 = vmatprep.subr.mxu0 0.0
      %495 = vmatpush1.msra.mxu0 %v261
      %496 = vmatprep.subr.mxu0 0.0
      %497 = vmatpush1.msra.mxu0 %v262
      %498 = vmatprep.mubr.f32.mxu0 %v182
      %499 = vmatmul.mubr.f32.gmra.mrb[0].mxu0 %v181
      %v500 = vpop.f32.mrb[0].mxu0
      %v501 = vadd.f32 %v426, %v500
      %v502 = vpop.f32.mrb[0].mxu0
      %503 = vmatprep.mubr.f32.mxu0 %v192
      %504 = vmatmul.mubr.f32.gmra.mrb[0].mxu0 %v191
      %v505 = vpop.f32.mrb[0].mxu0
      %v506 = vadd.f32 %v431, %v505
      %v507 = vpop.f32.mrb[0].mxu0
      %508 = vdwg.mxu0
      %509 = vmatprep.subr.mxu0 0.0
      %510 = vmatpush1.msra.mxu0 %v263
      %511 = vmatprep.subr.mxu0 0.0
      %512 = vmatpush1.msra.mxu0 %v264
      %513 = vmatprep.subr.mxu0 0.0
      %514 = vmatpush1.msra.mxu0 %v265
      %515 = vmatprep.subr.mxu0 0.0
      %516 = vmatpush1.msra.mxu0 %v266
      %517 = vmatprep.subr.mxu0 0.0
      %518 = vmatpush1.msra.mxu0 %v267
      %519 = vmatprep.subr.mxu0 0.0
      %520 = vmatpush1.msra.mxu0 %v268
      %521 = vmatprep.subr.mxu0 0.0
      %522 = vmatpush1.msra.mxu0 %v269
      %523 = vmatprep.subr.mxu0 0.0
      %524 = vmatpush1.msra.mxu0 %v270
      %525 = vmatprep.subr.mxu0 0.0
      %526 = vmatpush1.msra.mxu0 %v271
      %527 = vmatprep.subr.mxu0 0.0
      %528 = vmatpush1.msra.mxu0 %v272
      %529 = vmatprep.subr.mxu0 0.0
      %530 = vmatpush1.msra.mxu0 %v273
      %531 = vmatprep.subr.mxu0 0.0
      %532 = vmatpush1.msra.mxu0 %v274
      %533 = vmatprep.subr.mxu0 0.0
      %534 = vmatpush1.msra.mxu0 %v275
      %535 = vmatprep.subr.mxu0 0.0
      %536 = vmatpush1.msra.mxu0 %v276
      %537 = vmatprep.subr.mxu0 0.0
      %538 = vmatpush1.msra.mxu0 %v277
      %539 = vmatprep.subr.mxu0 0.0
      %540 = vmatpush1.msra.mxu0 %v278
      %541 = vmatprep.subr.mxu0 0.0
      %542 = vmatpush1.msra.mxu0 %v279
      %543 = vmatprep.subr.mxu0 0.0
      %544 = vmatpush1.msra.mxu0 %v280
      %545 = vmatprep.subr.mxu0 0.0
      %546 = vmatpush1.msra.mxu0 %v281
      %547 = vmatprep.subr.mxu0 0.0
      %548 = vmatpush1.msra.mxu0 %v282
      %549 = vmatprep.subr.mxu0 0.0
      %550 = vmatpush1.msra.mxu0 %v283
      %551 = vmatprep.subr.mxu0 0.0
      %552 = vmatpush1.msra.mxu0 %v284
      %553 = vmatprep.subr.mxu0 0.0
      %554 = vmatpush1.msra.mxu0 %v285
      %555 = vmatprep.subr.mxu0 0.0
      %556 = vmatpush1.msra.mxu0 %v286
      %557 = vmatprep.subr.mxu0 0.0
      %558 = vmatpush1.msra.mxu0 %v287
      %559 = vmatprep.subr.mxu0 0.0
      %560 = vmatpush1.msra.mxu0 %v288
      %561 = vmatprep.subr.mxu0 0.0
      %562 = vmatpush1.msra.mxu0 %v289
      %563 = vmatprep.subr.mxu0 0.0
      %564 = vmatpush1.msra.mxu0 %v290
      %565 = vmatprep.subr.mxu0 0.0
      %566 = vmatpush1.msra.mxu0 %v291
      %567 = vmatprep.subr.mxu0 0.0
      %568 = vmatpush1.msra.mxu0 %v292
      %569 = vmatprep.subr.mxu0 0.0
      %570 = vmatpush1.msra.mxu0 %v293
      %571 = vmatprep.subr.mxu0 0.0
      %572 = vmatpush1.msra.mxu0 %v294
      %573 = vmatprep.mubr.f32.mxu0 %v184
      %574 = vmatmul.mubr.f32.gmra.mrb[0].mxu0 %v183
      %v575 = vpop.f32.mrb[0].mxu0
      %v576 = vadd.f32 %v501, %v575
      %v577 = vpop.f32.mrb[0].mxu0
      %578 = vmatprep.mubr.f32.mxu0 %v194
      %579 = vmatmul.mubr.f32.gmra.mrb[0].mxu0 %v193
      %v580 = vpop.f32.mrb[0].mxu0
      %v581 = vadd.f32 %v506, %v580
      %v582 = vpop.f32.mrb[0].mxu0
      %583 = vdwg.mxu0
      %584 = vmatprep.subr.mxu0 0.0
      %585 = vmatpush1.msra.mxu0 %v295
      %586 = vmatprep.subr.mxu0 0.0
      %587 = vmatpush1.msra.mxu0 %v296
      %588 = vmatprep.subr.mxu0 0.0
      %589 = vmatpush1.msra.mxu0 %v297
      %590 = vmatprep.subr.mxu0 0.0
      %591 = vmatpush1.msra.mxu0 %v298
      %592 = vmatprep.subr.mxu0 0.0
      %593 = vmatpush1.msra.mxu0 %v299
      %594 = vmatprep.subr.mxu0 0.0
      %595 = vmatpush1.msra.mxu0 %v300
      %596 = vmatprep.subr.mxu0 0.0
      %597 = vmatpush1.msra.mxu0 %v301
      %598 = vmatprep.subr.mxu0 0.0
      %599 = vmatpush1.msra.mxu0 %v302
      %600 = vmatprep.subr.mxu0 0.0
      %601 = vmatpush1.msra.mxu0 %v303
      %602 = vmatprep.subr.mxu0 0.0
      %603 = vmatpush1.msra.mxu0 %v304
      %604 = vmatprep.subr.mxu0 0.0
      %605 = vmatpush1.msra.mxu0 %v305
      %606 = vmatprep.subr.mxu0 0.0
      %607 = vmatpush1.msra.mxu0 %v306
      %608 = vmatprep.subr.mxu0 0.0
      %609 = vmatpush1.msra.mxu0 %v307
      %610 = vmatprep.subr.mxu0 0.0
      %611 = vmatpush1.msra.mxu0 %v308
      %612 = vmatprep.subr.mxu0 0.0
      %613 = vmatpush1.msra.mxu0 %v309
      %614 = vmatprep.subr.mxu0 0.0
      %615 = vmatpush1.msra.mxu0 %v310
      %616 = vmatprep.subr.mxu0 0.0
      %617 = vmatpush1.msra.mxu0 %v311
      %618 = vmatprep.subr.mxu0 0.0
      %619 = vmatpush1.msra.mxu0 %v312
      %620 = vmatprep.subr.mxu0 0.0
      %621 = vmatpush1.msra.mxu0 %v313
      %622 = vmatprep.subr.mxu0 0.0
      %623 = vmatpush1.msra.mxu0 %v314
      %624 = vmatprep.subr.mxu0 0.0
      %625 = vmatpush1.msra.mxu0 %v315
      %626 = vmatprep.subr.mxu0 0.0
      %627 = vmatpush1.msra.mxu0 %v316
      %628 = vmatprep.subr.mxu0 0.0
      %629 = vmatpush1.msra.mxu0 %v317
      %630 = vmatprep.subr.mxu0 0.0
      %631 = vmatpush1.msra.mxu0 %v318
      %632 = vmatprep.subr.mxu0 0.0
      %633 = vmatpush1.msra.mxu0 %v319
      %634 = vmatprep.subr.mxu0 0.0
      %635 = vmatpush1.msra.mxu0 %v320
      %636 = vmatprep.subr.mxu0 0.0
      %637 = vmatpush1.msra.mxu0 %v321
      %638 = vmatprep.subr.mxu0 0.0
      %639 = vmatpush1.msra.mxu0 %v322
      %640 = vmatprep.subr.mxu0 0.0
      %641 = vmatpush1.msra.mxu0 %v323
      %642 = vmatprep.subr.mxu0 0.0
      %643 = vmatpush1.msra.mxu0 %v324
      %644 = vmatprep.subr.mxu0 0.0
      %645 = vmatpush1.msra.mxu0 %v325
      %646 = vmatprep.subr.mxu0 0.0
      %647 = vmatpush1.msra.mxu0 %v326
      %648 = vmatprep.mubr.f32.mxu0 %v186
      %649 = vmatmul.mubr.f32.gmra.mrb[0].mxu0 %v185
      %v650 = vpop.f32.mrb[0].mxu0
      %v651 = vadd.f32 %v576, %v650
      %v652 = vpop.f32.mrb[0].mxu0
      %653 = vmatprep.mubr.f32.mxu0 %v196
      %654 = vmatmul.mubr.f32.gmra.mrb[0].mxu0 %v195
      %v655 = vpop.f32.mrb[0].mxu0
      %v656 = vadd.f32 %v581, %v655
      %v657 = vpop.f32.mrb[0].mxu0
      %658 = vdwg.mxu0
      %659 = vmatprep.subr.mxu0 0.0
      %660 = vmatpush1.msra.mxu0 %v327
      %661 = vmatprep.subr.mxu0 0.0
      %662 = vmatpush1.msra.mxu0 %v328
      %663 = vmatprep.subr.mxu0 0.0
      %664 = vmatpush1.msra.mxu0 %v329
      %665 = vmatprep.subr.mxu0 0.0
      %666 = vmatpush1.msra.mxu0 %v330
      %667 = vmatprep.subr.mxu0 0.0
      %668 = vmatpush1.msra.mxu0 %v331
      %669 = vmatprep.subr.mxu0 0.0
      %670 = vmatpush1.msra.mxu0 %v332
      %671 = vmatprep.subr.mxu0 0.0
      %672 = vmatpush1.msra.mxu0 %v333
      %673 = vmatprep.subr.mxu0 0.0
      %674 = vmatpush1.msra.mxu0 %v334
      %675 = vmatprep.subr.mxu0 0.0
      %676 = vmatpush1.msra.mxu0 %v335
      %677 = vmatprep.subr.mxu0 0.0
      %678 = vmatpush1.msra.mxu0 %v336
      %679 = vmatprep.subr.mxu0 0.0
      %680 = vmatpush1.msra.mxu0 %v337
      %681 = vmatprep.subr.mxu0 0.0
      %682 = vmatpush1.msra.mxu0 %v338
      %683 = vmatprep.subr.mxu0 0.0
      %684 = vmatpush1.msra.mxu0 %v339
      %685 = vmatprep.subr.mxu0 0.0
      %686 = vmatpush1.msra.mxu0 %v340
      %687 = vmatprep.subr.mxu0 0.0
      %688 = vmatpush1.msra.mxu0 %v341
      %689 = vmatprep.subr.mxu0 0.0
      %690 = vmatpush1.msra.mxu0 %v342
      %691 = vmatprep.subr.mxu0 0.0
      %692 = vmatpush1.msra.mxu0 %v343
      %693 = vmatprep.subr.mxu0 0.0
      %694 = vmatpush1.msra.mxu0 %v344
      %695 = vmatprep.subr.mxu0 0.0
      %696 = vmatpush1.msra.mxu0 %v345
      %697 = vmatprep.subr.mxu0 0.0
      %698 = vmatpush1.msra.mxu0 %v346
      %699 = vmatprep.subr.mxu0 0.0
      %700 = vmatpush1.msra.mxu0 %v347
      %701 = vmatprep.subr.mxu0 0.0
      %702 = vmatpush1.msra.mxu0 %v348
      %703 = vmatprep.subr.mxu0 0.0
      %704 = vmatpush1.msra.mxu0 %v349
      %705 = vmatprep.subr.mxu0 0.0
      %706 = vmatpush1.msra.mxu0 %v350
      %707 = vmatprep.subr.mxu0 0.0
      %708 = vmatpush1.msra.mxu0 %v351
      %709 = vmatprep.subr.mxu0 0.0
      %710 = vmatpush1.msra.mxu0 %v352
      %711 = vmatprep.subr.mxu0 0.0
      %712 = vmatpush1.msra.mxu0 %v353
      %713 = vmatprep.subr.mxu0 0.0
      %714 = vmatpush1.msra.mxu0 %v354
      %715 = vmatprep.subr.mxu0 0.0
      %716 = vmatpush1.msra.mxu0 %v355
      %717 = vmatprep.subr.mxu0 0.0
      %718 = vmatpush1.msra.mxu0 %v356
      %719 = vmatprep.subr.mxu0 0.0
      %720 = vmatpush1.msra.mxu0 %v357
      %721 = vmatprep.subr.mxu0 0.0
      %722 = vmatpush1.msra.mxu0 %v358
      %723 = vmatprep.mubr.f32.mxu0 %v188
      %724 = vmatmul.mubr.f32.gmra.mrb[0].mxu0 %v187
      %v725 = vpop.f32.mrb[0].mxu0
      %v726 = vadd.f32 %v651, %v725
      %v727 = vpop.f32.mrb[0].mxu0
      %728 = vmatprep.mubr.f32.mxu0 %v198
      %729 = vmatmul.mubr.f32.gmra.mrb[0].mxu0 %v197
      %v730 = vpop.f32.mrb[0].mxu0
      %v731 = vadd.f32 %v656, %v730
      %v732 = vpop.f32.mrb[0].mxu0
      %733 = vdwg.mxu0
      %v734 = vmax.f32 %v726, %v731
      %v735 = vrot.slane %v734, 4
      %v736 = vmax.f32 %v734, %v735
      %v737 = vrot.slane %v736, 2
      %v738 = vmax.f32 %v736, %v737
      %v739 = vrot.slane %v738, 1
      %v740 = vmax.f32 %v738, %v739
      %v741 = vmax.f32 %v740, 0.0
      %742 = vst [vmem:[%s178] sm:$0x1] %v741
      %p743 = scmp.lt.s32.totalorder %s17, 1
      %s744 = scalar_select %p743, %s17, 1
      %p745 = scmp.lt.s32.totalorder %s18, 0
      %s746 = scalar_select %p745, %s18, 0
      %s747 = sadd.s32 %s746, %s744
      %s748 = scalar_lea.vmem %s2, %s747
      // Predicated region
      $region29: #{spec_encoder_forward.6} parent=27 // pred_check
        %p749 = pneg %p94
      $region30: #{spec_encoder_forward.6} parent=27 // pred_check_branch
        %751 = sbr.rel (%p749) target = $region32
      $region31: #{spec_encoder_forward.6} parent=27 // pred_region
        _
      $region32: #{spec_encoder_forward.6} parent=27 // pred_fallthru
        _
    $region28: #{spec_encoder_forward.6} parent=5 // pred_fallthru
      _
    %p752 = scmp.le.s32.totalorder 2, %s8
    // Predicated region
    $region33: #{spec_encoder_forward.6} parent=5 // pred_check
      %p753 = pneg %p752
    $region34: #{spec_encoder_forward.6} parent=5 // pred_check_branch
      %755 = sbr.rel (%p753) target = $region36
    $region35: #{spec_encoder_forward.6} parent=5 // pred_region
      %s756 = ssub.s32 %s8, 2
      // Predicated region
      $region37: #{spec_encoder_forward.6} parent=35 // pred_check
        %p757 = pneg %p100
      $region38: #{spec_encoder_forward.6} parent=35 // pred_check_branch
        %759 = sbr.rel (%p757) target = $region40
      $region39: #{spec_encoder_forward.6} parent=35 // pred_region
        %p760 = scmp.lt.s32.totalorder %s19, 1
        %s761 = scalar_select %p760, %s19, 1
        %p762 = scmp.lt.s32.totalorder %s20, 0
        %s763 = scalar_select %p762, %s20, 0
        %s764 = sadd.s32 %s763, %s761
        %s765 = scalar_lea.vmem %s2, %s764
      $region40: #{spec_encoder_forward.6} parent=35 // pred_fallthru
        _
    $region36: #{spec_encoder_forward.6} parent=5 // pred_fallthru
      _
  $region6: #{spec_encoder_forward.6} parent=0 // loop_footer
    %s12 = sadd.s32 1, %s8
  $region7: #{spec_encoder_forward.6} parent=0 // loop_footer_branch
    %7 = sbr.rel target = $region3
  $region8: #{spec_encoder_forward.6} parent=0 // loop_exit
    _

// kernel: spec_encoder_forward.7
$region0: #{spec_encoder_forward.7}
  #allocation0 [shape = 'u32[]', space=smem, size = 0x4, offset = 0x4, fixed_abs, tag = 'smem constant byte address 0x4 - core index']
  #allocation1 [shape = 'u32[144,128]{1,0:T(1,128)}', space=vmem, size = 0x12000, scoped, tag = 'internal scratch']
  %s0 = inlined_call_operand.vmem [shape: f32[2,128], index: 0, kind: input, shape index: {}]
  %s1 = inlined_call_operand.vmem [shape: f32[128,512], index: 1, kind: input, shape index: {}]
  %s2 = inlined_call_operand.vmem [shape: f32[1,512], index: 2, kind: input, shape index: {}]
  %s3 = inlined_call_operand.vmem [shape: f32[512,256], index: 3, kind: input, shape index: {}]
  %s4 = inlined_call_operand.vmem [shape: f32[1,256], index: 4, kind: input, shape index: {}]
  %s5 = inlined_call_operand.vmem [shape: f32[256,128], index: 5, kind: input, shape index: {}]
  %s6 = inlined_call_operand.vmem [shape: f32[1,128], index: 6, kind: input, shape index: {}]
  %s7 = inlined_call_operand.vmem [shape: f32[128,64], index: 7, kind: input, shape index: {}]
  %s8 = inlined_call_operand.vmem [shape: f32[1,64], index: 8, kind: input, shape index: {}]
  %s9 = inlined_call_operand.vmem [shape: f32[2,32], index: 9, kind: input, shape index: {}]
  %s10 = inlined_call_operand.vmem [shape: f32[2,96], index: 10, kind: output, shape index: {}]
  %s11 = sld [smem:[#allocation0]]
  $region50: #{spec_encoder_forward.7} parent=0
    _
  %s13 = ssub.s32 1, %s11
  %s14 = scalar_select 0, %s13, %s11
  // Predicated region
  $region2: #{spec_encoder_forward.7} parent=0 // pred_check
    _
  $region3: #{spec_encoder_forward.7} parent=0 // pred_check_branch
    %16 = sbr.rel (0) target = $region5
  $region4: #{spec_encoder_forward.7} parent=0 // pred_region
    _
  $region5: #{spec_encoder_forward.7} parent=0 // pred_fallthru
    _
  // Predicated region
  $region6: #{spec_encoder_forward.7} parent=0 // pred_check
    _
  $region7: #{spec_encoder_forward.7} parent=0 // pred_check_branch
    %18 = sbr.rel (0) target = $region9
  $region8: #{spec_encoder_forward.7} parent=0 // pred_region
    _
  $region9: #{spec_encoder_forward.7} parent=0 // pred_fallthru
    _
  // Predicated region
  $region10: #{spec_encoder_forward.7} parent=0 // pred_check
    _
  $region11: #{spec_encoder_forward.7} parent=0 // pred_check_branch
    %20 = sbr.rel (0) target = $region13
  $region12: #{spec_encoder_forward.7} parent=0 // pred_region
    _
  $region13: #{spec_encoder_forward.7} parent=0 // pred_fallthru
    _
  // Predicated region
  $region14: #{spec_encoder_forward.7} parent=0 // pred_check
    _
  $region15: #{spec_encoder_forward.7} parent=0 // pred_check_branch
    %22 = sbr.rel (0) target = $region17
  $region16: #{spec_encoder_forward.7} parent=0 // pred_region
    _
  $region17: #{spec_encoder_forward.7} parent=0 // pred_fallthru
    _
  // Predicated region
  $region18: #{spec_encoder_forward.7} parent=0 // pred_check
    _
  $region19: #{spec_encoder_forward.7} parent=0 // pred_check_branch
    %24 = sbr.rel (0) target = $region21
  $region20: #{spec_encoder_forward.7} parent=0 // pred_region
    _
  $region21: #{spec_encoder_forward.7} parent=0 // pred_fallthru
    _
  // Predicated region
  $region22: #{spec_encoder_forward.7} parent=0 // pred_check
    _
  $region23: #{spec_encoder_forward.7} parent=0 // pred_check_branch
    %26 = sbr.rel (0) target = $region25
  $region24: #{spec_encoder_forward.7} parent=0 // pred_region
    _
  $region25: #{spec_encoder_forward.7} parent=0 // pred_fallthru
    _
  // Predicated region
  $region26: #{spec_encoder_forward.7} parent=0 // pred_check
    _
  $region27: #{spec_encoder_forward.7} parent=0 // pred_check_branch
    %28 = sbr.rel (0) target = $region29
  $region28: #{spec_encoder_forward.7} parent=0 // pred_region
    _
  $region29: #{spec_encoder_forward.7} parent=0 // pred_fallthru
    _
  // Predicated region
  $region30: #{spec_encoder_forward.7} parent=0 // pred_check
    _
  $region31: #{spec_encoder_forward.7} parent=0 // pred_check_branch
    %30 = sbr.rel (0) target = $region33
  $region32: #{spec_encoder_forward.7} parent=0 // pred_region
    _
  $region33: #{spec_encoder_forward.7} parent=0 // pred_fallthru
    _
  // Predicated region
  $region34: #{spec_encoder_forward.7} parent=0 // pred_check
    _
  $region35: #{spec_encoder_forward.7} parent=0 // pred_check_branch
    %32 = sbr.rel (0) target = $region37
  $region36: #{spec_encoder_forward.7} parent=0 // pred_region
    _
  $region37: #{spec_encoder_forward.7} parent=0 // pred_fallthru
    _
  // Predicated region
  $region38: #{spec_encoder_forward.7} parent=0 // pred_check
    _
  $region39: #{spec_encoder_forward.7} parent=0 // pred_check_branch
    %34 = sbr.rel (0) target = $region41
  $region40: #{spec_encoder_forward.7} parent=0 // pred_region
    _
  $region41: #{spec_encoder_forward.7} parent=0 // pred_fallthru
    _
  %v35 = vld [vmem:[%s0] sm:$0x3]
  %v36 = vld [vmem:[%s1] sm:$0xff]
  %v37 = vld [vmem:[%s1 + $0x8] sm:$0xff]
  %v38 = vld [vmem:[%s1 + $0x10] sm:$0xff]
  %v39 = vld [vmem:[%s1 + $0x18] sm:$0xff]
  %v40 = vld [vmem:[%s1 + $0x20] sm:$0xff]
  %v41 = vld [vmem:[%s1 + $0x28] sm:$0xff]
  %v42 = vld [vmem:[%s1 + $0x30] sm:$0xff]
  %v43 = vld [vmem:[%s1 + $0x38] sm:$0xff]
  %v44 = vld [vmem:[%s1 + $0x40] sm:$0xff]
  %v45 = vld [vmem:[%s1 + $0x48] sm:$0xff]
  %v46 = vld [vmem:[%s1 + $0x50] sm:$0xff]
  %v47 = vld [vmem:[%s1 + $0x58] sm:$0xff]
  %v48 = vld [vmem:[%s1 + $0x60] sm:$0xff]
  %v49 = vld [vmem:[%s1 + $0x68] sm:$0xff]
  %v50 = vld [vmem:[%s1 + $0x70] sm:$0xff]
  %v51 = vld [vmem:[%s1 + $0x78] sm:$0xff]
  %v52 = vld [vmem:[%s1 + $0x80] sm:$0xff]
  %v53 = vld [vmem:[%s1 + $0x88] sm:$0xff]
  %v54 = vld [vmem:[%s1 + $0x90] sm:$0xff]
  %v55 = vld [vmem:[%s1 + $0x98] sm:$0xff]
  %v56 = vld [vmem:[%s1 + $0xa0] sm:$0xff]
  %v57 = vld [vmem:[%s1 + $0xa8] sm:$0xff]
  %v58 = vld [vmem:[%s1 + $0xb0] sm:$0xff]
  %v59 = vld [vmem:[%s1 + $0xb8] sm:$0xff]
  %v60 = vld [vmem:[%s1 + $0xc0] sm:$0xff]
  %v61 = vld [vmem:[%s1 + $0xc8] sm:$0xff]
  %v62 = vld [vmem:[%s1 + $0xd0] sm:$0xff]
  %v63 = vld [vmem:[%s1 + $0xd8] sm:$0xff]
  %v64 = vld [vmem:[%s1 + $0xe0] sm:$0xff]
  %v65 = vld [vmem:[%s1 + $0xe8] sm:$0xff]
  %v66 = vld [vmem:[%s1 + $0xf0] sm:$0xff]
  %v67 = vld [vmem:[%s1 + $0xf8] sm:$0xff]
  %v68 = vld [vmem:[%s1 + $0x100] sm:$0xff]
  %v69 = vld [vmem:[%s1 + $0x108] sm:$0xff]
  %v70 = vld [vmem:[%s1 + $0x110] sm:$0xff]
  %v71 = vld [vmem:[%s1 + $0x118] sm:$0xff]
  %v72 = vld [vmem:[%s1 + $0x120] sm:$0xff]
  %v73 = vld [vmem:[%s1 + $0x128] sm:$0xff]
  %v74 = vld [vmem:[%s1 + $0x130] sm:$0xff]
  %v75 = vld [vmem:[%s1 + $0x138] sm:$0xff]
  %v76 = vld [vmem:[%s1 + $0x140] sm:$0xff]
  %v77 = vld [vmem:[%s1 + $0x148] sm:$0xff]
  %v78 = vld [vmem:[%s1 + $0x150] sm:$0xff]
  %v79 = vld [vmem:[%s1 + $0x158] sm:$0xff]
  %v80 = vld [vmem:[%s1 + $0x160] sm:$0xff]
  %v81 = vld [vmem:[%s1 + $0x168] sm:$0xff]
  %v82 = vld [vmem:[%s1 + $0x170] sm:$0xff]
  %v83 = vld [vmem:[%s1 + $0x178] sm:$0xff]
  %v84 = vld [vmem:[%s1 + $0x180] sm:$0xff]
  %v85 = vld [vmem:[%s1 + $0x188] sm:$0xff]
  %v86 = vld [vmem:[%s1 + $0x190] sm:$0xff]
  %v87 = vld [vmem:[%s1 + $0x198] sm:$0xff]
  %v88 = vld [vmem:[%s1 + $0x1a0] sm:$0xff]
  %v89 = vld [vmem:[%s1 + $0x1a8] sm:$0xff]
  %v90 = vld [vmem:[%s1 + $0x1b0] sm:$0xff]
  %v91 = vld [vmem:[%s1 + $0x1b8] sm:$0xff]
  %v92 = vld [vmem:[%s1 + $0x1c0] sm:$0xff]
  %v93 = vld [vmem:[%s1 + $0x1c8] sm:$0xff]
  %v94 = vld [vmem:[%s1 + $0x1d0] sm:$0xff]
  %v95 = vld [vmem:[%s1 + $0x1d8] sm:$0xff]
  %v96 = vld [vmem:[%s1 + $0x1e0] sm:$0xff]
  %v97 = vld [vmem:[%s1 + $0x1e8] sm:$0xff]
  %v98 = vld [vmem:[%s1 + $0x1f0] sm:$0xff]
  %v99 = vld [vmem:[%s1 + $0x1f8] sm:$0xff]
  %v100 = vld [vmem:[%s2] sm:$0xf]
  %v102 = vlaneseq
  %v103 = vshrl.u32 %v102, 7
  %v104 = vsub.s32 0, %v103
  %v105 = vrot.slane %v100, %v104
  %v106 = vlaneseq
  %v107 = vshrl.u32 %v106, 7
  %v108 = vsub.s32 1, %v107
  %v109 = vrot.slane %v100, %v108
  %v110 = vlaneseq
  %v111 = vshrl.u32 %v110, 7
  %v112 = vsub.s32 2, %v111
  %v113 = vrot.slane %v100, %v112
  %v114 = vlaneseq
  %v115 = vshrl.u32 %v114, 7
  %v116 = vsub.s32 3, %v115
  %v117 = vrot.slane %v100, %v116
  %122 = vmatprep.subr.mxu0 %v37
  %123 = vmatpush1.msra.mxu0 %v36
  %124 = vmatprep.subr.mxu0 %v41
  %125 = vmatpush1.msra.mxu0 %v40
  %126 = vmatprep.subr.mxu0 %v45
  %127 = vmatpush1.msra.mxu0 %v44
  %128 = vmatprep.subr.mxu0 %v49
  %129 = vmatpush1.msra.mxu0 %v48
  %130 = vmatprep.subr.mxu0 %v53
  %131 = vmatpush1.msra.mxu0 %v52
  %132 = vmatprep.subr.mxu0 %v57
  %133 = vmatpush1.msra.mxu0 %v56
  %134 = vmatprep.subr.mxu0 %v61
  %135 = vmatpush1.msra.mxu0 %v60
  %136 = vmatprep.subr.mxu0 %v65
  %137 = vmatpush1.msra.mxu0 %v64
  %138 = vmatprep.subr.mxu0 %v69
  %139 = vmatpush1.msra.mxu0 %v68
  %140 = vmatprep.subr.mxu0 %v73
  %141 = vmatpush1.msra.mxu0 %v72
  %142 = vmatprep.subr.mxu0 %v77
  %143 = vmatpush1.msra.mxu0 %v76
  %144 = vmatprep.subr.mxu0 %v81
  %145 = vmatpush1.msra.mxu0 %v80
  %146 = vmatprep.subr.mxu0 %v85
  %147 = vmatpush1.msra.mxu0 %v84
  %148 = vmatprep.subr.mxu0 %v89
  %149 = vmatpush1.msra.mxu0 %v88
  %150 = vmatprep.subr.mxu0 %v93
  %151 = vmatpush1.msra.mxu0 %v92
  %152 = vmatprep.subr.mxu0 %v97
  %153 = vmatpush1.msra.mxu0 %v96
  %154 = vmatprep.subr.mxu0 0.0
  %155 = vmatpush1.msra.mxu0 0.0
  %156 = vmatprep.subr.mxu0 0.0
  %157 = vmatpush1.msra.mxu0 0.0
  %158 = vmatprep.subr.mxu0 0.0
  %159 = vmatpush1.msra.mxu0 0.0
  %160 = vmatprep.subr.mxu0 0.0
  %161 = vmatpush1.msra.mxu0 0.0
  %162 = vmatprep.subr.mxu0 0.0
  %163 = vmatpush1.msra.mxu0 0.0
  %164 = vmatprep.subr.mxu0 0.0
  %165 = vmatpush1.msra.mxu0 0.0
  %166 = vmatprep.subr.mxu0 0.0
  %167 = vmatpush1.msra.mxu0 0.0
  %168 = vmatprep.subr.mxu0 0.0
  %169 = vmatpush1.msra.mxu0 0.0
  %170 = vmatprep.subr.mxu0 0.0
  %171 = vmatpush1.msra.mxu0 0.0
  %172 = vmatprep.subr.mxu0 0.0
  %173 = vmatpush1.msra.mxu0 0.0
  %174 = vmatprep.subr.mxu0 0.0
  %175 = vmatpush1.msra.mxu0 0.0
  %176 = vmatprep.subr.mxu0 0.0
  %177 = vmatpush1.msra.mxu0 0.0
  %178 = vmatprep.subr.mxu0 0.0
  %179 = vmatpush1.msra.mxu0 0.0
  %180 = vmatprep.subr.mxu0 0.0
  %181 = vmatpush1.msra.mxu0 0.0
  %182 = vmatprep.subr.mxu0 0.0
  %183 = vmatpush1.msra.mxu0 0.0
  %184 = vmatprep.subr.mxu0 0.0
  %185 = vmatpush1.msra.mxu0 0.0
  %186 = vmatprep.mubr.f32.mxu0 0.0
  %187 = vmatmul.mubr.f32.gmra.mrb[0].mxu0 %v35
  %v188 = vpop.f32.mrb[0].mxu0
  %v189 = vadd.f32 %v105, %v188
  %v190 = vpop.f32.mrb[0].mxu0
  %v191 = vadd.f32 %v109, %v190
  %192 = vdwg.mxu0
  %193 = vmatprep.subr.mxu0 %v39
  %194 = vmatpush1.msra.mxu0 %v38
  %195 = vmatprep.subr.mxu0 %v43
  %196 = vmatpush1.msra.mxu0 %v42
  %197 = vmatprep.subr.mxu0 %v47
  %198 = vmatpush1.msra.mxu0 %v46
  %199 = vmatprep.subr.mxu0 %v51
  %200 = vmatpush1.msra.mxu0 %v50
  %201 = vmatprep.subr.mxu0 %v55
  %202 = vmatpush1.msra.mxu0 %v54
  %203 = vmatprep.subr.mxu0 %v59
  %204 = vmatpush1.msra.mxu0 %v58
  %205 = vmatprep.subr.mxu0 %v63
  %206 = vmatpush1.msra.mxu0 %v62
  %207 = vmatprep.subr.mxu0 %v67
  %208 = vmatpush1.msra.mxu0 %v66
  %209 = vmatprep.subr.mxu0 %v71
  %210 = vmatpush1.msra.mxu0 %v70
  %211 = vmatprep.subr.mxu0 %v75
  %212 = vmatpush1.msra.mxu0 %v74
  %213 = vmatprep.subr.mxu0 %v79
  %214 = vmatpush1.msra.mxu0 %v78
  %215 = vmatprep.subr.mxu0 %v83
  %216 = vmatpush1.msra.mxu0 %v82
  %217 = vmatprep.subr.mxu0 %v87
  %218 = vmatpush1.msra.mxu0 %v86
  %219 = vmatprep.subr.mxu0 %v91
  %220 = vmatpush1.msra.mxu0 %v90
  %221 = vmatprep.subr.mxu0 %v95
  %222 = vmatpush1.msra.mxu0 %v94
  %223 = vmatprep.subr.mxu0 %v99
  %224 = vmatpush1.msra.mxu0 %v98
  %225 = vmatprep.subr.mxu0 0.0
  %226 = vmatpush1.msra.mxu0 0.0
  %227 = vmatprep.subr.mxu0 0.0
  %228 = vmatpush1.msra.mxu0 0.0
  %229 = vmatprep.subr.mxu0 0.0
  %230 = vmatpush1.msra.mxu0 0.0
  %231 = vmatprep.subr.mxu0 0.0
  %232 = vmatpush1.msra.mxu0 0.0
  %233 = vmatprep.subr.mxu0 0.0
  %234 = vmatpush1.msra.mxu0 0.0
  %235 = vmatprep.subr.mxu0 0.0
  %236 = vmatpush1.msra.mxu0 0.0
  %237 = vmatprep.subr.mxu0 0.0
  %238 = vmatpush1.msra.mxu0 0.0
  %239 = vmatprep.subr.mxu0 0.0
  %240 = vmatpush1.msra.mxu0 0.0
  %241 = vmatprep.subr.mxu0 0.0
  %242 = vmatpush1.msra.mxu0 0.0
  %243 = vmatprep.subr.mxu0 0.0
  %244 = vmatpush1.msra.mxu0 0.0
  %245 = vmatprep.subr.mxu0 0.0
  %246 = vmatpush1.msra.mxu0 0.0
  %247 = vmatprep.subr.mxu0 0.0
  %248 = vmatpush1.msra.mxu0 0.0
  %249 = vmatprep.subr.mxu0 0.0
  %250 = vmatpush1.msra.mxu0 0.0
  %251 = vmatprep.subr.mxu0 0.0
  %252 = vmatpush1.msra.mxu0 0.0
  %253 = vmatprep.subr.mxu0 0.0
  %254 = vmatpush1.msra.mxu0 0.0
  %255 = vmatprep.subr.mxu0 0.0
  %256 = vmatpush1.msra.mxu0 0.0
  %257 = vmatprep.mubr.f32.mxu0 0.0
  %258 = vmatmul.mubr.f32.gmra.mrb[0].mxu0 %v35
  %v259 = vpop.f32.mrb[0].mxu0
  %v260 = vadd.f32 %v113, %v259
  %v261 = vpop.f32.mrb[0].mxu0
  %v262 = vadd.f32 %v117, %v261
  %263 = vdwg.mxu0
  %v264 = vmax.f32 %v189, 0.0
  %v265 = vmax.f32 %v191, 0.0
  %v266 = vmax.f32 %v260, 0.0
  %v267 = vmax.f32 %v262, 0.0
  %v268 = vld [vmem:[%s3] sm:$0xff]
  %v269 = vld [vmem:[%s3 + $0x8] sm:$0xff]
  %v270 = vld [vmem:[%s3 + $0x10] sm:$0xff]
  %v271 = vld [vmem:[%s3 + $0x18] sm:$0xff]
  %v272 = vld [vmem:[%s3 + $0x20] sm:$0xff]
  %v273 = vld [vmem:[%s3 + $0x28] sm:$0xff]
  %v274 = vld [vmem:[%s3 + $0x30] sm:$0xff]
  %v275 = vld [vmem:[%s3 + $0x38] sm:$0xff]
  %v276 = vld [vmem:[%s3 + $0x40] sm:$0xff]
  %v277 = vld [vmem:[%s3 + $0x48] sm:$0xff]
  %v278 = vld [vmem:[%s3 + $0x50] sm:$0xff]
  %v279 = vld [vmem:[%s3 + $0x58] sm:$0xff]
  %v280 = vld [vmem:[%s3 + $0x60] sm:$0xff]
  %v281 = vld [vmem:[%s3 + $0x68] sm:$0xff]
  %v282 = vld [vmem:[%s3 + $0x70] sm:$0xff]
  %v283 = vld [vmem:[%s3 + $0x78] sm:$0xff]
  %v284 = vld [vmem:[%s3 + $0x80] sm:$0xff]
  %v285 = vld [vmem:[%s3 + $0x88] sm:$0xff]
  %v286 = vld [vmem:[%s3 + $0x90] sm:$0xff]
  %v287 = vld [vmem:[%s3 + $0x98] sm:$0xff]
  %v288 = vld [vmem:[%s3 + $0xa0] sm:$0xff]
  %v289 = vld [vmem:[%s3 + $0xa8] sm:$0xff]
  %v290 = vld [vmem:[%s3 + $0xb0] sm:$0xff]
  %v291 = vld [vmem:[%s3 + $0xb8] sm:$0xff]
  %v292 = vld [vmem:[%s3 + $0xc0] sm:$0xff]
  %v293 = vld [vmem:[%s3 + $0xc8] sm:$0xff]
  %v294 = vld [vmem:[%s3 + $0xd0] sm:$0xff]
  %v295 = vld [vmem:[%s3 + $0xd8] sm:$0xff]
  %v296 = vld [vmem:[%s3 + $0xe0] sm:$0xff]
  %v297 = vld [vmem:[%s3 + $0xe8] sm:$0xff]
  %v298 = vld [vmem:[%s3 + $0xf0] sm:$0xff]
  %v299 = vld [vmem:[%s3 + $0xf8] sm:$0xff]
  %v300 = vld [vmem:[%s3 + $0x100] sm:$0xff]
  %v301 = vld [vmem:[%s3 + $0x108] sm:$0xff]
  %v302 = vld [vmem:[%s3 + $0x110] sm:$0xff]
  %v303 = vld [vmem:[%s3 + $0x118] sm:$0xff]
  %v304 = vld [vmem:[%s3 + $0x120] sm:$0xff]
  %v305 = vld [vmem:[%s3 + $0x128] sm:$0xff]
  %v306 = vld [vmem:[%s3 + $0x130] sm:$0xff]
  %v307 = vld [vmem:[%s3 + $0x138] sm:$0xff]
  %v308 = vld [vmem:[%s3 + $0x140] sm:$0xff]
  %v309 = vld [vmem:[%s3 + $0x148] sm:$0xff]
  %v310 = vld [vmem:[%s3 + $0x150] sm:$0xff]
  %v311 = vld [vmem:[%s3 + $0x158] sm:$0xff]
  %v312 = vld [vmem:[%s3 + $0x160] sm:$0xff]
  %v313 = vld [vmem:[%s3 + $0x168] sm:$0xff]
  %v314 = vld [vmem:[%s3 + $0x170] sm:$0xff]
  %v315 = vld [vmem:[%s3 + $0x178] sm:$0xff]
  %v316 = vld [vmem:[%s3 + $0x180] sm:$0xff]
  %v317 = vld [vmem:[%s3 + $0x188] sm:$0xff]
  %v318 = vld [vmem:[%s3 + $0x190] sm:$0xff]
  %v319 = vld [vmem:[%s3 + $0x198] sm:$0xff]
  %v320 = vld [vmem:[%s3 + $0x1a0] sm:$0xff]
  %v321 = vld [vmem:[%s3 + $0x1a8] sm:$0xff]
  %v322 = vld [vmem:[%s3 + $0x1b0] sm:$0xff]
  %v323 = vld [vmem:[%s3 + $0x1b8] sm:$0xff]
  %v324 = vld [vmem:[%s3 + $0x1c0] sm:$0xff]
  %v325 = vld [vmem:[%s3 + $0x1c8] sm:$0xff]
  %v326 = vld [vmem:[%s3 + $0x1d0] sm:$0xff]
  %v327 = vld [vmem:[%s3 + $0x1d8] sm:$0xff]
  %v328 = vld [vmem:[%s3 + $0x1e0] sm:$0xff]
  %v329 = vld [vmem:[%s3 + $0x1e8] sm:$0xff]
  %v330 = vld [vmem:[%s3 + $0x1f0] sm:$0xff]
  %v331 = vld [vmem:[%s3 + $0x1f8] sm:$0xff]
  %v332 = vld [vmem:[%s3 + $0x200] sm:$0xff]
  %v333 = vld [vmem:[%s3 + $0x208] sm:$0xff]
  %v334 = vld [vmem:[%s3 + $0x210] sm:$0xff]
  %v335 = vld [vmem:[%s3 + $0x218] sm:$0xff]
  %v336 = vld [vmem:[%s3 + $0x220] sm:$0xff]
  %v337 = vld [vmem:[%s3 + $0x228] sm:$0xff]
  %v338 = vld [vmem:[%s3 + $0x230] sm:$0xff]
  %v339 = vld [vmem:[%s3 + $0x238] sm:$0xff]
  %v340 = vld [vmem:[%s3 + $0x240] sm:$0xff]
  %v341 = vld [vmem:[%s3 + $0x248] sm:$0xff]
  %v342 = vld [vmem:[%s3 + $0x250] sm:$0xff]
  %v343 = vld [vmem:[%s3 + $0x258] sm:$0xff]
  %v344 = vld [vmem:[%s3 + $0x260] sm:$0xff]
  %v345 = vld [vmem:[%s3 + $0x268] sm:$0xff]
  %v346 = vld [vmem:[%s3 + $0x270] sm:$0xff]
  %v347 = vld [vmem:[%s3 + $0x278] sm:$0xff]
  %v348 = vld [vmem:[%s3 + $0x280] sm:$0xff]
  %v349 = vld [vmem:[%s3 + $0x288] sm:$0xff]
  %v350 = vld [vmem:[%s3 + $0x290] sm:$0xff]
  %v351 = vld [vmem:[%s3 + $0x298] sm:$0xff]
  %v352 = vld [vmem:[%s3 + $0x2a0] sm:$0xff]
  %v353 = vld [vmem:[%s3 + $0x2a8] sm:$0xff]
  %v354 = vld [vmem:[%s3 + $0x2b0] sm:$0xff]
  %v355 = vld [vmem:[%s3 + $0x2b8] sm:$0xff]
  %v356 = vld [vmem:[%s3 + $0x2c0] sm:$0xff]
  %v357 = vld [vmem:[%s3 + $0x2c8] sm:$0xff]
  %v358 = vld [vmem:[%s3 + $0x2d0] sm:$0xff]
  %v359 = vld [vmem:[%s3 + $0x2d8] sm:$0xff]
  %v360 = vld [vmem:[%s3 + $0x2e0] sm:$0xff]
  %v361 = vld [vmem:[%s3 + $0x2e8] sm:$0xff]
  %v362 = vld [vmem:[%s3 + $0x2f0] sm:$0xff]
  %v363 = vld [vmem:[%s3 + $0x2f8] sm:$0xff]
  %v364 = vld [vmem:[%s3 + $0x300] sm:$0xff]
  %v365 = vld [vmem:[%s3 + $0x308] sm:$0xff]
  %v366 = vld [vmem:[%s3 + $0x310] sm:$0xff]
  %v367 = vld [vmem:[%s3 + $0x318] sm:$0xff]
  %v368 = vld [vmem:[%s3 + $0x320] sm:$0xff]
  %v369 = vld [vmem:[%s3 + $0x328] sm:$0xff]
  %v370 = vld [vmem:[%s3 + $0x330] sm:$0xff]
  %v371 = vld [vmem:[%s3 + $0x338] sm:$0xff]
  %v372 = vld [vmem:[%s3 + $0x340] sm:$0xff]
  %v373 = vld [vmem:[%s3 + $0x348] sm:$0xff]
  %v374 = vld [vmem:[%s3 + $0x350] sm:$0xff]
  %v375 = vld [vmem:[%s3 + $0x358] sm:$0xff]
  %v376 = vld [vmem:[%s3 + $0x360] sm:$0xff]
  %v377 = vld [vmem:[%s3 + $0x368] sm:$0xff]
  %v378 = vld [vmem:[%s3 + $0x370] sm:$0xff]
  %v379 = vld [vmem:[%s3 + $0x378] sm:$0xff]
  %v380 = vld [vmem:[%s3 + $0x380] sm:$0xff]
  %v381 = vld [vmem:[%s3 + $0x388] sm:$0xff]
  %v382 = vld [vmem:[%s3 + $0x390] sm:$0xff]
  %v383 = vld [vmem:[%s3 + $0x398] sm:$0xff]
  %v384 = vld [vmem:[%s3 + $0x3a0] sm:$0xff]
  %v385 = vld [vmem:[%s3 + $0x3a8] sm:$0xff]
  %v386 = vld [vmem:[%s3 + $0x3b0] sm:$0xff]
  %v387 = vld [vmem:[%s3 + $0x3b8] sm:$0xff]
  %v388 = vld [vmem:[%s3 + $0x3c0] sm:$0xff]
  %v389 = vld [vmem:[%s3 + $0x3c8] sm:$0xff]
  %v390 = vld [vmem:[%s3 + $0x3d0] sm:$0xff]
  %v391 = vld [vmem:[%s3 + $0x3d8] sm:$0xff]
  %v392 = vld [vmem:[%s3 + $0x3e0] sm:$0xff]
  %v393 = vld [vmem:[%s3 + $0x3e8] sm:$0xff]
  %v394 = vld [vmem:[%s3 + $0x3f0] sm:$0xff]
  %v395 = vld [vmem:[%s3 + $0x3f8] sm:$0xff]
  %v396 = vld [vmem:[%s4] sm:$0x3]
  %v398 = vlaneseq
  %v399 = vshrl.u32 %v398, 7
  %v400 = vsub.s32 0, %v399
  %v401 = vrot.slane %v396, %v400
  %v402 = vlaneseq
  %v403 = vshrl.u32 %v402, 7
  %v404 = vsub.s32 1, %v403
  %v405 = vrot.slane %v396, %v404
  %408 = vmatprep.subr.mxu0 %v269
  %409 = vmatpush1.msra.mxu0 %v268
  %410 = vmatprep.subr.mxu0 %v271
  %411 = vmatpush1.msra.mxu0 %v270
  %412 = vmatprep.subr.mxu0 %v273
  %413 = vmatpush1.msra.mxu0 %v272
  %414 = vmatprep.subr.mxu0 %v275
  %415 = vmatpush1.msra.mxu0 %v274
  %416 = vmatprep.subr.mxu0 %v277
  %417 = vmatpush1.msra.mxu0 %v276
  %418 = vmatprep.subr.mxu0 %v279
  %419 = vmatpush1.msra.mxu0 %v278
  %420 = vmatprep.subr.mxu0 %v281
  %421 = vmatpush1.msra.mxu0 %v280
  %422 = vmatprep.subr.mxu0 %v283
  %423 = vmatpush1.msra.mxu0 %v282
  %424 = vmatprep.subr.mxu0 %v285
  %425 = vmatpush1.msra.mxu0 %v284
  %426 = vmatprep.subr.mxu0 %v287
  %427 = vmatpush1.msra.mxu0 %v286
  %428 = vmatprep.subr.mxu0 %v289
  %429 = vmatpush1.msra.mxu0 %v288
  %430 = vmatprep.subr.mxu0 %v291
  %431 = vmatpush1.msra.mxu0 %v290
  %432 = vmatprep.subr.mxu0 %v293
  %433 = vmatpush1.msra.mxu0 %v292
  %434 = vmatprep.subr.mxu0 %v295
  %435 = vmatpush1.msra.mxu0 %v294
  %436 = vmatprep.subr.mxu0 %v297
  %437 = vmatpush1.msra.mxu0 %v296
  %438 = vmatprep.subr.mxu0 %v299
  %439 = vmatpush1.msra.mxu0 %v298
  %440 = vmatprep.subr.mxu0 %v301
  %441 = vmatpush1.msra.mxu0 %v300
  %442 = vmatprep.subr.mxu0 %v303
  %443 = vmatpush1.msra.mxu0 %v302
  %444 = vmatprep.subr.mxu0 %v305
  %445 = vmatpush1.msra.mxu0 %v304
  %446 = vmatprep.subr.mxu0 %v307
  %447 = vmatpush1.msra.mxu0 %v306
  %448 = vmatprep.subr.mxu0 %v309
  %449 = vmatpush1.msra.mxu0 %v308
  %450 = vmatprep.subr.mxu0 %v311
  %451 = vmatpush1.msra.mxu0 %v310
  %452 = vmatprep.subr.mxu0 %v313
  %453 = vmatpush1.msra.mxu0 %v312
  %454 = vmatprep.subr.mxu0 %v315
  %455 = vmatpush1.msra.mxu0 %v314
  %456 = vmatprep.subr.mxu0 %v317
  %457 = vmatpush1.msra.mxu0 %v316
  %458 = vmatprep.subr.mxu0 %v319
  %459 = vmatpush1.msra.mxu0 %v318
  %460 = vmatprep.subr.mxu0 %v321
  %461 = vmatpush1.msra.mxu0 %v320
  %462 = vmatprep.subr.mxu0 %v323
  %463 = vmatpush1.msra.mxu0 %v322
  %464 = vmatprep.subr.mxu0 %v325
  %465 = vmatpush1.msra.mxu0 %v324
  %466 = vmatprep.subr.mxu0 %v327
  %467 = vmatpush1.msra.mxu0 %v326
  %468 = vmatprep.subr.mxu0 %v329
  %469 = vmatpush1.msra.mxu0 %v328
  %470 = vmatprep.subr.mxu0 %v331
  %471 = vmatpush1.msra.mxu0 %v330
  %472 = vmatprep.mubr.f32.mxu0 %v265
  %473 = vmatmul.mubr.f32.gmra.mrb[0].mxu0 %v264
  %v474 = vpop.f32.mrb[0].mxu0
  %v475 = vadd.f32 %v401, %v474
  %v476 = vpop.f32.mrb[0].mxu0
  %v477 = vadd.f32 %v405, %v476
  %478 = vdwg.mxu0
  %479 = vmatprep.subr.mxu0 %v333
  %480 = vmatpush1.msra.mxu0 %v332
  %481 = vmatprep.subr.mxu0 %v335
  %482 = vmatpush1.msra.mxu0 %v334
  %483 = vmatprep.subr.mxu0 %v337
  %484 = vmatpush1.msra.mxu0 %v336
  %485 = vmatprep.subr.mxu0 %v339
  %486 = vmatpush1.msra.mxu0 %v338
  %487 = vmatprep.subr.mxu0 %v341
  %488 = vmatpush1.msra.mxu0 %v340
  %489 = vmatprep.subr.mxu0 %v343
  %490 = vmatpush1.msra.mxu0 %v342
  %491 = vmatprep.subr.mxu0 %v345
  %492 = vmatpush1.msra.mxu0 %v344
  %493 = vmatprep.subr.mxu0 %v347
  %494 = vmatpush1.msra.mxu0 %v346
  %495 = vmatprep.subr.mxu0 %v349
  %496 = vmatpush1.msra.mxu0 %v348
  %497 = vmatprep.subr.mxu0 %v351
  %498 = vmatpush1.msra.mxu0 %v350
  %499 = vmatprep.subr.mxu0 %v353
  %500 = vmatpush1.msra.mxu0 %v352
  %501 = vmatprep.subr.mxu0 %v355
  %502 = vmatpush1.msra.mxu0 %v354
  %503 = vmatprep.subr.mxu0 %v357
  %504 = vmatpush1.msra.mxu0 %v356
  %505 = vmatprep.subr.mxu0 %v359
  %506 = vmatpush1.msra.mxu0 %v358
  %507 = vmatprep.subr.mxu0 %v361
  %508 = vmatpush1.msra.mxu0 %v360
  %509 = vmatprep.subr.mxu0 %v363
  %510 = vmatpush1.msra.mxu0 %v362
  %511 = vmatprep.subr.mxu0 %v365
  %512 = vmatpush1.msra.mxu0 %v364
  %513 = vmatprep.subr.mxu0 %v367
  %514 = vmatpush1.msra.mxu0 %v366
  %515 = vmatprep.subr.mxu0 %v369
  %516 = vmatpush1.msra.mxu0 %v368
  %517 = vmatprep.subr.mxu0 %v371
  %518 = vmatpush1.msra.mxu0 %v370
  %519 = vmatprep.subr.mxu0 %v373
  %520 = vmatpush1.msra.mxu0 %v372
  %521 = vmatprep.subr.mxu0 %v375
  %522 = vmatpush1.msra.mxu0 %v374
  %523 = vmatprep.subr.mxu0 %v377
  %524 = vmatpush1.msra.mxu0 %v376
  %525 = vmatprep.subr.mxu0 %v379
  %526 = vmatpush1.msra.mxu0 %v378
  %527 = vmatprep.subr.mxu0 %v381
  %528 = vmatpush1.msra.mxu0 %v380
  %529 = vmatprep.subr.mxu0 %v383
  %530 = vmatpush1.msra.mxu0 %v382
  %531 = vmatprep.subr.mxu0 %v385
  %532 = vmatpush1.msra.mxu0 %v384
  %533 = vmatprep.subr.mxu0 %v387
  %534 = vmatpush1.msra.mxu0 %v386
  %535 = vmatprep.subr.mxu0 %v389
  %536 = vmatpush1.msra.mxu0 %v388
  %537 = vmatprep.subr.mxu0 %v391
  %538 = vmatpush1.msra.mxu0 %v390
  %539 = vmatprep.subr.mxu0 %v393
  %540 = vmatpush1.msra.mxu0 %v392
  %541 = vmatprep.subr.mxu0 %v395
  %542 = vmatpush1.msra.mxu0 %v394
  %543 = vmatprep.mubr.f32.mxu0 %v267
  %544 = vmatmul.mubr.f32.gmra.mrb[0].mxu0 %v266
  %v545 = vpop.f32.mrb[0].mxu0
  %v546 = vadd.f32 %v475, %v545
  %v547 = vpop.f32.mrb[0].mxu0
  %v548 = vadd.f32 %v477, %v547
  %549 = vdwg.mxu0
  %v550 = vmax.f32 %v546, 0.0
  %v551 = vmax.f32 %v548, 0.0
  %v552 = vld [vmem:[%s5] sm:$0xff]
  %v553 = vld [vmem:[%s5 + $0x8] sm:$0xff]
  %v554 = vld [vmem:[%s5 + $0x10] sm:$0xff]
  %v555 = vld [vmem:[%s5 + $0x18] sm:$0xff]
  %v556 = vld [vmem:[%s5 + $0x20] sm:$0xff]
  %v557 = vld [vmem:[%s5 + $0x28] sm:$0xff]
  %v558 = vld [vmem:[%s5 + $0x30] sm:$0xff]
  %v559 = vld [vmem:[%s5 + $0x38] sm:$0xff]
  %v560 = vld [vmem:[%s5 + $0x40] sm:$0xff]
  %v561 = vld [vmem:[%s5 + $0x48] sm:$0xff]
  %v562 = vld [vmem:[%s5 + $0x50] sm:$0xff]
  %v563 = vld [vmem:[%s5 + $0x58] sm:$0xff]
  %v564 = vld [vmem:[%s5 + $0x60] sm:$0xff]
  %v565 = vld [vmem:[%s5 + $0x68] sm:$0xff]
  %v566 = vld [vmem:[%s5 + $0x70] sm:$0xff]
  %v567 = vld [vmem:[%s5 + $0x78] sm:$0xff]
  %v568 = vld [vmem:[%s5 + $0x80] sm:$0xff]
  %v569 = vld [vmem:[%s5 + $0x88] sm:$0xff]
  %v570 = vld [vmem:[%s5 + $0x90] sm:$0xff]
  %v571 = vld [vmem:[%s5 + $0x98] sm:$0xff]
  %v572 = vld [vmem:[%s5 + $0xa0] sm:$0xff]
  %v573 = vld [vmem:[%s5 + $0xa8] sm:$0xff]
  %v574 = vld [vmem:[%s5 + $0xb0] sm:$0xff]
  %v575 = vld [vmem:[%s5 + $0xb8] sm:$0xff]
  %v576 = vld [vmem:[%s5 + $0xc0] sm:$0xff]
  %v577 = vld [vmem:[%s5 + $0xc8] sm:$0xff]
  %v578 = vld [vmem:[%s5 + $0xd0] sm:$0xff]
  %v579 = vld [vmem:[%s5 + $0xd8] sm:$0xff]
  %v580 = vld [vmem:[%s5 + $0xe0] sm:$0xff]
  %v581 = vld [vmem:[%s5 + $0xe8] sm:$0xff]
  %v582 = vld [vmem:[%s5 + $0xf0] sm:$0xff]
  %v583 = vld [vmem:[%s5 + $0xf8] sm:$0xff]
  %v584 = vld [vmem:[%s6] sm:$0x1]
  %v586 = vlaneseq
  %v587 = vshrl.u32 %v586, 7
  %v588 = vsub.s32 0, %v587
  %v589 = vrot.slane %v584, %v588
  %591 = vmatprep.subr.mxu0 0.0
  %592 = vmatpush1.msra.mxu0 %v552
  %593 = vmatprep.subr.mxu0 0.0
  %594 = vmatpush1.msra.mxu0 %v553
  %595 = vmatprep.subr.mxu0 0.0
  %596 = vmatpush1.msra.mxu0 %v554
  %597 = vmatprep.subr.mxu0 0.0
  %598 = vmatpush1.msra.mxu0 %v555
  %599 = vmatprep.subr.mxu0 0.0
  %600 = vmatpush1.msra.mxu0 %v556
  %601 = vmatprep.subr.mxu0 0.0
  %602 = vmatpush1.msra.mxu0 %v557
  %603 = vmatprep.subr.mxu0 0.0
  %604 = vmatpush1.msra.mxu0 %v558
  %605 = vmatprep.subr.mxu0 0.0
  %606 = vmatpush1.msra.mxu0 %v559
  %607 = vmatprep.subr.mxu0 0.0
  %608 = vmatpush1.msra.mxu0 %v560
  %609 = vmatprep.subr.mxu0 0.0
  %610 = vmatpush1.msra.mxu0 %v561
  %611 = vmatprep.subr.mxu0 0.0
  %612 = vmatpush1.msra.mxu0 %v562
  %613 = vmatprep.subr.mxu0 0.0
  %614 = vmatpush1.msra.mxu0 %v563
  %615 = vmatprep.subr.mxu0 0.0
  %616 = vmatpush1.msra.mxu0 %v564
  %617 = vmatprep.subr.mxu0 0.0
  %618 = vmatpush1.msra.mxu0 %v565
  %619 = vmatprep.subr.mxu0 0.0
  %620 = vmatpush1.msra.mxu0 %v566
  %621 = vmatprep.subr.mxu0 0.0
  %622 = vmatpush1.msra.mxu0 %v567
  %623 = vmatprep.subr.mxu0 0.0
  %624 = vmatpush1.msra.mxu0 %v568
  %625 = vmatprep.subr.mxu0 0.0
  %626 = vmatpush1.msra.mxu0 %v569
  %627 = vmatprep.subr.mxu0 0.0
  %628 = vmatpush1.msra.mxu0 %v570
  %629 = vmatprep.subr.mxu0 0.0
  %630 = vmatpush1.msra.mxu0 %v571
  %631 = vmatprep.subr.mxu0 0.0
  %632 = vmatpush1.msra.mxu0 %v572
  %633 = vmatprep.subr.mxu0 0.0
  %634 = vmatpush1.msra.mxu0 %v573
  %635 = vmatprep.subr.mxu0 0.0
  %636 = vmatpush1.msra.mxu0 %v574
  %637 = vmatprep.subr.mxu0 0.0
  %638 = vmatpush1.msra.mxu0 %v575
  %639 = vmatprep.subr.mxu0 0.0
  %640 = vmatpush1.msra.mxu0 %v576
  %641 = vmatprep.subr.mxu0 0.0
  %642 = vmatpush1.msra.mxu0 %v577
  %643 = vmatprep.subr.mxu0 0.0
  %644 = vmatpush1.msra.mxu0 %v578
  %645 = vmatprep.subr.mxu0 0.0
  %646 = vmatpush1.msra.mxu0 %v579
  %647 = vmatprep.subr.mxu0 0.0
  %648 = vmatpush1.msra.mxu0 %v580
  %649 = vmatprep.subr.mxu0 0.0
  %650 = vmatpush1.msra.mxu0 %v581
  %651 = vmatprep.subr.mxu0 0.0
  %652 = vmatpush1.msra.mxu0 %v582
  %653 = vmatprep.subr.mxu0 0.0
  %654 = vmatpush1.msra.mxu0 %v583
  %655 = vmatprep.mubr.f32.mxu0 %v551
  %656 = vmatmul.mubr.f32.gmra.mrb[0].mxu0 %v550
  %v657 = vpop.f32.mrb[0].mxu0
  %v658 = vadd.f32 %v589, %v657
  %v659 = vpop.f32.mrb[0].mxu0
  %660 = vdwg.mxu0
  %v661 = vld [vmem:[%s7] sm:$0xff]
  %v662 = vld [vmem:[%s7 + $0x8] sm:$0xff]
  %v663 = vld [vmem:[%s7 + $0x10] sm:$0xff]
  %v664 = vld [vmem:[%s7 + $0x18] sm:$0xff]
  %v665 = vld [vmem:[%s7 + $0x20] sm:$0xff]
  %v666 = vld [vmem:[%s7 + $0x28] sm:$0xff]
  %v667 = vld [vmem:[%s7 + $0x30] sm:$0xff]
  %v668 = vld [vmem:[%s7 + $0x38] sm:$0xff]
  %v669 = vld [vmem:[%s7 + $0x40] sm:$0xff]
  %v670 = vld [vmem:[%s7 + $0x48] sm:$0xff]
  %v671 = vld [vmem:[%s7 + $0x50] sm:$0xff]
  %v672 = vld [vmem:[%s7 + $0x58] sm:$0xff]
  %v673 = vld [vmem:[%s7 + $0x60] sm:$0xff]
  %v674 = vld [vmem:[%s7 + $0x68] sm:$0xff]
  %v675 = vld [vmem:[%s7 + $0x70] sm:$0xff]
  %v676 = vld [vmem:[%s7 + $0x78] sm:$0xff]
  %v677 = vld [vmem:[%s8] sm:$0x1]
  %v679 = vlaneseq
  %v680 = vshrl.u32 %v679, 7
  %v681 = vsub.s32 0, %v680
  %v682 = vrot.slane %v677, %v681
  %684 = vmatprep.subr.mxu0 0.0
  %685 = vmatpush1.msra.mxu0 %v661
  %686 = vmatprep.subr.mxu0 0.0
  %687 = vmatpush1.msra.mxu0 %v662
  %688 = vmatprep.subr.mxu0 0.0
  %689 = vmatpush1.msra.mxu0 %v663
  %690 = vmatprep.subr.mxu0 0.0
  %691 = vmatpush1.msra.mxu0 %v664
  %692 = vmatprep.subr.mxu0 0.0
  %693 = vmatpush1.msra.mxu0 %v665
  %694 = vmatprep.subr.mxu0 0.0
  %695 = vmatpush1.msra.mxu0 %v666
  %696 = vmatprep.subr.mxu0 0.0
  %697 = vmatpush1.msra.mxu0 %v667
  %698 = vmatprep.subr.mxu0 0.0
  %699 = vmatpush1.msra.mxu0 %v668
  %700 = vmatprep.subr.mxu0 0.0
  %701 = vmatpush1.msra.mxu0 %v669
  %702 = vmatprep.subr.mxu0 0.0
  %703 = vmatpush1.msra.mxu0 %v670
  %704 = vmatprep.subr.mxu0 0.0
  %705 = vmatpush1.msra.mxu0 %v671
  %706 = vmatprep.subr.mxu0 0.0
  %707 = vmatpush1.msra.mxu0 %v672
  %708 = vmatprep.subr.mxu0 0.0
  %709 = vmatpush1.msra.mxu0 %v673
  %710 = vmatprep.subr.mxu0 0.0
  %711 = vmatpush1.msra.mxu0 %v674
  %712 = vmatprep.subr.mxu0 0.0
  %713 = vmatpush1.msra.mxu0 %v675
  %714 = vmatprep.subr.mxu0 0.0
  %715 = vmatpush1.msra.mxu0 %v676
  %716 = vmatprep.subr.mxu0 0.0
  %717 = vmatpush1.msra.mxu0 0.0
  %718 = vmatprep.subr.mxu0 0.0
  %719 = vmatpush1.msra.mxu0 0.0
  %720 = vmatprep.subr.mxu0 0.0
  %721 = vmatpush1.msra.mxu0 0.0
  %722 = vmatprep.subr.mxu0 0.0
  %723 = vmatpush1.msra.mxu0 0.0
  %724 = vmatprep.subr.mxu0 0.0
  %725 = vmatpush1.msra.mxu0 0.0
  %726 = vmatprep.subr.mxu0 0.0
  %727 = vmatpush1.msra.mxu0 0.0
  %728 = vmatprep.subr.mxu0 0.0
  %729 = vmatpush1.msra.mxu0 0.0
  %730 = vmatprep.subr.mxu0 0.0
  %731 = vmatpush1.msra.mxu0 0.0
  %732 = vmatprep.subr.mxu0 0.0
  %733 = vmatpush1.msra.mxu0 0.0
  %734 = vmatprep.subr.mxu0 0.0
  %735 = vmatpush1.msra.mxu0 0.0
  %736 = vmatprep.subr.mxu0 0.0
  %737 = vmatpush1.msra.mxu0 0.0
  %738 = vmatprep.subr.mxu0 0.0
  %739 = vmatpush1.msra.mxu0 0.0
  %740 = vmatprep.subr.mxu0 0.0
  %741 = vmatpush1.msra.mxu0 0.0
  %742 = vmatprep.subr.mxu0 0.0
  %743 = vmatpush1.msra.mxu0 0.0
  %744 = vmatprep.subr.mxu0 0.0
  %745 = vmatpush1.msra.mxu0 0.0
  %746 = vmatprep.subr.mxu0 0.0
  %747 = vmatpush1.msra.mxu0 0.0
  %748 = vmatprep.mubr.f32.mxu0 0.0
  %749 = vmatmul.mubr.f32.gmra.mrb[0].mxu0 %v658
  %v750 = vpop.f32.mrb[0].mxu0
  %v751 = vadd.f32 %v682, %v750
  %v752 = vpop.f32.mrb[0].mxu0
  %753 = vdwg.mxu0
  %v754 = vmul.f32 %v751, 0.5
  %v755 = vmul.f32 %v754, 1.442695
  %v756 = vpow.pop %v755
  %v757 = vld [vmem:[%s9] sm:$0x3]
  %759 = vrot.lane.b32.xlu0 %v757, 32
  %v760 = vpop.permute.xlu0 %759
  %v762 = vmul.f32 %v756, %v760
  %764 = vrot.lane.b32.xlu0 %v762, 96
  %v765 = vpop.permute.xlu0 %764
  %v767 = vadd.f32 %v751, %v765
  %769 = vrot.lane.b32.xlu0 %v767, 64
  %v770 = vpop.permute.xlu0 %769
  %vm772 = vcmask 523264
  %v773 = vsel %vm772, %v751, %v770
  %vm774 = vcmask 779264
  %775 = vst.msk [vmem:[%s10] sm:$0x3] %vm774, %v773
  // Predicated region
  $region42: #{spec_encoder_forward.7} parent=0 // pred_check
    _
  $region43: #{spec_encoder_forward.7} parent=0 // pred_check_branch
    %777 = sbr.rel (0) target = $region45
  $region44: #{spec_encoder_forward.7} parent=0 // pred_region
    _
  $region45: #{spec_encoder_forward.7} parent=0 // pred_fallthru
    _
  // Predicated region
  $region46: #{spec_encoder_forward.7} parent=0 // pred_check
    _
  $region47: #{spec_encoder_forward.7} parent=0 // pred_check_branch
    %779 = sbr.rel (0) target = $region49
  $region48: #{spec_encoder_forward.7} parent=0 // pred_region
    _
  $region49: #{spec_encoder_forward.7} parent=0 // pred_fallthru
    _

</llo_original>
